<compile_context>
chip_gen: v6e
topology: v6e:2x2x1
jax: 0.10.0
libtpu: 0.0.40
codegen_flags: <defaults>
</compile_context>

<pallas_src>
import math
import jax
import jax.numpy as jnp
from jax.experimental import pallas as pl
from jax.experimental.pallas import tpu as pltpu

# ----------------- small synthetic hyper-parameters -----------------
TOKENS = 10
NOTES = 12
DURATIONS = 16
GENRES = 3
SINGERS = 4
ENC_SIZE = 32          # hp.Encoder.Size
NUM_HEAD = 2           # hp.Encoder.ConvFFT.Head
FFN_KERNEL = 5         # hp.Encoder.ConvFFT.FFN.Kernel_Size
NUM_STACK = 2          # hp.Encoder.ConvFFT.Stack
FEATURE_SIZE = 16      # hp.Sound.Mel_Dim (Feature_Type == 'Mel')
EPS = 1e-5
NEG_BIG = -1e9


# ---------------------- fused encoder kernel ------------------------
def encoder_fused(x, lengths, params):
    """x: [B, T, C] f32, lengths: [B] i32 -> (enc [B,C,T], lin [B,F,T])."""
    B, T, C = x.shape
    H = NUM_HEAD
    Ch = C // H
    K = FFN_KERNEL
    PAD = (K - 1) // 2
    S = NUM_STACK
    F = params['proj_w_t'].shape[0]

    def layer_norm(z, gamma, beta):
        mean = jnp.mean(z, axis=-1, keepdims=True)
        var = jnp.mean((z - mean) ** 2, axis=-1, keepdims=True)
        return (z - mean) * jax.lax.rsqrt(var + EPS) * gamma + beta

    def kernel(len_ref, x_ref, wqkv_ref, wo_ref, bo_ref, ga_ref, ba_ref,
               c0w_ref, c0b_ref, c1w_ref, c1b_ref, gf_ref, bf_ref,
               pwT_ref, pb_ref, enc_ref, lin_ref):
        b = pl.program_id(0)
        length = len_ref[b]

        # sequence mask + conv edge masks built in-kernel (VPU filler, no DMA)
        t_idx = jax.lax.broadcasted_iota(jnp.int32, (T, 1), 0)
        m_bool = t_idx < length
        m = m_bool.astype(jnp.float32)                         # [T, 1]

        tap_valid = [None] * K
        for j in range(K):
            s = j - PAD
            if s != 0:
                tap_valid[j] = (t_idx + s >= 0) & (t_idx + s < T)

        def conv_im2col(z, w_ref, b_row, st):
            # K shifted copies concatenated on lanes -> ONE MXU matmul
            taps = []
            for j in range(K):
                s = j - PAD
                if s == 0:
                    taps.append(z)
                else:
                    rolled = pltpu.roll(z, (-s) % T, axis=0)
                    taps.append(jnp.where(tap_valid[j], rolled, 0.0))
            zc = jnp.concatenate(taps, axis=-1).astype(jnp.bfloat16)  # [T, K*C]
            return jnp.dot(zc, w_ref[st],
                           preferred_element_type=jnp.float32) + b_row

        x = x_ref[0]                                           # [T, C] f32

        for st in range(S):
            # ----------------- LinearAttention -----------------
            x_m = (x * m).astype(jnp.bfloat16)
            qkv = jnp.dot(x_m, wqkv_ref[st],
                          preferred_element_type=jnp.float32)  # [T, 3C] f32
            heads = []
            for h in range(H):
                q_h = qkv[:, h * Ch:(h + 1) * Ch]
                k_h = qkv[:, C + h * Ch:C + (h + 1) * Ch]
                v_h = qkv[:, 2 * C + h * Ch:2 * C + (h + 1) * Ch] * m
                # softmax(q) over channels (f32)
                q_e = jnp.exp(q_h - jnp.max(q_h, axis=-1, keepdims=True))
                q_s = q_e / jnp.sum(q_e, axis=-1, keepdims=True)
                # masked softmax(k) over time (f32)
                k_msk = jnp.where(m_bool, k_h, NEG_BIG)
                k_e = jnp.exp(k_msk - jnp.max(k_msk, axis=0, keepdims=True))
                k_s = k_e / jnp.sum(k_e, axis=0, keepdims=True)
                # reassociated linear attention: q_s @ (k_s^T @ v), no [T,T]
                kv = jax.lax.dot_general(
                    k_s.astype(jnp.bfloat16), v_h.astype(jnp.bfloat16),
                    dimension_numbers=(((0,), (0,)), ((), ())),
                    preferred_element_type=jnp.float32)        # [Ch, Ch]
                heads.append(jnp.dot(q_s.astype(jnp.bfloat16),
                                     kv.astype(jnp.bfloat16),
                                     preferred_element_type=jnp.float32))
            # heads back to lanes -> single fused output projection
            att = jnp.concatenate(heads, axis=-1).astype(jnp.bfloat16)  # [T, C]
            att = jnp.dot(att, wo_ref[st],
                          preferred_element_type=jnp.float32) + bo_ref[st]
            x = layer_norm(att + x, ga_ref[st], ba_ref[st])

            # ------------- FFN (dropout == identity, eval) -------------
            residual = x
            h0 = jnp.maximum(conv_im2col(x * m, c0w_ref, c0b_ref[st], st), 0.0)
            h1 = conv_im2col(h0 * m, c1w_ref, c1b_ref[st], st)
            x = layer_norm(h1 + residual, gf_ref[st], bf_ref[st]) * m

        # lane-dense (time-on-lanes) outputs in PyTorch [B, Channel, Time]
        # layout: no post-kernel transposes.
        x_t = jnp.transpose(x, (1, 0))                         # [C, T] f32
        enc_ref[0] = x_t
        lin_ref[0] = (jnp.dot(pwT_ref[...], x_t.astype(jnp.bfloat16),
                              preferred_element_type=jnp.float32)
                      + pb_ref[...])

    batch3 = lambda b, lens: (b, 0, 0)
    const3 = lambda b, lens: (0, 0, 0)
    const2 = lambda b, lens: (0, 0)

    grid_spec = pltpu.PrefetchScalarGridSpec(
        num_scalar_prefetch=1,
        grid=(B,),
        in_specs=[
            pl.BlockSpec((1, T, C), batch3),                 # x
            pl.BlockSpec((S, C, 3 * C), const3),             # wqkv   (bf16)
            pl.BlockSpec((S, C, C), const3),                 # w_out  (bf16)
            pl.BlockSpec((S, 1, C), const3),                 # b_out
            pl.BlockSpec((S, 1, C), const3),                 # g_att
            pl.BlockSpec((S, 1, C), const3),                 # b_att
            pl.BlockSpec((S, K * C, C), const3),             # conv0_w (bf16, im2col)
            pl.BlockSpec((S, 1, C), const3),                 # conv0_b
            pl.BlockSpec((S, K * C, C), const3),             # conv1_w (bf16, im2col)
            pl.BlockSpec((S, 1, C), const3),                 # conv1_b
            pl.BlockSpec((S, 1, C), const3),                 # g_ffn
            pl.BlockSpec((S, 1, C), const3),                 # b_ffn
            pl.BlockSpec((F, C), const2),                    # proj_w^T (bf16)
            pl.BlockSpec((F, 1), const2),                    # proj_b
        ],
        out_specs=[
            pl.BlockSpec((1, C, T), batch3),                 # enc [B, C, T]
            pl.BlockSpec((1, F, T), batch3),                 # lin [B, F, T]
        ],
    )

    enc, lin = pl.pallas_call(
        kernel,
        grid_spec=grid_spec,
        out_shape=(jax.ShapeDtypeStruct((B, C, T), jnp.float32),
                   jax.ShapeDtypeStruct((B, F, T), jnp.float32)),
        compiler_params=pltpu.CompilerParams(
            dimension_semantics=("parallel",),               # v7x: both TCs
            vmem_limit_bytes=64 * 1024 * 1024),
    )(lengths, x,
      params['wqkv'], params['w_out'], params['b_out'],
      params['g_att'], params['b_att'],
      params['conv0_w'], params['conv0_b'],
      params['conv1_w'], params['conv1_b'],
      params['g_ffn'], params['b_ffn'],
      params['proj_w_t'], params['proj_b'])
    return enc, lin


# -------------------------- parameter init --------------------------
def _xavier(key, shape, dtype=jnp.float32):
    fan_in, fan_out = shape[-2], shape[-1]
    limit = math.sqrt(6.0 / (fan_in + fan_out))
    return jax.random.uniform(key, shape, jnp.float32, -limit, limit).astype(dtype)


def init_params(key):
    C = ENC_SIZE
    S = NUM_STACK
    K = FFN_KERNEL
    F = FEATURE_SIZE
    keys = jax.random.split(key, 12)

    # Duration positional-encoding table (deterministic sin/cos)
    position = jnp.arange(DURATIONS, dtype=jnp.float32)[:, None]
    div_term = jnp.exp(jnp.arange(0, C, 2, dtype=jnp.float32)
                       * (-math.log(10000.0) / C))
    pe = jnp.zeros((DURATIONS, C), jnp.float32)
    pe = pe.at[:, 0::2].set(jnp.sin(position * div_term))
    pe = pe.at[:, 1::2].set(jnp.cos(position * div_term))

    params = {
        'token_emb': _xavier(keys[0], (TOKENS, C)),
        'note_emb': _xavier(keys[1], (NOTES, C)),
        'genre_emb': _xavier(keys[2], (GENRES, C)),
        'singer_emb': _xavier(keys[3], (SINGERS, C)),
        'dur_pe': pe,
        'dur_alpha': jnp.float32(0.01),
        # fused per-stack attention weights: columns = [q | k | v], head-major
        'wqkv': _xavier(keys[4], (S, C, 3 * C), jnp.bfloat16),
        'w_out': _xavier(keys[5], (S, C, C), jnp.bfloat16),
        'b_out': jnp.zeros((S, 1, C), jnp.float32),
        'g_att': jnp.ones((S, 1, C), jnp.float32),
        'b_att': jnp.zeros((S, 1, C), jnp.float32),
        # im2col conv weights: row block j*C:(j+1)*C multiplies x[t + j - pad]
        'conv0_w': _xavier(keys[6], (S, K * C, C), jnp.bfloat16),
        'conv0_b': jnp.zeros((S, 1, C), jnp.float32),
        'conv1_w': _xavier(keys[7], (S, K * C, C), jnp.bfloat16),
        'conv1_b': jnp.zeros((S, 1, C), jnp.float32),
        'g_ffn': jnp.ones((S, 1, C), jnp.float32),
        'b_ffn': jnp.zeros((S, 1, C), jnp.float32),
        # 1x1 projection stored transposed so the kernel writes [F, T] directly
        'proj_w_t': _xavier(keys[8], (F, C), jnp.bfloat16),
        'proj_b': jnp.zeros((F, 1), jnp.float32),
    }
    return params


# --------------------------- forward pass ----------------------------
def diffsinger_forward(params, tokens, notes, durations, lengths, genres, singers):
    # Encoder embedding sum (gathers are glue, stay in plain JAX)
    x = (params['token_emb'][tokens]
         + params['note_emb'][notes]
         + params['dur_alpha'] * params['dur_pe'][durations]
         + params['genre_emb'][genres][:, None, :]
         + params['singer_emb'][singers][:, None, :])          # [B, T, C]

    # Both FFT_Block stacks + final 1x1-conv projection in ONE fused kernel.
    # Outputs come back already in PyTorch's [Batch, Channel, Time] layout.
    encodings, linear_predictions = encoder_fused(
        x, lengths.astype(jnp.int32), params)                  # [B,C,T], [B,F,T]

    encodings_cat = jnp.concatenate([encodings, linear_predictions], axis=1)
    # TODO(synk): Diffusion module not provided in the reference source.
    diffusion_predictions, noises, epsilons = None, None, None
    del encodings_cat  # would feed the Diffusion module
    return linear_predictions, diffusion_predictions, noises, epsilons


# ------------------------------- main --------------------------------
if __name__ == "__main__":
    key = jax.random.PRNGKey(0)
    params = init_params(key)

    B, T = 2, 16
    ks = jax.random.split(jax.random.PRNGKey(0), 5)
    tokens = jax.random.randint(ks[0], (B, T), 0, TOKENS)
    notes = jax.random.randint(ks[1], (B, T), 0, NOTES)
    durations = jax.random.randint(ks[2], (B, T), 0, DURATIONS)
    genres = jax.random.randint(ks[3], (B,), 0, GENRES)
    singers = jax.random.randint(ks[4], (B,), 0, SINGERS)
    lengths = jnp.array([16, 12], dtype=jnp.int32)

    fwd = jax.jit(diffsinger_forward)
    linear_preds, diff_preds, noises, epsilons = fwd(
        params, tokens, notes, durations, lengths, genres, singers)
    jax.block_until_ready(linear_preds)
    assert linear_preds.shape == (B, FEATURE_SIZE, T)
    print("KERNEL_OK")
</pallas_src>

<mosaic_0001>
module attributes {stable_mosaic.version = 11 : i64} {
  func.func @kernel(%arg0: i32, %arg1: memref<2xi32, #tpu.memory_space<smem>>, %arg2: memref<1x16x32xf32, #tpu.memory_space<vmem>>, %arg3: memref<2x32x96xbf16, #tpu.memory_space<vmem>>, %arg4: memref<2x32x32xbf16, #tpu.memory_space<vmem>>, %arg5: memref<2x1x32xf32, #tpu.memory_space<vmem>>, %arg6: memref<2x1x32xf32, #tpu.memory_space<vmem>>, %arg7: memref<2x1x32xf32, #tpu.memory_space<vmem>>, %arg8: memref<2x160x32xbf16, #tpu.memory_space<vmem>>, %arg9: memref<2x1x32xf32, #tpu.memory_space<vmem>>, %arg10: memref<2x160x32xbf16, #tpu.memory_space<vmem>>, %arg11: memref<2x1x32xf32, #tpu.memory_space<vmem>>, %arg12: memref<2x1x32xf32, #tpu.memory_space<vmem>>, %arg13: memref<2x1x32xf32, #tpu.memory_space<vmem>>, %arg14: memref<16x32xbf16, #tpu.memory_space<vmem>>, %arg15: memref<16x1xf32, #tpu.memory_space<vmem>>, %arg16: memref<1x32x16xf32, #tpu.memory_space<vmem>>, %arg17: memref<1x16x16xf32, #tpu.memory_space<vmem>>) attributes {dimension_semantics = [#tpu.dimension_semantics<parallel>], iteration_bounds = array<i64: 2>, scalar_prefetch = 1 : i64, scratch_operands = 0 : i64, tpu.core_type = #tpu.core_type<tc>, window_params = [{transform_indices = @transform_0, window_bounds = array<i64: 1, 16, 32>}, {pipeline_mode = #tpu.pipeline_mode<synchronous>, transform_indices = @transform_1, window_bounds = array<i64: 2, 32, 96>}, {pipeline_mode = #tpu.pipeline_mode<synchronous>, transform_indices = @transform_2, window_bounds = array<i64: 2, 32, 32>}, {pipeline_mode = #tpu.pipeline_mode<synchronous>, transform_indices = @transform_3, window_bounds = array<i64: 2, 1, 32>}, {pipeline_mode = #tpu.pipeline_mode<synchronous>, transform_indices = @transform_4, window_bounds = array<i64: 2, 1, 32>}, {pipeline_mode = #tpu.pipeline_mode<synchronous>, transform_indices = @transform_5, window_bounds = array<i64: 2, 1, 32>}, {pipeline_mode = #tpu.pipeline_mode<synchronous>, transform_indices = @transform_6, window_bounds = array<i64: 2, 160, 32>}, {pipeline_mode = #tpu.pipeline_mode<synchronous>, transform_indices = @transform_7, window_bounds = array<i64: 2, 1, 32>}, {pipeline_mode = #tpu.pipeline_mode<synchronous>, transform_indices = @transform_8, window_bounds = array<i64: 2, 160, 32>}, {pipeline_mode = #tpu.pipeline_mode<synchronous>, transform_indices = @transform_9, window_bounds = array<i64: 2, 1, 32>}, {pipeline_mode = #tpu.pipeline_mode<synchronous>, transform_indices = @transform_10, window_bounds = array<i64: 2, 1, 32>}, {pipeline_mode = #tpu.pipeline_mode<synchronous>, transform_indices = @transform_11, window_bounds = array<i64: 2, 1, 32>}, {pipeline_mode = #tpu.pipeline_mode<synchronous>, transform_indices = @transform_12, window_bounds = array<i64: 16, 32>}, {pipeline_mode = #tpu.pipeline_mode<synchronous>, transform_indices = @transform_13, window_bounds = array<i64: 16, 1>}, {transform_indices = @transform_14, window_bounds = array<i64: 1, 32, 16>}, {transform_indices = @transform_15, window_bounds = array<i64: 1, 16, 16>}]} {
    %0 = arith.index_cast %arg0 : i32 to index
    %1 = memref.load %arg1[%0] : memref<2xi32, #tpu.memory_space<smem>>
    %2 = tpu.iota {dimensions = array<i32: 0>} : vector<16x1xi32>
    %3 = vector.broadcast %1 : i32 to vector<16x1xi32>
    %4 = arith.cmpi slt, %2, %3 : vector<16x1xi32>
    %5 = arith.extui %4 : vector<16x1xi1> to vector<16x1xi32>
    %6 = arith.sitofp %5 : vector<16x1xi32> to vector<16x1xf32>
    %c-2_i32 = arith.constant -2 : i32
    %7 = vector.broadcast %c-2_i32 : i32 to vector<16x1xi32>
    %8 = arith.addi %2, %7 : vector<16x1xi32>
    %c0_i32 = arith.constant 0 : i32
    %9 = vector.broadcast %c0_i32 : i32 to vector<16x1xi32>
    %10 = arith.cmpi sge, %8, %9 : vector<16x1xi32>
    %c-2_i32_0 = arith.constant -2 : i32
    %11 = vector.broadcast %c-2_i32_0 : i32 to vector<16x1xi32>
    %12 = arith.addi %2, %11 : vector<16x1xi32>
    %c16_i32 = arith.constant 16 : i32
    %13 = vector.broadcast %c16_i32 : i32 to vector<16x1xi32>
    %14 = arith.cmpi slt, %12, %13 : vector<16x1xi32>
    %15 = arith.andi %10, %14 : vector<16x1xi1>
    %c-1_i32 = arith.constant -1 : i32
    %16 = vector.broadcast %c-1_i32 : i32 to vector<16x1xi32>
    %17 = arith.addi %2, %16 : vector<16x1xi32>
    %c0_i32_1 = arith.constant 0 : i32
    %18 = vector.broadcast %c0_i32_1 : i32 to vector<16x1xi32>
    %19 = arith.cmpi sge, %17, %18 : vector<16x1xi32>
    %c-1_i32_2 = arith.constant -1 : i32
    %20 = vector.broadcast %c-1_i32_2 : i32 to vector<16x1xi32>
    %21 = arith.addi %2, %20 : vector<16x1xi32>
    %c16_i32_3 = arith.constant 16 : i32
    %22 = vector.broadcast %c16_i32_3 : i32 to vector<16x1xi32>
    %23 = arith.cmpi slt, %21, %22 : vector<16x1xi32>
    %24 = arith.andi %19, %23 : vector<16x1xi1>
    %c1_i32 = arith.constant 1 : i32
    %25 = vector.broadcast %c1_i32 : i32 to vector<16x1xi32>
    %26 = arith.addi %2, %25 : vector<16x1xi32>
    %c0_i32_4 = arith.constant 0 : i32
    %27 = vector.broadcast %c0_i32_4 : i32 to vector<16x1xi32>
    %28 = arith.cmpi sge, %26, %27 : vector<16x1xi32>
    %c1_i32_5 = arith.constant 1 : i32
    %29 = vector.broadcast %c1_i32_5 : i32 to vector<16x1xi32>
    %30 = arith.addi %2, %29 : vector<16x1xi32>
    %c16_i32_6 = arith.constant 16 : i32
    %31 = vector.broadcast %c16_i32_6 : i32 to vector<16x1xi32>
    %32 = arith.cmpi slt, %30, %31 : vector<16x1xi32>
    %33 = arith.andi %28, %32 : vector<16x1xi1>
    %c2_i32 = arith.constant 2 : i32
    %34 = vector.broadcast %c2_i32 : i32 to vector<16x1xi32>
    %35 = arith.addi %2, %34 : vector<16x1xi32>
    %c0_i32_7 = arith.constant 0 : i32
    %36 = vector.broadcast %c0_i32_7 : i32 to vector<16x1xi32>
    %37 = arith.cmpi sge, %35, %36 : vector<16x1xi32>
    %c2_i32_8 = arith.constant 2 : i32
    %38 = vector.broadcast %c2_i32_8 : i32 to vector<16x1xi32>
    %39 = arith.addi %2, %38 : vector<16x1xi32>
    %c16_i32_9 = arith.constant 16 : i32
    %40 = vector.broadcast %c16_i32_9 : i32 to vector<16x1xi32>
    %41 = arith.cmpi slt, %39, %40 : vector<16x1xi32>
    %42 = arith.andi %37, %41 : vector<16x1xi1>
    %c0 = arith.constant 0 : index
    %c0_10 = arith.constant 0 : index
    %c0_11 = arith.constant 0 : index
    %43 = vector.load %arg2[%c0, %c0_10, %c0_11] : memref<1x16x32xf32, #tpu.memory_space<vmem>>, vector<1x16x32xf32>
    %44 = vector.shape_cast %43 : vector<1x16x32xf32> to vector<16x32xf32>
    %45 = vector.broadcast %6 : vector<16x1xf32> to vector<16x32xf32>
    %46 = arith.mulf %44, %45 : vector<16x32xf32>
    %47 = arith.truncf %46 : vector<16x32xf32> to vector<16x32xbf16>
    %c0_12 = arith.constant 0 : index
    %c0_13 = arith.constant 0 : index
    %c0_14 = arith.constant 0 : index
    %48 = vector.load %arg3[%c0_12, %c0_13, %c0_14] : memref<2x32x96xbf16, #tpu.memory_space<vmem>>, vector<1x32x96xbf16>
    %49 = vector.shape_cast %48 : vector<1x32x96xbf16> to vector<32x96xbf16>
    %cst = arith.constant dense<0.000000e+00> : vector<16x96xf32>
    %50 = tpu.matmul %47, %49, %cst {dimension_numbers = #tpu.dot_dimension_numbers<[1], [0], [0], [1], [0, 0, 1, 1], [], []>} : vector<16x32xbf16>, vector<32x96xbf16>, vector<16x96xf32> -> vector<16x96xf32>
    %51 = vector.extract_strided_slice %50 {offsets = [0, 0], sizes = [16, 16], strides = [1, 1]} : vector<16x96xf32> to vector<16x16xf32>
    %52 = vector.extract_strided_slice %50 {offsets = [0, 32], sizes = [16, 16], strides = [1, 1]} : vector<16x96xf32> to vector<16x16xf32>
    %53 = vector.extract_strided_slice %50 {offsets = [0, 64], sizes = [16, 16], strides = [1, 1]} : vector<16x96xf32> to vector<16x16xf32>
    %54 = vector.broadcast %6 : vector<16x1xf32> to vector<16x16xf32>
    %55 = arith.mulf %53, %54 : vector<16x16xf32>
    %cst_15 = arith.constant dense<0xFF800000> : vector<16xf32>
    %56 = vector.multi_reduction <maximumf>, %51, %cst_15 [1] : vector<16x16xf32> to vector<16xf32>
    %57 = vector.shape_cast %56 : vector<16xf32> to vector<16x1xf32>
    %58 = vector.broadcast %57 : vector<16x1xf32> to vector<16x16xf32>
    %59 = arith.subf %51, %58 : vector<16x16xf32>
    %60 = math.exp %59 : vector<16x16xf32>
    %cst_16 = arith.constant dense<0.000000e+00> : vector<16xf32>
    %61 = vector.multi_reduction <add>, %60, %cst_16 [1] : vector<16x16xf32> to vector<16xf32>
    %62 = vector.shape_cast %61 : vector<16xf32> to vector<16x1xf32>
    %63 = vector.broadcast %62 : vector<16x1xf32> to vector<16x16xf32>
    %64 = arith.divf %60, %63 : vector<16x16xf32>
    %cst_17 = arith.constant -1.000000e+09 : f32
    %65 = vector.shape_cast %4 : vector<16x1xi1> to vector<16x1xi1>
    %66 = vector.broadcast %65 : vector<16x1xi1> to vector<16x16xi1>
    %67 = vector.broadcast %cst_17 : f32 to vector<16x16xf32>
    %68 = arith.select %66, %52, %67 : vector<16x16xi1>, vector<16x16xf32>
    %cst_18 = arith.constant dense<0xFF800000> : vector<16xf32>
    %69 = vector.multi_reduction <maximumf>, %68, %cst_18 [0] : vector<16x16xf32> to vector<16xf32>
    %70 = vector.shape_cast %69 : vector<16xf32> to vector<1x16xf32>
    %71 = vector.broadcast %70 : vector<1x16xf32> to vector<16x16xf32>
    %72 = arith.subf %68, %71 : vector<16x16xf32>
    %73 = math.exp %72 : vector<16x16xf32>
    %cst_19 = arith.constant dense<0.000000e+00> : vector<16xf32>
    %74 = vector.multi_reduction <add>, %73, %cst_19 [0] : vector<16x16xf32> to vector<16xf32>
    %75 = vector.shape_cast %74 : vector<16xf32> to vector<1x16xf32>
    %76 = vector.broadcast %75 : vector<1x16xf32> to vector<16x16xf32>
    %77 = arith.divf %73, %76 : vector<16x16xf32>
    %78 = arith.truncf %77 : vector<16x16xf32> to vector<16x16xbf16>
    %79 = arith.truncf %55 : vector<16x16xf32> to vector<16x16xbf16>
    %cst_20 = arith.constant dense<0.000000e+00> : vector<16x16xf32>
    %80 = tpu.matmul %78, %79, %cst_20 {dimension_numbers = #tpu.dot_dimension_numbers<[0], [0], [1], [1], [0, 1, 1, 1], [], []>} : vector<16x16xbf16>, vector<16x16xbf16>, vector<16x16xf32> -> vector<16x16xf32>
    %81 = arith.truncf %64 : vector<16x16xf32> to vector<16x16xbf16>
    %82 = arith.truncf %80 : vector<16x16xf32> to vector<16x16xbf16>
    %cst_21 = arith.constant dense<0.000000e+00> : vector<16x16xf32>
    %83 = tpu.matmul %81, %82, %cst_21 {dimension_numbers = #tpu.dot_dimension_numbers<[1], [0], [0], [1], [0, 0, 1, 1], [], []>} : vector<16x16xbf16>, vector<16x16xbf16>, vector<16x16xf32> -> vector<16x16xf32>
    %84 = vector.extract_strided_slice %50 {offsets = [0, 16], sizes = [16, 16], strides = [1, 1]} : vector<16x96xf32> to vector<16x16xf32>
    %85 = vector.extract_strided_slice %50 {offsets = [0, 48], sizes = [16, 16], strides = [1, 1]} : vector<16x96xf32> to vector<16x16xf32>
    %86 = vector.extract_strided_slice %50 {offsets = [0, 80], sizes = [16, 16], strides = [1, 1]} : vector<16x96xf32> to vector<16x16xf32>
    %87 = vector.broadcast %6 : vector<16x1xf32> to vector<16x16xf32>
    %88 = arith.mulf %86, %87 : vector<16x16xf32>
    %cst_22 = arith.constant dense<0xFF800000> : vector<16xf32>
    %89 = vector.multi_reduction <maximumf>, %84, %cst_22 [1] : vector<16x16xf32> to vector<16xf32>
    %90 = vector.shape_cast %89 : vector<16xf32> to vector<16x1xf32>
    %91 = vector.broadcast %90 : vector<16x1xf32> to vector<16x16xf32>
    %92 = arith.subf %84, %91 : vector<16x16xf32>
    %93 = math.exp %92 : vector<16x16xf32>
    %cst_23 = arith.constant dense<0.000000e+00> : vector<16xf32>
    %94 = vector.multi_reduction <add>, %93, %cst_23 [1] : vector<16x16xf32> to vector<16xf32>
    %95 = vector.shape_cast %94 : vector<16xf32> to vector<16x1xf32>
    %96 = vector.broadcast %95 : vector<16x1xf32> to vector<16x16xf32>
    %97 = arith.divf %93, %96 : vector<16x16xf32>
    %cst_24 = arith.constant -1.000000e+09 : f32
    %98 = vector.shape_cast %4 : vector<16x1xi1> to vector<16x1xi1>
    %99 = vector.broadcast %98 : vector<16x1xi1> to vector<16x16xi1>
    %100 = vector.broadcast %cst_24 : f32 to vector<16x16xf32>
    %101 = arith.select %99, %85, %100 : vector<16x16xi1>, vector<16x16xf32>
    %cst_25 = arith.constant dense<0xFF800000> : vector<16xf32>
    %102 = vector.multi_reduction <maximumf>, %101, %cst_25 [0] : vector<16x16xf32> to vector<16xf32>
    %103 = vector.shape_cast %102 : vector<16xf32> to vector<1x16xf32>
    %104 = vector.broadcast %103 : vector<1x16xf32> to vector<16x16xf32>
    %105 = arith.subf %101, %104 : vector<16x16xf32>
    %106 = math.exp %105 : vector<16x16xf32>
    %cst_26 = arith.constant dense<0.000000e+00> : vector<16xf32>
    %107 = vector.multi_reduction <add>, %106, %cst_26 [0] : vector<16x16xf32> to vector<16xf32>
    %108 = vector.shape_cast %107 : vector<16xf32> to vector<1x16xf32>
    %109 = vector.broadcast %108 : vector<1x16xf32> to vector<16x16xf32>
    %110 = arith.divf %106, %109 : vector<16x16xf32>
    %111 = arith.truncf %110 : vector<16x16xf32> to vector<16x16xbf16>
    %112 = arith.truncf %88 : vector<16x16xf32> to vector<16x16xbf16>
    %cst_27 = arith.constant dense<0.000000e+00> : vector<16x16xf32>
    %113 = tpu.matmul %111, %112, %cst_27 {dimension_numbers = #tpu.dot_dimension_numbers<[0], [0], [1], [1], [0, 1, 1, 1], [], []>} : vector<16x16xbf16>, vector<16x16xbf16>, vector<16x16xf32> -> vector<16x16xf32>
    %114 = arith.truncf %97 : vector<16x16xf32> to vector<16x16xbf16>
    %115 = arith.truncf %113 : vector<16x16xf32> to vector<16x16xbf16>
    %cst_28 = arith.constant dense<0.000000e+00> : vector<16x16xf32>
    %116 = tpu.matmul %114, %115, %cst_28 {dimension_numbers = #tpu.dot_dimension_numbers<[1], [0], [0], [1], [0, 0, 1, 1], [], []>} : vector<16x16xbf16>, vector<16x16xbf16>, vector<16x16xf32> -> vector<16x16xf32>
    %117 = tpu.concatenate %83, %116 in 1 : vector<16x16xf32>, vector<16x16xf32> -> vector<16x32xf32>
    %118 = arith.truncf %117 : vector<16x32xf32> to vector<16x32xbf16>
    %c0_29 = arith.constant 0 : index
    %c0_30 = arith.constant 0 : index
    %c0_31 = arith.constant 0 : index
    %119 = vector.load %arg4[%c0_29, %c0_30, %c0_31] : memref<2x32x32xbf16, #tpu.memory_space<vmem>>, vector<1x32x32xbf16>
    %120 = vector.shape_cast %119 : vector<1x32x32xbf16> to vector<32x32xbf16>
    %cst_32 = arith.constant dense<0.000000e+00> : vector<16x32xf32>
    %121 = tpu.matmul %118, %120, %cst_32 {dimension_numbers = #tpu.dot_dimension_numbers<[1], [0], [0], [1], [0, 0, 1, 1], [], []>} : vector<16x32xbf16>, vector<32x32xbf16>, vector<16x32xf32> -> vector<16x32xf32>
    %c0_33 = arith.constant 0 : index
    %c0_34 = arith.constant 0 : index
    %c0_35 = arith.constant 0 : index
    %122 = vector.load %arg5[%c0_33, %c0_34, %c0_35] : memref<2x1x32xf32, #tpu.memory_space<vmem>>, vector<1x1x32xf32>
    %123 = vector.shape_cast %122 : vector<1x1x32xf32> to vector<1x32xf32>
    %124 = vector.broadcast %123 : vector<1x32xf32> to vector<16x32xf32>
    %125 = arith.addf %121, %124 : vector<16x32xf32>
    %126 = arith.addf %125, %44 : vector<16x32xf32>
    %c0_36 = arith.constant 0 : index
    %c0_37 = arith.constant 0 : index
    %c0_38 = arith.constant 0 : index
    %127 = vector.load %arg6[%c0_36, %c0_37, %c0_38] : memref<2x1x32xf32, #tpu.memory_space<vmem>>, vector<1x1x32xf32>
    %128 = vector.shape_cast %127 : vector<1x1x32xf32> to vector<1x32xf32>
    %c0_39 = arith.constant 0 : index
    %c0_40 = arith.constant 0 : index
    %c0_41 = arith.constant 0 : index
    %129 = vector.load %arg7[%c0_39, %c0_40, %c0_41] : memref<2x1x32xf32, #tpu.memory_space<vmem>>, vector<1x1x32xf32>
    %130 = vector.shape_cast %129 : vector<1x1x32xf32> to vector<1x32xf32>
    %cst_42 = arith.constant dense<0.000000e+00> : vector<16xf32>
    %131 = vector.multi_reduction <add>, %126, %cst_42 [1] : vector<16x32xf32> to vector<16xf32>
    %132 = vector.shape_cast %131 : vector<16xf32> to vector<16x1xf32>
    %cst_43 = arith.constant 3.200000e+01 : f32
    %133 = vector.broadcast %cst_43 : f32 to vector<16x1xf32>
    %134 = arith.divf %132, %133 : vector<16x1xf32>
    %135 = vector.broadcast %134 : vector<16x1xf32> to vector<16x32xf32>
    %136 = arith.subf %126, %135 : vector<16x32xf32>
    %137 = arith.mulf %136, %136 : vector<16x32xf32>
    %cst_44 = arith.constant dense<0.000000e+00> : vector<16xf32>
    %138 = vector.multi_reduction <add>, %137, %cst_44 [1] : vector<16x32xf32> to vector<16xf32>
    %139 = vector.shape_cast %138 : vector<16xf32> to vector<16x1xf32>
    %cst_45 = arith.constant 3.200000e+01 : f32
    %140 = vector.broadcast %cst_45 : f32 to vector<16x1xf32>
    %141 = arith.divf %139, %140 : vector<16x1xf32>
    %142 = vector.broadcast %134 : vector<16x1xf32> to vector<16x32xf32>
    %143 = arith.subf %126, %142 : vector<16x32xf32>
    %cst_46 = arith.constant 9.99999974E-6 : f32
    %144 = vector.broadcast %cst_46 : f32 to vector<16x1xf32>
    %145 = arith.addf %141, %144 : vector<16x1xf32>
    %146 = math.rsqrt %145 : vector<16x1xf32>
    %147 = vector.broadcast %146 : vector<16x1xf32> to vector<16x32xf32>
    %148 = arith.mulf %143, %147 : vector<16x32xf32>
    %149 = vector.broadcast %128 : vector<1x32xf32> to vector<16x32xf32>
    %150 = arith.mulf %148, %149 : vector<16x32xf32>
    %151 = vector.broadcast %130 : vector<1x32xf32> to vector<16x32xf32>
    %152 = arith.addf %150, %151 : vector<16x32xf32>
    %153 = vector.broadcast %6 : vector<16x1xf32> to vector<16x32xf32>
    %154 = arith.mulf %152, %153 : vector<16x32xf32>
    %c0_47 = arith.constant 0 : index
    %c0_48 = arith.constant 0 : index
    %c0_49 = arith.constant 0 : index
    %155 = vector.load %arg9[%c0_47, %c0_48, %c0_49] : memref<2x1x32xf32, #tpu.memory_space<vmem>>, vector<1x1x32xf32>
    %156 = vector.shape_cast %155 : vector<1x1x32xf32> to vector<1x32xf32>
    %c2_i32_50 = arith.constant 2 : i32
    %157 = tpu.dynamic_rotate %154 by %c2_i32_50 dim 0 : vector<16x32xf32>, i32 -> vector<16x32xf32>
    %cst_51 = arith.constant 0.000000e+00 : f32
    %158 = vector.shape_cast %15 : vector<16x1xi1> to vector<16x1xi1>
    %159 = vector.broadcast %158 : vector<16x1xi1> to vector<16x32xi1>
    %160 = vector.broadcast %cst_51 : f32 to vector<16x32xf32>
    %161 = arith.select %159, %157, %160 : vector<16x32xi1>, vector<16x32xf32>
    %c1_i32_52 = arith.constant 1 : i32
    %162 = tpu.dynamic_rotate %154 by %c1_i32_52 dim 0 : vector<16x32xf32>, i32 -> vector<16x32xf32>
    %cst_53 = arith.constant 0.000000e+00 : f32
    %163 = vector.shape_cast %24 : vector<16x1xi1> to vector<16x1xi1>
    %164 = vector.broadcast %163 : vector<16x1xi1> to vector<16x32xi1>
    %165 = vector.broadcast %cst_53 : f32 to vector<16x32xf32>
    %166 = arith.select %164, %162, %165 : vector<16x32xi1>, vector<16x32xf32>
    %c15_i32 = arith.constant 15 : i32
    %167 = tpu.dynamic_rotate %154 by %c15_i32 dim 0 : vector<16x32xf32>, i32 -> vector<16x32xf32>
    %cst_54 = arith.constant 0.000000e+00 : f32
    %168 = vector.shape_cast %33 : vector<16x1xi1> to vector<16x1xi1>
    %169 = vector.broadcast %168 : vector<16x1xi1> to vector<16x32xi1>
    %170 = vector.broadcast %cst_54 : f32 to vector<16x32xf32>
    %171 = arith.select %169, %167, %170 : vector<16x32xi1>, vector<16x32xf32>
    %c14_i32 = arith.constant 14 : i32
    %172 = tpu.dynamic_rotate %154 by %c14_i32 dim 0 : vector<16x32xf32>, i32 -> vector<16x32xf32>
    %cst_55 = arith.constant 0.000000e+00 : f32
    %173 = vector.shape_cast %42 : vector<16x1xi1> to vector<16x1xi1>
    %174 = vector.broadcast %173 : vector<16x1xi1> to vector<16x32xi1>
    %175 = vector.broadcast %cst_55 : f32 to vector<16x32xf32>
    %176 = arith.select %174, %172, %175 : vector<16x32xi1>, vector<16x32xf32>
    %177 = tpu.concatenate %161, %166, %154, %171, %176 in 1 : vector<16x32xf32>, vector<16x32xf32>, vector<16x32xf32>, vector<16x32xf32>, vector<16x32xf32> -> vector<16x160xf32>
    %178 = arith.truncf %177 : vector<16x160xf32> to vector<16x160xbf16>
    %c0_56 = arith.constant 0 : index
    %c0_57 = arith.constant 0 : index
    %c0_58 = arith.constant 0 : index
    %179 = vector.load %arg8[%c0_56, %c0_57, %c0_58] : memref<2x160x32xbf16, #tpu.memory_space<vmem>>, vector<1x160x32xbf16>
    %180 = vector.shape_cast %179 : vector<1x160x32xbf16> to vector<160x32xbf16>
    %cst_59 = arith.constant dense<0.000000e+00> : vector<16x32xf32>
    %181 = tpu.matmul %178, %180, %cst_59 {dimension_numbers = #tpu.dot_dimension_numbers<[1], [0], [0], [1], [0, 0, 1, 1], [], []>} : vector<16x160xbf16>, vector<160x32xbf16>, vector<16x32xf32> -> vector<16x32xf32>
    %182 = vector.broadcast %156 : vector<1x32xf32> to vector<16x32xf32>
    %183 = arith.addf %181, %182 : vector<16x32xf32>
    %cst_60 = arith.constant 0.000000e+00 : f32
    %184 = vector.broadcast %cst_60 : f32 to vector<16x32xf32>
    %185 = arith.maximumf %183, %184 : vector<16x32xf32>
    %186 = vector.broadcast %6 : vector<16x1xf32> to vector<16x32xf32>
    %187 = arith.mulf %185, %186 : vector<16x32xf32>
    %c0_61 = arith.constant 0 : index
    %c0_62 = arith.constant 0 : index
    %c0_63 = arith.constant 0 : index
    %188 = vector.load %arg11[%c0_61, %c0_62, %c0_63] : memref<2x1x32xf32, #tpu.memory_space<vmem>>, vector<1x1x32xf32>
    %189 = vector.shape_cast %188 : vector<1x1x32xf32> to vector<1x32xf32>
    %c2_i32_64 = arith.constant 2 : i32
    %190 = tpu.dynamic_rotate %187 by %c2_i32_64 dim 0 : vector<16x32xf32>, i32 -> vector<16x32xf32>
    %cst_65 = arith.constant 0.000000e+00 : f32
    %191 = vector.shape_cast %15 : vector<16x1xi1> to vector<16x1xi1>
    %192 = vector.broadcast %191 : vector<16x1xi1> to vector<16x32xi1>
    %193 = vector.broadcast %cst_65 : f32 to vector<16x32xf32>
    %194 = arith.select %192, %190, %193 : vector<16x32xi1>, vector<16x32xf32>
    %c1_i32_66 = arith.constant 1 : i32
    %195 = tpu.dynamic_rotate %187 by %c1_i32_66 dim 0 : vector<16x32xf32>, i32 -> vector<16x32xf32>
    %cst_67 = arith.constant 0.000000e+00 : f32
    %196 = vector.shape_cast %24 : vector<16x1xi1> to vector<16x1xi1>
    %197 = vector.broadcast %196 : vector<16x1xi1> to vector<16x32xi1>
    %198 = vector.broadcast %cst_67 : f32 to vector<16x32xf32>
    %199 = arith.select %197, %195, %198 : vector<16x32xi1>, vector<16x32xf32>
    %c15_i32_68 = arith.constant 15 : i32
    %200 = tpu.dynamic_rotate %187 by %c15_i32_68 dim 0 : vector<16x32xf32>, i32 -> vector<16x32xf32>
    %cst_69 = arith.constant 0.000000e+00 : f32
    %201 = vector.shape_cast %33 : vector<16x1xi1> to vector<16x1xi1>
    %202 = vector.broadcast %201 : vector<16x1xi1> to vector<16x32xi1>
    %203 = vector.broadcast %cst_69 : f32 to vector<16x32xf32>
    %204 = arith.select %202, %200, %203 : vector<16x32xi1>, vector<16x32xf32>
    %c14_i32_70 = arith.constant 14 : i32
    %205 = tpu.dynamic_rotate %187 by %c14_i32_70 dim 0 : vector<16x32xf32>, i32 -> vector<16x32xf32>
    %cst_71 = arith.constant 0.000000e+00 : f32
    %206 = vector.shape_cast %42 : vector<16x1xi1> to vector<16x1xi1>
    %207 = vector.broadcast %206 : vector<16x1xi1> to vector<16x32xi1>
    %208 = vector.broadcast %cst_71 : f32 to vector<16x32xf32>
    %209 = arith.select %207, %205, %208 : vector<16x32xi1>, vector<16x32xf32>
    %210 = tpu.concatenate %194, %199, %187, %204, %209 in 1 : vector<16x32xf32>, vector<16x32xf32>, vector<16x32xf32>, vector<16x32xf32>, vector<16x32xf32> -> vector<16x160xf32>
    %211 = arith.truncf %210 : vector<16x160xf32> to vector<16x160xbf16>
    %c0_72 = arith.constant 0 : index
    %c0_73 = arith.constant 0 : index
    %c0_74 = arith.constant 0 : index
    %212 = vector.load %arg10[%c0_72, %c0_73, %c0_74] : memref<2x160x32xbf16, #tpu.memory_space<vmem>>, vector<1x160x32xbf16>
    %213 = vector.shape_cast %212 : vector<1x160x32xbf16> to vector<160x32xbf16>
    %cst_75 = arith.constant dense<0.000000e+00> : vector<16x32xf32>
    %214 = tpu.matmul %211, %213, %cst_75 {dimension_numbers = #tpu.dot_dimension_numbers<[1], [0], [0], [1], [0, 0, 1, 1], [], []>} : vector<16x160xbf16>, vector<160x32xbf16>, vector<16x32xf32> -> vector<16x32xf32>
    %215 = vector.broadcast %189 : vector<1x32xf32> to vector<16x32xf32>
    %216 = arith.addf %214, %215 : vector<16x32xf32>
    %217 = arith.addf %216, %152 : vector<16x32xf32>
    %c0_76 = arith.constant 0 : index
    %c0_77 = arith.constant 0 : index
    %c0_78 = arith.constant 0 : index
    %218 = vector.load %arg12[%c0_76, %c0_77, %c0_78] : memref<2x1x32xf32, #tpu.memory_space<vmem>>, vector<1x1x32xf32>
    %219 = vector.shape_cast %218 : vector<1x1x32xf32> to vector<1x32xf32>
    %c0_79 = arith.constant 0 : index
    %c0_80 = arith.constant 0 : index
    %c0_81 = arith.constant 0 : index
    %220 = vector.load %arg13[%c0_79, %c0_80, %c0_81] : memref<2x1x32xf32, #tpu.memory_space<vmem>>, vector<1x1x32xf32>
    %221 = vector.shape_cast %220 : vector<1x1x32xf32> to vector<1x32xf32>
    %cst_82 = arith.constant dense<0.000000e+00> : vector<16xf32>
    %222 = vector.multi_reduction <add>, %217, %cst_82 [1] : vector<16x32xf32> to vector<16xf32>
    %223 = vector.shape_cast %222 : vector<16xf32> to vector<16x1xf32>
    %cst_83 = arith.constant 3.200000e+01 : f32
    %224 = vector.broadcast %cst_83 : f32 to vector<16x1xf32>
    %225 = arith.divf %223, %224 : vector<16x1xf32>
    %226 = vector.broadcast %225 : vector<16x1xf32> to vector<16x32xf32>
    %227 = arith.subf %217, %226 : vector<16x32xf32>
    %228 = arith.mulf %227, %227 : vector<16x32xf32>
    %cst_84 = arith.constant dense<0.000000e+00> : vector<16xf32>
    %229 = vector.multi_reduction <add>, %228, %cst_84 [1] : vector<16x32xf32> to vector<16xf32>
    %230 = vector.shape_cast %229 : vector<16xf32> to vector<16x1xf32>
    %cst_85 = arith.constant 3.200000e+01 : f32
    %231 = vector.broadcast %cst_85 : f32 to vector<16x1xf32>
    %232 = arith.divf %230, %231 : vector<16x1xf32>
    %233 = vector.broadcast %225 : vector<16x1xf32> to vector<16x32xf32>
    %234 = arith.subf %217, %233 : vector<16x32xf32>
    %cst_86 = arith.constant 9.99999974E-6 : f32
    %235 = vector.broadcast %cst_86 : f32 to vector<16x1xf32>
    %236 = arith.addf %232, %235 : vector<16x1xf32>
    %237 = math.rsqrt %236 : vector<16x1xf32>
    %238 = vector.broadcast %237 : vector<16x1xf32> to vector<16x32xf32>
    %239 = arith.mulf %234, %238 : vector<16x32xf32>
    %240 = vector.broadcast %219 : vector<1x32xf32> to vector<16x32xf32>
    %241 = arith.mulf %239, %240 : vector<16x32xf32>
    %242 = vector.broadcast %221 : vector<1x32xf32> to vector<16x32xf32>
    %243 = arith.addf %241, %242 : vector<16x32xf32>
    %244 = vector.broadcast %6 : vector<16x1xf32> to vector<16x32xf32>
    %245 = arith.mulf %243, %244 : vector<16x32xf32>
    %246 = vector.broadcast %6 : vector<16x1xf32> to vector<16x32xf32>
    %247 = arith.mulf %245, %246 : vector<16x32xf32>
    %248 = arith.truncf %247 : vector<16x32xf32> to vector<16x32xbf16>
    %c1 = arith.constant 1 : index
    %c0_87 = arith.constant 0 : index
    %c0_88 = arith.constant 0 : index
    %249 = vector.load %arg3[%c1, %c0_87, %c0_88] : memref<2x32x96xbf16, #tpu.memory_space<vmem>>, vector<1x32x96xbf16>
    %250 = vector.shape_cast %249 : vector<1x32x96xbf16> to vector<32x96xbf16>
    %cst_89 = arith.constant dense<0.000000e+00> : vector<16x96xf32>
    %251 = tpu.matmul %248, %250, %cst_89 {dimension_numbers = #tpu.dot_dimension_numbers<[1], [0], [0], [1], [0, 0, 1, 1], [], []>} : vector<16x32xbf16>, vector<32x96xbf16>, vector<16x96xf32> -> vector<16x96xf32>
    %252 = vector.extract_strided_slice %251 {offsets = [0, 0], sizes = [16, 16], strides = [1, 1]} : vector<16x96xf32> to vector<16x16xf32>
    %253 = vector.extract_strided_slice %251 {offsets = [0, 32], sizes = [16, 16], strides = [1, 1]} : vector<16x96xf32> to vector<16x16xf32>
    %254 = vector.extract_strided_slice %251 {offsets = [0, 64], sizes = [16, 16], strides = [1, 1]} : vector<16x96xf32> to vector<16x16xf32>
    %255 = vector.broadcast %6 : vector<16x1xf32> to vector<16x16xf32>
    %256 = arith.mulf %254, %255 : vector<16x16xf32>
    %cst_90 = arith.constant dense<0xFF800000> : vector<16xf32>
    %257 = vector.multi_reduction <maximumf>, %252, %cst_90 [1] : vector<16x16xf32> to vector<16xf32>
    %258 = vector.shape_cast %257 : vector<16xf32> to vector<16x1xf32>
    %259 = vector.broadcast %258 : vector<16x1xf32> to vector<16x16xf32>
    %260 = arith.subf %252, %259 : vector<16x16xf32>
    %261 = math.exp %260 : vector<16x16xf32>
    %cst_91 = arith.constant dense<0.000000e+00> : vector<16xf32>
    %262 = vector.multi_reduction <add>, %261, %cst_91 [1] : vector<16x16xf32> to vector<16xf32>
    %263 = vector.shape_cast %262 : vector<16xf32> to vector<16x1xf32>
    %264 = vector.broadcast %263 : vector<16x1xf32> to vector<16x16xf32>
    %265 = arith.divf %261, %264 : vector<16x16xf32>
    %cst_92 = arith.constant -1.000000e+09 : f32
    %266 = vector.shape_cast %4 : vector<16x1xi1> to vector<16x1xi1>
    %267 = vector.broadcast %266 : vector<16x1xi1> to vector<16x16xi1>
    %268 = vector.broadcast %cst_92 : f32 to vector<16x16xf32>
    %269 = arith.select %267, %253, %268 : vector<16x16xi1>, vector<16x16xf32>
    %cst_93 = arith.constant dense<0xFF800000> : vector<16xf32>
    %270 = vector.multi_reduction <maximumf>, %269, %cst_93 [0] : vector<16x16xf32> to vector<16xf32>
    %271 = vector.shape_cast %270 : vector<16xf32> to vector<1x16xf32>
    %272 = vector.broadcast %271 : vector<1x16xf32> to vector<16x16xf32>
    %273 = arith.subf %269, %272 : vector<16x16xf32>
    %274 = math.exp %273 : vector<16x16xf32>
    %cst_94 = arith.constant dense<0.000000e+00> : vector<16xf32>
    %275 = vector.multi_reduction <add>, %274, %cst_94 [0] : vector<16x16xf32> to vector<16xf32>
    %276 = vector.shape_cast %275 : vector<16xf32> to vector<1x16xf32>
    %277 = vector.broadcast %276 : vector<1x16xf32> to vector<16x16xf32>
    %278 = arith.divf %274, %277 : vector<16x16xf32>
    %279 = arith.truncf %278 : vector<16x16xf32> to vector<16x16xbf16>
    %280 = arith.truncf %256 : vector<16x16xf32> to vector<16x16xbf16>
    %cst_95 = arith.constant dense<0.000000e+00> : vector<16x16xf32>
    %281 = tpu.matmul %279, %280, %cst_95 {dimension_numbers = #tpu.dot_dimension_numbers<[0], [0], [1], [1], [0, 1, 1, 1], [], []>} : vector<16x16xbf16>, vector<16x16xbf16>, vector<16x16xf32> -> vector<16x16xf32>
    %282 = arith.truncf %265 : vector<16x16xf32> to vector<16x16xbf16>
    %283 = arith.truncf %281 : vector<16x16xf32> to vector<16x16xbf16>
    %cst_96 = arith.constant dense<0.000000e+00> : vector<16x16xf32>
    %284 = tpu.matmul %282, %283, %cst_96 {dimension_numbers = #tpu.dot_dimension_numbers<[1], [0], [0], [1], [0, 0, 1, 1], [], []>} : vector<16x16xbf16>, vector<16x16xbf16>, vector<16x16xf32> -> vector<16x16xf32>
    %285 = vector.extract_strided_slice %251 {offsets = [0, 16], sizes = [16, 16], strides = [1, 1]} : vector<16x96xf32> to vector<16x16xf32>
    %286 = vector.extract_strided_slice %251 {offsets = [0, 48], sizes = [16, 16], strides = [1, 1]} : vector<16x96xf32> to vector<16x16xf32>
    %287 = vector.extract_strided_slice %251 {offsets = [0, 80], sizes = [16, 16], strides = [1, 1]} : vector<16x96xf32> to vector<16x16xf32>
    %288 = vector.broadcast %6 : vector<16x1xf32> to vector<16x16xf32>
    %289 = arith.mulf %287, %288 : vector<16x16xf32>
    %cst_97 = arith.constant dense<0xFF800000> : vector<16xf32>
    %290 = vector.multi_reduction <maximumf>, %285, %cst_97 [1] : vector<16x16xf32> to vector<16xf32>
    %291 = vector.shape_cast %290 : vector<16xf32> to vector<16x1xf32>
    %292 = vector.broadcast %291 : vector<16x1xf32> to vector<16x16xf32>
    %293 = arith.subf %285, %292 : vector<16x16xf32>
    %294 = math.exp %293 : vector<16x16xf32>
    %cst_98 = arith.constant dense<0.000000e+00> : vector<16xf32>
    %295 = vector.multi_reduction <add>, %294, %cst_98 [1] : vector<16x16xf32> to vector<16xf32>
    %296 = vector.shape_cast %295 : vector<16xf32> to vector<16x1xf32>
    %297 = vector.broadcast %296 : vector<16x1xf32> to vector<16x16xf32>
    %298 = arith.divf %294, %297 : vector<16x16xf32>
    %cst_99 = arith.constant -1.000000e+09 : f32
    %299 = vector.shape_cast %4 : vector<16x1xi1> to vector<16x1xi1>
    %300 = vector.broadcast %299 : vector<16x1xi1> to vector<16x16xi1>
    %301 = vector.broadcast %cst_99 : f32 to vector<16x16xf32>
    %302 = arith.select %300, %286, %301 : vector<16x16xi1>, vector<16x16xf32>
    %cst_100 = arith.constant dense<0xFF800000> : vector<16xf32>
    %303 = vector.multi_reduction <maximumf>, %302, %cst_100 [0] : vector<16x16xf32> to vector<16xf32>
    %304 = vector.shape_cast %303 : vector<16xf32> to vector<1x16xf32>
    %305 = vector.broadcast %304 : vector<1x16xf32> to vector<16x16xf32>
    %306 = arith.subf %302, %305 : vector<16x16xf32>
    %307 = math.exp %306 : vector<16x16xf32>
    %cst_101 = arith.constant dense<0.000000e+00> : vector<16xf32>
    %308 = vector.multi_reduction <add>, %307, %cst_101 [0] : vector<16x16xf32> to vector<16xf32>
    %309 = vector.shape_cast %308 : vector<16xf32> to vector<1x16xf32>
    %310 = vector.broadcast %309 : vector<1x16xf32> to vector<16x16xf32>
    %311 = arith.divf %307, %310 : vector<16x16xf32>
    %312 = arith.truncf %311 : vector<16x16xf32> to vector<16x16xbf16>
    %313 = arith.truncf %289 : vector<16x16xf32> to vector<16x16xbf16>
    %cst_102 = arith.constant dense<0.000000e+00> : vector<16x16xf32>
    %314 = tpu.matmul %312, %313, %cst_102 {dimension_numbers = #tpu.dot_dimension_numbers<[0], [0], [1], [1], [0, 1, 1, 1], [], []>} : vector<16x16xbf16>, vector<16x16xbf16>, vector<16x16xf32> -> vector<16x16xf32>
    %315 = arith.truncf %298 : vector<16x16xf32> to vector<16x16xbf16>
    %316 = arith.truncf %314 : vector<16x16xf32> to vector<16x16xbf16>
    %cst_103 = arith.constant dense<0.000000e+00> : vector<16x16xf32>
    %317 = tpu.matmul %315, %316, %cst_103 {dimension_numbers = #tpu.dot_dimension_numbers<[1], [0], [0], [1], [0, 0, 1, 1], [], []>} : vector<16x16xbf16>, vector<16x16xbf16>, vector<16x16xf32> -> vector<16x16xf32>
    %318 = tpu.concatenate %284, %317 in 1 : vector<16x16xf32>, vector<16x16xf32> -> vector<16x32xf32>
    %319 = arith.truncf %318 : vector<16x32xf32> to vector<16x32xbf16>
    %c1_104 = arith.constant 1 : index
    %c0_105 = arith.constant 0 : index
    %c0_106 = arith.constant 0 : index
    %320 = vector.load %arg4[%c1_104, %c0_105, %c0_106] : memref<2x32x32xbf16, #tpu.memory_space<vmem>>, vector<1x32x32xbf16>
    %321 = vector.shape_cast %320 : vector<1x32x32xbf16> to vector<32x32xbf16>
    %cst_107 = arith.constant dense<0.000000e+00> : vector<16x32xf32>
    %322 = tpu.matmul %319, %321, %cst_107 {dimension_numbers = #tpu.dot_dimension_numbers<[1], [0], [0], [1], [0, 0, 1, 1], [], []>} : vector<16x32xbf16>, vector<32x32xbf16>, vector<16x32xf32> -> vector<16x32xf32>
    %c1_108 = arith.constant 1 : index
    %c0_109 = arith.constant 0 : index
    %c0_110 = arith.constant 0 : index
    %323 = vector.load %arg5[%c1_108, %c0_109, %c0_110] : memref<2x1x32xf32, #tpu.memory_space<vmem>>, vector<1x1x32xf32>
    %324 = vector.shape_cast %323 : vector<1x1x32xf32> to vector<1x32xf32>
    %325 = vector.broadcast %324 : vector<1x32xf32> to vector<16x32xf32>
    %326 = arith.addf %322, %325 : vector<16x32xf32>
    %327 = arith.addf %326, %245 : vector<16x32xf32>
    %c1_111 = arith.constant 1 : index
    %c0_112 = arith.constant 0 : index
    %c0_113 = arith.constant 0 : index
    %328 = vector.load %arg6[%c1_111, %c0_112, %c0_113] : memref<2x1x32xf32, #tpu.memory_space<vmem>>, vector<1x1x32xf32>
    %329 = vector.shape_cast %328 : vector<1x1x32xf32> to vector<1x32xf32>
    %c1_114 = arith.constant 1 : index
    %c0_115 = arith.constant 0 : index
    %c0_116 = arith.constant 0 : index
    %330 = vector.load %arg7[%c1_114, %c0_115, %c0_116] : memref<2x1x32xf32, #tpu.memory_space<vmem>>, vector<1x1x32xf32>
    %331 = vector.shape_cast %330 : vector<1x1x32xf32> to vector<1x32xf32>
    %cst_117 = arith.constant dense<0.000000e+00> : vector<16xf32>
    %332 = vector.multi_reduction <add>, %327, %cst_117 [1] : vector<16x32xf32> to vector<16xf32>
    %333 = vector.shape_cast %332 : vector<16xf32> to vector<16x1xf32>
    %cst_118 = arith.constant 3.200000e+01 : f32
    %334 = vector.broadcast %cst_118 : f32 to vector<16x1xf32>
    %335 = arith.divf %333, %334 : vector<16x1xf32>
    %336 = vector.broadcast %335 : vector<16x1xf32> to vector<16x32xf32>
    %337 = arith.subf %327, %336 : vector<16x32xf32>
    %338 = arith.mulf %337, %337 : vector<16x32xf32>
    %cst_119 = arith.constant dense<0.000000e+00> : vector<16xf32>
    %339 = vector.multi_reduction <add>, %338, %cst_119 [1] : vector<16x32xf32> to vector<16xf32>
    %340 = vector.shape_cast %339 : vector<16xf32> to vector<16x1xf32>
    %cst_120 = arith.constant 3.200000e+01 : f32
    %341 = vector.broadcast %cst_120 : f32 to vector<16x1xf32>
    %342 = arith.divf %340, %341 : vector<16x1xf32>
    %343 = vector.broadcast %335 : vector<16x1xf32> to vector<16x32xf32>
    %344 = arith.subf %327, %343 : vector<16x32xf32>
    %cst_121 = arith.constant 9.99999974E-6 : f32
    %345 = vector.broadcast %cst_121 : f32 to vector<16x1xf32>
    %346 = arith.addf %342, %345 : vector<16x1xf32>
    %347 = math.rsqrt %346 : vector<16x1xf32>
    %348 = vector.broadcast %347 : vector<16x1xf32> to vector<16x32xf32>
    %349 = arith.mulf %344, %348 : vector<16x32xf32>
    %350 = vector.broadcast %329 : vector<1x32xf32> to vector<16x32xf32>
    %351 = arith.mulf %349, %350 : vector<16x32xf32>
    %352 = vector.broadcast %331 : vector<1x32xf32> to vector<16x32xf32>
    %353 = arith.addf %351, %352 : vector<16x32xf32>
    %354 = vector.broadcast %6 : vector<16x1xf32> to vector<16x32xf32>
    %355 = arith.mulf %353, %354 : vector<16x32xf32>
    %c1_122 = arith.constant 1 : index
    %c0_123 = arith.constant 0 : index
    %c0_124 = arith.constant 0 : index
    %356 = vector.load %arg9[%c1_122, %c0_123, %c0_124] : memref<2x1x32xf32, #tpu.memory_space<vmem>>, vector<1x1x32xf32>
    %357 = vector.shape_cast %356 : vector<1x1x32xf32> to vector<1x32xf32>
    %c2_i32_125 = arith.constant 2 : i32
    %358 = tpu.dynamic_rotate %355 by %c2_i32_125 dim 0 : vector<16x32xf32>, i32 -> vector<16x32xf32>
    %cst_126 = arith.constant 0.000000e+00 : f32
    %359 = vector.shape_cast %15 : vector<16x1xi1> to vector<16x1xi1>
    %360 = vector.broadcast %359 : vector<16x1xi1> to vector<16x32xi1>
    %361 = vector.broadcast %cst_126 : f32 to vector<16x32xf32>
    %362 = arith.select %360, %358, %361 : vector<16x32xi1>, vector<16x32xf32>
    %c1_i32_127 = arith.constant 1 : i32
    %363 = tpu.dynamic_rotate %355 by %c1_i32_127 dim 0 : vector<16x32xf32>, i32 -> vector<16x32xf32>
    %cst_128 = arith.constant 0.000000e+00 : f32
    %364 = vector.shape_cast %24 : vector<16x1xi1> to vector<16x1xi1>
    %365 = vector.broadcast %364 : vector<16x1xi1> to vector<16x32xi1>
    %366 = vector.broadcast %cst_128 : f32 to vector<16x32xf32>
    %367 = arith.select %365, %363, %366 : vector<16x32xi1>, vector<16x32xf32>
    %c15_i32_129 = arith.constant 15 : i32
    %368 = tpu.dynamic_rotate %355 by %c15_i32_129 dim 0 : vector<16x32xf32>, i32 -> vector<16x32xf32>
    %cst_130 = arith.constant 0.000000e+00 : f32
    %369 = vector.shape_cast %33 : vector<16x1xi1> to vector<16x1xi1>
    %370 = vector.broadcast %369 : vector<16x1xi1> to vector<16x32xi1>
    %371 = vector.broadcast %cst_130 : f32 to vector<16x32xf32>
    %372 = arith.select %370, %368, %371 : vector<16x32xi1>, vector<16x32xf32>
    %c14_i32_131 = arith.constant 14 : i32
    %373 = tpu.dynamic_rotate %355 by %c14_i32_131 dim 0 : vector<16x32xf32>, i32 -> vector<16x32xf32>
    %cst_132 = arith.constant 0.000000e+00 : f32
    %374 = vector.shape_cast %42 : vector<16x1xi1> to vector<16x1xi1>
    %375 = vector.broadcast %374 : vector<16x1xi1> to vector<16x32xi1>
    %376 = vector.broadcast %cst_132 : f32 to vector<16x32xf32>
    %377 = arith.select %375, %373, %376 : vector<16x32xi1>, vector<16x32xf32>
    %378 = tpu.concatenate %362, %367, %355, %372, %377 in 1 : vector<16x32xf32>, vector<16x32xf32>, vector<16x32xf32>, vector<16x32xf32>, vector<16x32xf32> -> vector<16x160xf32>
    %379 = arith.truncf %378 : vector<16x160xf32> to vector<16x160xbf16>
    %c1_133 = arith.constant 1 : index
    %c0_134 = arith.constant 0 : index
    %c0_135 = arith.constant 0 : index
    %380 = vector.load %arg8[%c1_133, %c0_134, %c0_135] : memref<2x160x32xbf16, #tpu.memory_space<vmem>>, vector<1x160x32xbf16>
    %381 = vector.shape_cast %380 : vector<1x160x32xbf16> to vector<160x32xbf16>
    %cst_136 = arith.constant dense<0.000000e+00> : vector<16x32xf32>
    %382 = tpu.matmul %379, %381, %cst_136 {dimension_numbers = #tpu.dot_dimension_numbers<[1], [0], [0], [1], [0, 0, 1, 1], [], []>} : vector<16x160xbf16>, vector<160x32xbf16>, vector<16x32xf32> -> vector<16x32xf32>
    %383 = vector.broadcast %357 : vector<1x32xf32> to vector<16x32xf32>
    %384 = arith.addf %382, %383 : vector<16x32xf32>
    %cst_137 = arith.constant 0.000000e+00 : f32
    %385 = vector.broadcast %cst_137 : f32 to vector<16x32xf32>
    %386 = arith.maximumf %384, %385 : vector<16x32xf32>
    %387 = vector.broadcast %6 : vector<16x1xf32> to vector<16x32xf32>
    %388 = arith.mulf %386, %387 : vector<16x32xf32>
    %c1_138 = arith.constant 1 : index
    %c0_139 = arith.constant 0 : index
    %c0_140 = arith.constant 0 : index
    %389 = vector.load %arg11[%c1_138, %c0_139, %c0_140] : memref<2x1x32xf32, #tpu.memory_space<vmem>>, vector<1x1x32xf32>
    %390 = vector.shape_cast %389 : vector<1x1x32xf32> to vector<1x32xf32>
    %c2_i32_141 = arith.constant 2 : i32
    %391 = tpu.dynamic_rotate %388 by %c2_i32_141 dim 0 : vector<16x32xf32>, i32 -> vector<16x32xf32>
    %cst_142 = arith.constant 0.000000e+00 : f32
    %392 = vector.shape_cast %15 : vector<16x1xi1> to vector<16x1xi1>
    %393 = vector.broadcast %392 : vector<16x1xi1> to vector<16x32xi1>
    %394 = vector.broadcast %cst_142 : f32 to vector<16x32xf32>
    %395 = arith.select %393, %391, %394 : vector<16x32xi1>, vector<16x32xf32>
    %c1_i32_143 = arith.constant 1 : i32
    %396 = tpu.dynamic_rotate %388 by %c1_i32_143 dim 0 : vector<16x32xf32>, i32 -> vector<16x32xf32>
    %cst_144 = arith.constant 0.000000e+00 : f32
    %397 = vector.shape_cast %24 : vector<16x1xi1> to vector<16x1xi1>
    %398 = vector.broadcast %397 : vector<16x1xi1> to vector<16x32xi1>
    %399 = vector.broadcast %cst_144 : f32 to vector<16x32xf32>
    %400 = arith.select %398, %396, %399 : vector<16x32xi1>, vector<16x32xf32>
    %c15_i32_145 = arith.constant 15 : i32
    %401 = tpu.dynamic_rotate %388 by %c15_i32_145 dim 0 : vector<16x32xf32>, i32 -> vector<16x32xf32>
    %cst_146 = arith.constant 0.000000e+00 : f32
    %402 = vector.shape_cast %33 : vector<16x1xi1> to vector<16x1xi1>
    %403 = vector.broadcast %402 : vector<16x1xi1> to vector<16x32xi1>
    %404 = vector.broadcast %cst_146 : f32 to vector<16x32xf32>
    %405 = arith.select %403, %401, %404 : vector<16x32xi1>, vector<16x32xf32>
    %c14_i32_147 = arith.constant 14 : i32
    %406 = tpu.dynamic_rotate %388 by %c14_i32_147 dim 0 : vector<16x32xf32>, i32 -> vector<16x32xf32>
    %cst_148 = arith.constant 0.000000e+00 : f32
    %407 = vector.shape_cast %42 : vector<16x1xi1> to vector<16x1xi1>
    %408 = vector.broadcast %407 : vector<16x1xi1> to vector<16x32xi1>
    %409 = vector.broadcast %cst_148 : f32 to vector<16x32xf32>
    %410 = arith.select %408, %406, %409 : vector<16x32xi1>, vector<16x32xf32>
    %411 = tpu.concatenate %395, %400, %388, %405, %410 in 1 : vector<16x32xf32>, vector<16x32xf32>, vector<16x32xf32>, vector<16x32xf32>, vector<16x32xf32> -> vector<16x160xf32>
    %412 = arith.truncf %411 : vector<16x160xf32> to vector<16x160xbf16>
    %c1_149 = arith.constant 1 : index
    %c0_150 = arith.constant 0 : index
    %c0_151 = arith.constant 0 : index
    %413 = vector.load %arg10[%c1_149, %c0_150, %c0_151] : memref<2x160x32xbf16, #tpu.memory_space<vmem>>, vector<1x160x32xbf16>
    %414 = vector.shape_cast %413 : vector<1x160x32xbf16> to vector<160x32xbf16>
    %cst_152 = arith.constant dense<0.000000e+00> : vector<16x32xf32>
    %415 = tpu.matmul %412, %414, %cst_152 {dimension_numbers = #tpu.dot_dimension_numbers<[1], [0], [0], [1], [0, 0, 1, 1], [], []>} : vector<16x160xbf16>, vector<160x32xbf16>, vector<16x32xf32> -> vector<16x32xf32>
    %416 = vector.broadcast %390 : vector<1x32xf32> to vector<16x32xf32>
    %417 = arith.addf %415, %416 : vector<16x32xf32>
    %418 = arith.addf %417, %353 : vector<16x32xf32>
    %c1_153 = arith.constant 1 : index
    %c0_154 = arith.constant 0 : index
    %c0_155 = arith.constant 0 : index
    %419 = vector.load %arg12[%c1_153, %c0_154, %c0_155] : memref<2x1x32xf32, #tpu.memory_space<vmem>>, vector<1x1x32xf32>
    %420 = vector.shape_cast %419 : vector<1x1x32xf32> to vector<1x32xf32>
    %c1_156 = arith.constant 1 : index
    %c0_157 = arith.constant 0 : index
    %c0_158 = arith.constant 0 : index
    %421 = vector.load %arg13[%c1_156, %c0_157, %c0_158] : memref<2x1x32xf32, #tpu.memory_space<vmem>>, vector<1x1x32xf32>
    %422 = vector.shape_cast %421 : vector<1x1x32xf32> to vector<1x32xf32>
    %cst_159 = arith.constant dense<0.000000e+00> : vector<16xf32>
    %423 = vector.multi_reduction <add>, %418, %cst_159 [1] : vector<16x32xf32> to vector<16xf32>
    %424 = vector.shape_cast %423 : vector<16xf32> to vector<16x1xf32>
    %cst_160 = arith.constant 3.200000e+01 : f32
    %425 = vector.broadcast %cst_160 : f32 to vector<16x1xf32>
    %426 = arith.divf %424, %425 : vector<16x1xf32>
    %427 = vector.broadcast %426 : vector<16x1xf32> to vector<16x32xf32>
    %428 = arith.subf %418, %427 : vector<16x32xf32>
    %429 = arith.mulf %428, %428 : vector<16x32xf32>
    %cst_161 = arith.constant dense<0.000000e+00> : vector<16xf32>
    %430 = vector.multi_reduction <add>, %429, %cst_161 [1] : vector<16x32xf32> to vector<16xf32>
    %431 = vector.shape_cast %430 : vector<16xf32> to vector<16x1xf32>
    %cst_162 = arith.constant 3.200000e+01 : f32
    %432 = vector.broadcast %cst_162 : f32 to vector<16x1xf32>
    %433 = arith.divf %431, %432 : vector<16x1xf32>
    %434 = vector.broadcast %426 : vector<16x1xf32> to vector<16x32xf32>
    %435 = arith.subf %418, %434 : vector<16x32xf32>
    %cst_163 = arith.constant 9.99999974E-6 : f32
    %436 = vector.broadcast %cst_163 : f32 to vector<16x1xf32>
    %437 = arith.addf %433, %436 : vector<16x1xf32>
    %438 = math.rsqrt %437 : vector<16x1xf32>
    %439 = vector.broadcast %438 : vector<16x1xf32> to vector<16x32xf32>
    %440 = arith.mulf %435, %439 : vector<16x32xf32>
    %441 = vector.broadcast %420 : vector<1x32xf32> to vector<16x32xf32>
    %442 = arith.mulf %440, %441 : vector<16x32xf32>
    %443 = vector.broadcast %422 : vector<1x32xf32> to vector<16x32xf32>
    %444 = arith.addf %442, %443 : vector<16x32xf32>
    %445 = vector.broadcast %6 : vector<16x1xf32> to vector<16x32xf32>
    %446 = arith.mulf %444, %445 : vector<16x32xf32>
    %447 = tpu.transpose %446, [1, 0] : vector<16x32xf32> -> vector<32x16xf32>
    %c0_164 = arith.constant 0 : index
    %c0_165 = arith.constant 0 : index
    %c0_166 = arith.constant 0 : index
    %448 = vector.load %arg16[%c0_164, %c0_165, %c0_166] : memref<1x32x16xf32, #tpu.memory_space<vmem>>, vector<1x32x16xf32>
    %449 = vector.shape_cast %448 : vector<1x32x16xf32> to vector<32x16xf32>
    %450 = vector.shape_cast %447 : vector<32x16xf32> to vector<1x32x16xf32>
    tpu.vector_store %arg16[%c0_164, %c0_165, %c0_166], %450 {strides = array<i32>} : memref<1x32x16xf32, #tpu.memory_space<vmem>>, vector<1x32x16xf32>,
    %c0_167 = arith.constant 0 : index
    %c0_168 = arith.constant 0 : index
    %451 = vector.load %arg14[%c0_167, %c0_168] : memref<16x32xbf16, #tpu.memory_space<vmem>>, vector<16x32xbf16>
    %452 = arith.truncf %447 : vector<32x16xf32> to vector<32x16xbf16>
    %cst_169 = arith.constant dense<0.000000e+00> : vector<16x16xf32>
    %453 = tpu.matmul %451, %452, %cst_169 {dimension_numbers = #tpu.dot_dimension_numbers<[1], [0], [0], [1], [0, 0, 1, 1], [], []>} : vector<16x32xbf16>, vector<32x16xbf16>, vector<16x16xf32> -> vector<16x16xf32>
    %c0_170 = arith.constant 0 : index
    %c0_171 = arith.constant 0 : index
    %454 = vector.load %arg15[%c0_170, %c0_171] : memref<16x1xf32, #tpu.memory_space<vmem>>, vector<16x1xf32>
    %455 = vector.broadcast %454 : vector<16x1xf32> to vector<16x16xf32>
    %456 = arith.addf %453, %455 : vector<16x16xf32>
    %c0_172 = arith.constant 0 : index
    %c0_173 = arith.constant 0 : index
    %c0_174 = arith.constant 0 : index
    %457 = vector.load %arg17[%c0_172, %c0_173, %c0_174] : memref<1x16x16xf32, #tpu.memory_space<vmem>>, vector<1x16x16xf32>
    %458 = vector.shape_cast %457 : vector<1x16x16xf32> to vector<16x16xf32>
    %459 = vector.shape_cast %456 : vector<16x16xf32> to vector<1x16x16xf32>
    tpu.vector_store %arg17[%c0_172, %c0_173, %c0_174], %459 {strides = array<i32>} : memref<1x16x16xf32, #tpu.memory_space<vmem>>, vector<1x16x16xf32>,
    return
  }
  func.func @transform_0(%arg0: i32, %arg1: memref<2xi32, #tpu.memory_space<smem>>) -> (i32, i32, i32) {
    %c0_i32 = arith.constant 0 : i32
    %c0_i32_0 = arith.constant 0 : i32
    %c0_i32_1 = arith.constant 0 : i32
    return %arg0, %c0_i32, %c0_i32_0 : i32, i32, i32
  }
  func.func @transform_1(%arg0: i32, %arg1: memref<2xi32, #tpu.memory_space<smem>>) -> (i32, i32, i32) {
    %c0_i32 = arith.constant 0 : i32
    %c0_i32_0 = arith.constant 0 : i32
    %c0_i32_1 = arith.constant 0 : i32
    %c0_i32_2 = arith.constant 0 : i32
    return %c0_i32, %c0_i32_0, %c0_i32_1 : i32, i32, i32
  }
  func.func @transform_2(%arg0: i32, %arg1: memref<2xi32, #tpu.memory_space<smem>>) -> (i32, i32, i32) {
    %c0_i32 = arith.constant 0 : i32
    %c0_i32_0 = arith.constant 0 : i32
    %c0_i32_1 = arith.constant 0 : i32
    %c0_i32_2 = arith.constant 0 : i32
    return %c0_i32, %c0_i32_0, %c0_i32_1 : i32, i32, i32
  }
  func.func @transform_3(%arg0: i32, %arg1: memref<2xi32, #tpu.memory_space<smem>>) -> (i32, i32, i32) {
    %c0_i32 = arith.constant 0 : i32
    %c0_i32_0 = arith.constant 0 : i32
    %c0_i32_1 = arith.constant 0 : i32
    %c0_i32_2 = arith.constant 0 : i32
    return %c0_i32, %c0_i32_0, %c0_i32_1 : i32, i32, i32
  }
  func.func @transform_4(%arg0: i32, %arg1: memref<2xi32, #tpu.memory_space<smem>>) -> (i32, i32, i32) {
    %c0_i32 = arith.constant 0 : i32
    %c0_i32_0 = arith.constant 0 : i32
    %c0_i32_1 = arith.constant 0 : i32
    %c0_i32_2 = arith.constant 0 : i32
    return %c0_i32, %c0_i32_0, %c0_i32_1 : i32, i32, i32
  }
  func.func @transform_5(%arg0: i32, %arg1: memref<2xi32, #tpu.memory_space<smem>>) -> (i32, i32, i32) {
    %c0_i32 = arith.constant 0 : i32
    %c0_i32_0 = arith.constant 0 : i32
    %c0_i32_1 = arith.constant 0 : i32
    %c0_i32_2 = arith.constant 0 : i32
    return %c0_i32, %c0_i32_0, %c0_i32_1 : i32, i32, i32
  }
  func.func @transform_6(%arg0: i32, %arg1: memref<2xi32, #tpu.memory_space<smem>>) -> (i32, i32, i32) {
    %c0_i32 = arith.constant 0 : i32
    %c0_i32_0 = arith.constant 0 : i32
    %c0_i32_1 = arith.constant 0 : i32
    %c0_i32_2 = arith.constant 0 : i32
    return %c0_i32, %c0_i32_0, %c0_i32_1 : i32, i32, i32
  }
  func.func @transform_7(%arg0: i32, %arg1: memref<2xi32, #tpu.memory_space<smem>>) -> (i32, i32, i32) {
    %c0_i32 = arith.constant 0 : i32
    %c0_i32_0 = arith.constant 0 : i32
    %c0_i32_1 = arith.constant 0 : i32
    %c0_i32_2 = arith.constant 0 : i32
    return %c0_i32, %c0_i32_0, %c0_i32_1 : i32, i32, i32
  }
  func.func @transform_8(%arg0: i32, %arg1: memref<2xi32, #tpu.memory_space<smem>>) -> (i32, i32, i32) {
    %c0_i32 = arith.constant 0 : i32
    %c0_i32_0 = arith.constant 0 : i32
    %c0_i32_1 = arith.constant 0 : i32
    %c0_i32_2 = arith.constant 0 : i32
    return %c0_i32, %c0_i32_0, %c0_i32_1 : i32, i32, i32
  }
  func.func @transform_9(%arg0: i32, %arg1: memref<2xi32, #tpu.memory_space<smem>>) -> (i32, i32, i32) {
    %c0_i32 = arith.constant 0 : i32
    %c0_i32_0 = arith.constant 0 : i32
    %c0_i32_1 = arith.constant 0 : i32
    %c0_i32_2 = arith.constant 0 : i32
    return %c0_i32, %c0_i32_0, %c0_i32_1 : i32, i32, i32
  }
  func.func @transform_10(%arg0: i32, %arg1: memref<2xi32, #tpu.memory_space<smem>>) -> (i32, i32, i32) {
    %c0_i32 = arith.constant 0 : i32
    %c0_i32_0 = arith.constant 0 : i32
    %c0_i32_1 = arith.constant 0 : i32
    %c0_i32_2 = arith.constant 0 : i32
    return %c0_i32, %c0_i32_0, %c0_i32_1 : i32, i32, i32
  }
  func.func @transform_11(%arg0: i32, %arg1: memref<2xi32, #tpu.memory_space<smem>>) -> (i32, i32, i32) {
    %c0_i32 = arith.constant 0 : i32
    %c0_i32_0 = arith.constant 0 : i32
    %c0_i32_1 = arith.constant 0 : i32
    %c0_i32_2 = arith.constant 0 : i32
    return %c0_i32, %c0_i32_0, %c0_i32_1 : i32, i32, i32
  }
  func.func @transform_12(%arg0: i32, %arg1: memref<2xi32, #tpu.memory_space<smem>>) -> (i32, i32) {
    %c0_i32 = arith.constant 0 : i32
    %c0_i32_0 = arith.constant 0 : i32
    %c0_i32_1 = arith.constant 0 : i32
    return %c0_i32, %c0_i32_0 : i32, i32
  }
  func.func @transform_13(%arg0: i32, %arg1: memref<2xi32, #tpu.memory_space<smem>>) -> (i32, i32) {
    %c0_i32 = arith.constant 0 : i32
    %c0_i32_0 = arith.constant 0 : i32
    %c0_i32_1 = arith.constant 0 : i32
    return %c0_i32, %c0_i32_0 : i32, i32
  }
  func.func @transform_14(%arg0: i32, %arg1: memref<2xi32, #tpu.memory_space<smem>>) -> (i32, i32, i32) {
    %c0_i32 = arith.constant 0 : i32
    %c0_i32_0 = arith.constant 0 : i32
    %c0_i32_1 = arith.constant 0 : i32
    return %arg0, %c0_i32, %c0_i32_0 : i32, i32, i32
  }
  func.func @transform_15(%arg0: i32, %arg1: memref<2xi32, #tpu.memory_space<smem>>) -> (i32, i32, i32) {
    %c0_i32 = arith.constant 0 : i32
    %c0_i32_0 = arith.constant 0 : i32
    %c0_i32_1 = arith.constant 0 : i32
    return %arg0, %c0_i32, %c0_i32_0 : i32, i32, i32
  }
}

</mosaic_0001>

<llo_original>
// kernel: diffsinger_forward.1
$region0: #{diffsinger_forward.1}
  #allocation0 [shape = 'u32[]', space=smem, size = 0x4, offset = 0x4, fixed_abs, tag = 'smem constant byte address 0x4 - core index']
  #allocation1 [shape = 'u32[144,128]{1,0:T(1,128)}', space=vmem, size = 0x12000, scoped, tag = 'internal scratch']
  #allocation2 [shape = 's32[1]{0}', space=sflag, size = 0x4, scoped, tag = 'scoped memory for diffsinger_forward.1']
  #allocation3 [shape = 'u8[512]{0}', space=smem, size = 0x200, scoped, tag = 'prefetched SMEM operand 0']
  %s0 = inlined_call_operand.vmem [shape: s32[2], index: 0, kind: input, shape index: {}]
  %s1 = inlined_call_operand.vmem [shape: f32[2,16,32], index: 1, kind: input, shape index: {}]
  %s2 = inlined_call_operand.vmem [shape: bf16[2,32,96], index: 2, kind: input, shape index: {}]
  %s3 = inlined_call_operand.vmem [shape: bf16[2,32,32], index: 3, kind: input, shape index: {}]
  %s4 = inlined_call_operand.vmem [shape: f32[2,1,32], index: 4, kind: input, shape index: {}]
  %s5 = inlined_call_operand.vmem [shape: f32[2,1,32], index: 5, kind: input, shape index: {}]
  %s6 = inlined_call_operand.vmem [shape: f32[2,1,32], index: 6, kind: input, shape index: {}]
  %s7 = inlined_call_operand.vmem [shape: bf16[2,160,32], index: 7, kind: input, shape index: {}]
  %s8 = inlined_call_operand.vmem [shape: f32[2,1,32], index: 8, kind: input, shape index: {}]
  %s9 = inlined_call_operand.vmem [shape: bf16[2,160,32], index: 9, kind: input, shape index: {}]
  %s10 = inlined_call_operand.vmem [shape: f32[2,1,32], index: 10, kind: input, shape index: {}]
  %s11 = inlined_call_operand.vmem [shape: f32[2,1,32], index: 11, kind: input, shape index: {}]
  %s12 = inlined_call_operand.vmem [shape: f32[2,1,32], index: 12, kind: input, shape index: {}]
  %s13 = inlined_call_operand.vmem [shape: bf16[16,32], index: 13, kind: input, shape index: {}]
  %s14 = inlined_call_operand.vmem [shape: f32[16,1], index: 14, kind: input, shape index: {}]
  %s15 = inlined_call_operand.hbm [shape: f32[2,32,16], index: 15, kind: output, shape index: {0}]
  %s16 = inlined_call_operand.hbm [shape: f32[2,16,16], index: 16, kind: output, shape index: {1}]
  %17 = xla_tuple %s15, %s16
  %s18 = sld [smem:[#allocation0]]
  $region97: #{diffsinger_forward.1} parent=0
    _
  %s20 = ssub.s32 1, %s18
  %s21 = scalar_select 0, %s20, %s18
  %s22 = sshll.u32 %s0, 4
  %s23 = int_to_ptr.vmem [resolvable:$true] %s22
  %25 = dma.vmem_to_smem %s23, 16, [#allocation3], [#allocation2]
  %26 = dma.done [#allocation2], 16
  %27 = sfence
  $region1: #{diffsinger_forward.1} parent=0
    #allocation4 [shape = 'u8[32768]{0}', space=vmem, size = 0x8000, scoped, tag = 'output window, operand 0']
    #allocation5 [shape = 's32[2]{0}', space=sflag, size = 0x8, scoped, tag = 'scoped memory for diffsinger_forward.1']
    #allocation6 [shape = 'u8[16384]{0}', space=vmem, size = 0x4000, scoped, tag = 'output window, operand 1']
    #allocation7 [shape = 's32[2]{0}', space=sflag, size = 0x8, scoped, tag = 'scoped memory for diffsinger_forward.1']
    %28 = vsyncpa [#allocation5], 0
    %s29 = scalar_lea.sflag [#allocation5], 1
    %30 = vsyncpa %s29, 0
    %31 = vsyncpa [#allocation7], 0
    %s32 = scalar_lea.sflag [#allocation7], 1
    %33 = vsyncpa %s32, 0
    loop: start=0, step=1, limit=4
    $region2: #{diffsinger_forward.1} parent=1 // loop_pre_header
      _
    $region3: #{diffsinger_forward.1} parent=1 // loop_header
      %s35 = sphi 0, %s39
      %p36 = scmp.ge.s32.totalorder %s35, 4
      %s45 = sphi 0, %s47
      %s48 = sphi 0, %s45
      %s49 = sphi 0, %s48
      %s65 = sphi 0, %s49
      %s69 = sphi 0, %s69
      %s71 = sphi 0, %s69
      %s72 = sphi 0, %s71
      %s86 = sphi 0, %s72
      %s90 = sphi 0, %s90
      %s92 = sphi 0, %s90
      %s93 = sphi 0, %s92
      %s107 = sphi 0, %s93
      %s111 = sphi 0, %s111
      %s113 = sphi 0, %s111
      %s114 = sphi 0, %s113
      %s128 = sphi 0, %s114
      %s132 = sphi 0, %s132
      %s134 = sphi 0, %s132
      %s135 = sphi 0, %s134
      %s149 = sphi 0, %s135
      %s153 = sphi 0, %s153
      %s155 = sphi 0, %s153
      %s156 = sphi 0, %s155
      %s170 = sphi 0, %s156
      %s174 = sphi 0, %s174
      %s176 = sphi 0, %s174
      %s177 = sphi 0, %s176
      %s191 = sphi 0, %s177
      %s195 = sphi 0, %s195
      %s197 = sphi 0, %s195
      %s198 = sphi 0, %s197
      %s212 = sphi 0, %s198
      %s216 = sphi 0, %s216
      %s218 = sphi 0, %s216
      %s219 = sphi 0, %s218
      %s233 = sphi 0, %s219
      %s237 = sphi 0, %s237
      %s239 = sphi 0, %s237
      %s240 = sphi 0, %s239
      %s254 = sphi 0, %s240
      %s258 = sphi 0, %s258
      %s260 = sphi 0, %s258
      %s261 = sphi 0, %s260
      %s275 = sphi 0, %s261
      %s279 = sphi 0, %s279
      %s281 = sphi 0, %s279
      %s282 = sphi 0, %s281
      %s296 = sphi 0, %s282
      %s300 = sphi 0, %s300
      %s302 = sphi 0, %s300
      %s303 = sphi 0, %s302
      %s317 = sphi 0, %s303
      %s321 = sphi 0, %s321
      %s323 = sphi 0, %s321
      %s324 = sphi 0, %s323
      %s338 = sphi 0, %s324
      %s344 = sphi 0, %s346
      %s347 = sphi 0, %s344
      %s348 = sphi 0, %s347
      %s364 = sphi 0, %s348
      %s370 = sphi 0, %s372
      %s373 = sphi 0, %s370
      %s374 = sphi 0, %s373
      %s390 = sphi 0, %s374
    $region4: #{diffsinger_forward.1} parent=1 // loop_header_branch
      %38 = sbr.rel (%p36) target = $region8
    $region5: #{diffsinger_forward.1} parent=1 // loop_body
      %s40 = ssub.s32 %s35, 1
      %s41 = ssub.s32 %s35, 2
      %s42 = sadd.s32 %s35, 1
      %s43 = ssub.s32 %s35, %s42
      %p44 = scmp.eq.s32.totalorder %s43, 0
      %s46 = sadd.s32 %s45, 1
      %s47 = scalar_select %p44, %s45, %s46
      %p50 = pneg %p44
      %p51 = scmp.eq.s32.totalorder %s35, 1
      %p52 = por %p50, %p51
      %p53 = scmp.ne.s32.totalorder %s45, %s48
      %p54 = scmp.eq.s32.totalorder %s35, 0
      %p55 = por %p53, %p54
      %p56 = scmp.ne.s32.totalorder %s45, %s48
      %p57 = scmp.eq.s32.totalorder %s40, 1
      %p58 = por %p56, %p57
      %p59 = scmp.ne.s32.totalorder %s48, %s49
      %p60 = scmp.eq.s32.totalorder %s40, 0
      %p61 = por %p59, %p60
      %p62 = scmp.ne.s32.totalorder %s48, %s49
      %p63 = scmp.eq.s32.totalorder %s41, 1
      %p64 = por %p62, %p63
      %p66 = scmp.ne.s32.totalorder %s49, %s65
      %p67 = scmp.eq.s32.totalorder %s41, 0
      %p68 = por %p66, %p67
      %s70 = sadd.s32 %s69, 1
      %p73 = scmp.eq.s32.totalorder %s35, 1
      %p74 = scmp.ne.s32.totalorder %s69, %s71
      %p75 = scmp.eq.s32.totalorder %s35, 0
      %p76 = por %p74, %p75
      %p77 = scmp.ne.s32.totalorder %s69, %s71
      %p78 = scmp.eq.s32.totalorder %s40, 1
      %p79 = por %p77, %p78
      %p80 = scmp.ne.s32.totalorder %s71, %s72
      %p81 = scmp.eq.s32.totalorder %s40, 0
      %p82 = por %p80, %p81
      %p83 = scmp.ne.s32.totalorder %s71, %s72
      %p84 = scmp.eq.s32.totalorder %s41, 1
      %p85 = por %p83, %p84
      %p87 = scmp.ne.s32.totalorder %s72, %s86
      %p88 = scmp.eq.s32.totalorder %s41, 0
      %p89 = por %p87, %p88
      %s91 = sadd.s32 %s90, 1
      %p94 = scmp.eq.s32.totalorder %s35, 1
      %p95 = scmp.ne.s32.totalorder %s90, %s92
      %p96 = scmp.eq.s32.totalorder %s35, 0
      %p97 = por %p95, %p96
      %p98 = scmp.ne.s32.totalorder %s90, %s92
      %p99 = scmp.eq.s32.totalorder %s40, 1
      %p100 = por %p98, %p99
      %p101 = scmp.ne.s32.totalorder %s92, %s93
      %p102 = scmp.eq.s32.totalorder %s40, 0
      %p103 = por %p101, %p102
      %p104 = scmp.ne.s32.totalorder %s92, %s93
      %p105 = scmp.eq.s32.totalorder %s41, 1
      %p106 = por %p104, %p105
      %p108 = scmp.ne.s32.totalorder %s93, %s107
      %p109 = scmp.eq.s32.totalorder %s41, 0
      %p110 = por %p108, %p109
      %s112 = sadd.s32 %s111, 1
      %p115 = scmp.eq.s32.totalorder %s35, 1
      %p116 = scmp.ne.s32.totalorder %s111, %s113
      %p117 = scmp.eq.s32.totalorder %s35, 0
      %p118 = por %p116, %p117
      %p119 = scmp.ne.s32.totalorder %s111, %s113
      %p120 = scmp.eq.s32.totalorder %s40, 1
      %p121 = por %p119, %p120
      %p122 = scmp.ne.s32.totalorder %s113, %s114
      %p123 = scmp.eq.s32.totalorder %s40, 0
      %p124 = por %p122, %p123
      %p125 = scmp.ne.s32.totalorder %s113, %s114
      %p126 = scmp.eq.s32.totalorder %s41, 1
      %p127 = por %p125, %p126
      %p129 = scmp.ne.s32.totalorder %s114, %s128
      %p130 = scmp.eq.s32.totalorder %s41, 0
      %p131 = por %p129, %p130
      %s133 = sadd.s32 %s132, 1
      %p136 = scmp.eq.s32.totalorder %s35, 1
      %p137 = scmp.ne.s32.totalorder %s132, %s134
      %p138 = scmp.eq.s32.totalorder %s35, 0
      %p139 = por %p137, %p138
      %p140 = scmp.ne.s32.totalorder %s132, %s134
      %p141 = scmp.eq.s32.totalorder %s40, 1
      %p142 = por %p140, %p141
      %p143 = scmp.ne.s32.totalorder %s134, %s135
      %p144 = scmp.eq.s32.totalorder %s40, 0
      %p145 = por %p143, %p144
      %p146 = scmp.ne.s32.totalorder %s134, %s135
      %p147 = scmp.eq.s32.totalorder %s41, 1
      %p148 = por %p146, %p147
      %p150 = scmp.ne.s32.totalorder %s135, %s149
      %p151 = scmp.eq.s32.totalorder %s41, 0
      %p152 = por %p150, %p151
      %s154 = sadd.s32 %s153, 1
      %p157 = scmp.eq.s32.totalorder %s35, 1
      %p158 = scmp.ne.s32.totalorder %s153, %s155
      %p159 = scmp.eq.s32.totalorder %s35, 0
      %p160 = por %p158, %p159
      %p161 = scmp.ne.s32.totalorder %s153, %s155
      %p162 = scmp.eq.s32.totalorder %s40, 1
      %p163 = por %p161, %p162
      %p164 = scmp.ne.s32.totalorder %s155, %s156
      %p165 = scmp.eq.s32.totalorder %s40, 0
      %p166 = por %p164, %p165
      %p167 = scmp.ne.s32.totalorder %s155, %s156
      %p168 = scmp.eq.s32.totalorder %s41, 1
      %p169 = por %p167, %p168
      %p171 = scmp.ne.s32.totalorder %s156, %s170
      %p172 = scmp.eq.s32.totalorder %s41, 0
      %p173 = por %p171, %p172
      %s175 = sadd.s32 %s174, 1
      %p178 = scmp.eq.s32.totalorder %s35, 1
      %p179 = scmp.ne.s32.totalorder %s174, %s176
      %p180 = scmp.eq.s32.totalorder %s35, 0
      %p181 = por %p179, %p180
      %p182 = scmp.ne.s32.totalorder %s174, %s176
      %p183 = scmp.eq.s32.totalorder %s40, 1
      %p184 = por %p182, %p183
      %p185 = scmp.ne.s32.totalorder %s176, %s177
      %p186 = scmp.eq.s32.totalorder %s40, 0
      %p187 = por %p185, %p186
      %p188 = scmp.ne.s32.totalorder %s176, %s177
      %p189 = scmp.eq.s32.totalorder %s41, 1
      %p190 = por %p188, %p189
      %p192 = scmp.ne.s32.totalorder %s177, %s191
      %p193 = scmp.eq.s32.totalorder %s41, 0
      %p194 = por %p192, %p193
      %s196 = sadd.s32 %s195, 1
      %p199 = scmp.eq.s32.totalorder %s35, 1
      %p200 = scmp.ne.s32.totalorder %s195, %s197
      %p201 = scmp.eq.s32.totalorder %s35, 0
      %p202 = por %p200, %p201
      %p203 = scmp.ne.s32.totalorder %s195, %s197
      %p204 = scmp.eq.s32.totalorder %s40, 1
      %p205 = por %p203, %p204
      %p206 = scmp.ne.s32.totalorder %s197, %s198
      %p207 = scmp.eq.s32.totalorder %s40, 0
      %p208 = por %p206, %p207
      %p209 = scmp.ne.s32.totalorder %s197, %s198
      %p210 = scmp.eq.s32.totalorder %s41, 1
      %p211 = por %p209, %p210
      %p213 = scmp.ne.s32.totalorder %s198, %s212
      %p214 = scmp.eq.s32.totalorder %s41, 0
      %p215 = por %p213, %p214
      %s217 = sadd.s32 %s216, 1
      %p220 = scmp.eq.s32.totalorder %s35, 1
      %p221 = scmp.ne.s32.totalorder %s216, %s218
      %p222 = scmp.eq.s32.totalorder %s35, 0
      %p223 = por %p221, %p222
      %p224 = scmp.ne.s32.totalorder %s216, %s218
      %p225 = scmp.eq.s32.totalorder %s40, 1
      %p226 = por %p224, %p225
      %p227 = scmp.ne.s32.totalorder %s218, %s219
      %p228 = scmp.eq.s32.totalorder %s40, 0
      %p229 = por %p227, %p228
      %p230 = scmp.ne.s32.totalorder %s218, %s219
      %p231 = scmp.eq.s32.totalorder %s41, 1
      %p232 = por %p230, %p231
      %p234 = scmp.ne.s32.totalorder %s219, %s233
      %p235 = scmp.eq.s32.totalorder %s41, 0
      %p236 = por %p234, %p235
      %s238 = sadd.s32 %s237, 1
      %p241 = scmp.eq.s32.totalorder %s35, 1
      %p242 = scmp.ne.s32.totalorder %s237, %s239
      %p243 = scmp.eq.s32.totalorder %s35, 0
      %p244 = por %p242, %p243
      %p245 = scmp.ne.s32.totalorder %s237, %s239
      %p246 = scmp.eq.s32.totalorder %s40, 1
      %p247 = por %p245, %p246
      %p248 = scmp.ne.s32.totalorder %s239, %s240
      %p249 = scmp.eq.s32.totalorder %s40, 0
      %p250 = por %p248, %p249
      %p251 = scmp.ne.s32.totalorder %s239, %s240
      %p252 = scmp.eq.s32.totalorder %s41, 1
      %p253 = por %p251, %p252
      %p255 = scmp.ne.s32.totalorder %s240, %s254
      %p256 = scmp.eq.s32.totalorder %s41, 0
      %p257 = por %p255, %p256
      %s259 = sadd.s32 %s258, 1
      %p262 = scmp.eq.s32.totalorder %s35, 1
      %p263 = scmp.ne.s32.totalorder %s258, %s260
      %p264 = scmp.eq.s32.totalorder %s35, 0
      %p265 = por %p263, %p264
      %p266 = scmp.ne.s32.totalorder %s258, %s260
      %p267 = scmp.eq.s32.totalorder %s40, 1
      %p268 = por %p266, %p267
      %p269 = scmp.ne.s32.totalorder %s260, %s261
      %p270 = scmp.eq.s32.totalorder %s40, 0
      %p271 = por %p269, %p270
      %p272 = scmp.ne.s32.totalorder %s260, %s261
      %p273 = scmp.eq.s32.totalorder %s41, 1
      %p274 = por %p272, %p273
      %p276 = scmp.ne.s32.totalorder %s261, %s275
      %p277 = scmp.eq.s32.totalorder %s41, 0
      %p278 = por %p276, %p277
      %s280 = sadd.s32 %s279, 1
      %p283 = scmp.eq.s32.totalorder %s35, 1
      %p284 = scmp.ne.s32.totalorder %s279, %s281
      %p285 = scmp.eq.s32.totalorder %s35, 0
      %p286 = por %p284, %p285
      %p287 = scmp.ne.s32.totalorder %s279, %s281
      %p288 = scmp.eq.s32.totalorder %s40, 1
      %p289 = por %p287, %p288
      %p290 = scmp.ne.s32.totalorder %s281, %s282
      %p291 = scmp.eq.s32.totalorder %s40, 0
      %p292 = por %p290, %p291
      %p293 = scmp.ne.s32.totalorder %s281, %s282
      %p294 = scmp.eq.s32.totalorder %s41, 1
      %p295 = por %p293, %p294
      %p297 = scmp.ne.s32.totalorder %s282, %s296
      %p298 = scmp.eq.s32.totalorder %s41, 0
      %p299 = por %p297, %p298
      %s301 = sadd.s32 %s300, 1
      %p304 = scmp.eq.s32.totalorder %s35, 1
      %p305 = scmp.ne.s32.totalorder %s300, %s302
      %p306 = scmp.eq.s32.totalorder %s35, 0
      %p307 = por %p305, %p306
      %p308 = scmp.ne.s32.totalorder %s300, %s302
      %p309 = scmp.eq.s32.totalorder %s40, 1
      %p310 = por %p308, %p309
      %p311 = scmp.ne.s32.totalorder %s302, %s303
      %p312 = scmp.eq.s32.totalorder %s40, 0
      %p313 = por %p311, %p312
      %p314 = scmp.ne.s32.totalorder %s302, %s303
      %p315 = scmp.eq.s32.totalorder %s41, 1
      %p316 = por %p314, %p315
      %p318 = scmp.ne.s32.totalorder %s303, %s317
      %p319 = scmp.eq.s32.totalorder %s41, 0
      %p320 = por %p318, %p319
      %s322 = sadd.s32 %s321, 1
      %p325 = scmp.eq.s32.totalorder %s35, 1
      %p326 = scmp.ne.s32.totalorder %s321, %s323
      %p327 = scmp.eq.s32.totalorder %s35, 0
      %p328 = por %p326, %p327
      %p329 = scmp.ne.s32.totalorder %s321, %s323
      %p330 = scmp.eq.s32.totalorder %s40, 1
      %p331 = por %p329, %p330
      %p332 = scmp.ne.s32.totalorder %s323, %s324
      %p333 = scmp.eq.s32.totalorder %s40, 0
      %p334 = por %p332, %p333
      %p335 = scmp.ne.s32.totalorder %s323, %s324
      %p336 = scmp.eq.s32.totalorder %s41, 1
      %p337 = por %p335, %p336
      %p339 = scmp.ne.s32.totalorder %s324, %s338
      %p340 = scmp.eq.s32.totalorder %s41, 0
      %p341 = por %p339, %p340
      %s342 = ssub.s32 %s35, %s42
      %p343 = scmp.eq.s32.totalorder %s342, 0
      %s345 = sadd.s32 %s344, 1
      %s346 = scalar_select %p343, %s344, %s345
      %p349 = pneg %p343
      %p350 = scmp.eq.s32.totalorder %s35, 1
      %p351 = por %p349, %p350
      %p352 = scmp.ne.s32.totalorder %s344, %s347
      %p353 = scmp.eq.s32.totalorder %s35, 0
      %p354 = por %p352, %p353
      %p355 = scmp.ne.s32.totalorder %s344, %s347
      %p356 = scmp.eq.s32.totalorder %s40, 1
      %p357 = por %p355, %p356
      %p358 = scmp.ne.s32.totalorder %s347, %s348
      %p359 = scmp.eq.s32.totalorder %s40, 0
      %p360 = por %p358, %p359
      %p361 = scmp.ne.s32.totalorder %s347, %s348
      %p362 = scmp.eq.s32.totalorder %s41, 1
      %p363 = por %p361, %p362
      %p365 = scmp.ne.s32.totalorder %s348, %s364
      %p366 = scmp.eq.s32.totalorder %s41, 0
      %p367 = por %p365, %p366
      %s368 = ssub.s32 %s35, %s42
      %p369 = scmp.eq.s32.totalorder %s368, 0
      %s371 = sadd.s32 %s370, 1
      %s372 = scalar_select %p369, %s370, %s371
      %p375 = pneg %p369
      %p376 = scmp.eq.s32.totalorder %s35, 1
      %p377 = por %p375, %p376
      %p378 = scmp.ne.s32.totalorder %s370, %s373
      %p379 = scmp.eq.s32.totalorder %s35, 0
      %p380 = por %p378, %p379
      %p381 = scmp.ne.s32.totalorder %s370, %s373
      %p382 = scmp.eq.s32.totalorder %s40, 1
      %p383 = por %p381, %p382
      %p384 = scmp.ne.s32.totalorder %s373, %s374
      %p385 = scmp.eq.s32.totalorder %s40, 0
      %p386 = por %p384, %p385
      %p387 = scmp.ne.s32.totalorder %s373, %s374
      %p388 = scmp.eq.s32.totalorder %s41, 1
      %p389 = por %p387, %p388
      %p391 = scmp.ne.s32.totalorder %s374, %s390
      %p392 = scmp.eq.s32.totalorder %s41, 0
      %p393 = por %p391, %p392
      %p394 = scmp.le.s32.totalorder 1, %s35
      %p395 = scmp.lt.s32.totalorder %s35, 3
      %p396 = pnand %p394, %p395
      %p397 = pneg %p396
      // Predicated region
      $region9: #{diffsinger_forward.1} parent=5 // pred_check
        _
      $region10: #{diffsinger_forward.1} parent=5 // pred_check_branch
        %399 = sbr.rel (%p396) target = $region12
      $region11: #{diffsinger_forward.1} parent=5 // pred_region
        %s400 = ssub.s32 %s35, 1
        // Predicated region
        $region13: #{diffsinger_forward.1} parent=11 // pred_check
          %p401 = pneg %p82
        $region14: #{diffsinger_forward.1} parent=11 // pred_check_branch
          %403 = sbr.rel (%p401) target = $region16
        $region15: #{diffsinger_forward.1} parent=11 // pred_region
          _
        $region16: #{diffsinger_forward.1} parent=11 // pred_fallthru
          _
        // Predicated region
        $region17: #{diffsinger_forward.1} parent=11 // pred_check
          %p404 = pneg %p103
        $region18: #{diffsinger_forward.1} parent=11 // pred_check_branch
          %406 = sbr.rel (%p404) target = $region20
        $region19: #{diffsinger_forward.1} parent=11 // pred_region
          _
        $region20: #{diffsinger_forward.1} parent=11 // pred_fallthru
          _
        // Predicated region
        $region21: #{diffsinger_forward.1} parent=11 // pred_check
          %p407 = pneg %p124
        $region22: #{diffsinger_forward.1} parent=11 // pred_check_branch
          %409 = sbr.rel (%p407) target = $region24
        $region23: #{diffsinger_forward.1} parent=11 // pred_region
          _
        $region24: #{diffsinger_forward.1} parent=11 // pred_fallthru
          _
        // Predicated region
        $region25: #{diffsinger_forward.1} parent=11 // pred_check
          %p410 = pneg %p145
        $region26: #{diffsinger_forward.1} parent=11 // pred_check_branch
          %412 = sbr.rel (%p410) target = $region28
        $region27: #{diffsinger_forward.1} parent=11 // pred_region
          _
        $region28: #{diffsinger_forward.1} parent=11 // pred_fallthru
          _
        // Predicated region
        $region29: #{diffsinger_forward.1} parent=11 // pred_check
          %p413 = pneg %p166
        $region30: #{diffsinger_forward.1} parent=11 // pred_check_branch
          %415 = sbr.rel (%p413) target = $region32
        $region31: #{diffsinger_forward.1} parent=11 // pred_region
          _
        $region32: #{diffsinger_forward.1} parent=11 // pred_fallthru
          _
        // Predicated region
        $region33: #{diffsinger_forward.1} parent=11 // pred_check
          %p416 = pneg %p187
        $region34: #{diffsinger_forward.1} parent=11 // pred_check_branch
          %418 = sbr.rel (%p416) target = $region36
        $region35: #{diffsinger_forward.1} parent=11 // pred_region
          _
        $region36: #{diffsinger_forward.1} parent=11 // pred_fallthru
          _
        // Predicated region
        $region37: #{diffsinger_forward.1} parent=11 // pred_check
          %p419 = pneg %p208
        $region38: #{diffsinger_forward.1} parent=11 // pred_check_branch
          %421 = sbr.rel (%p419) target = $region40
        $region39: #{diffsinger_forward.1} parent=11 // pred_region
          _
        $region40: #{diffsinger_forward.1} parent=11 // pred_fallthru
          _
        // Predicated region
        $region41: #{diffsinger_forward.1} parent=11 // pred_check
          %p422 = pneg %p229
        $region42: #{diffsinger_forward.1} parent=11 // pred_check_branch
          %424 = sbr.rel (%p422) target = $region44
        $region43: #{diffsinger_forward.1} parent=11 // pred_region
          _
        $region44: #{diffsinger_forward.1} parent=11 // pred_fallthru
          _
        // Predicated region
        $region45: #{diffsinger_forward.1} parent=11 // pred_check
          %p425 = pneg %p250
        $region46: #{diffsinger_forward.1} parent=11 // pred_check_branch
          %427 = sbr.rel (%p425) target = $region48
        $region47: #{diffsinger_forward.1} parent=11 // pred_region
          _
        $region48: #{diffsinger_forward.1} parent=11 // pred_fallthru
          _
        // Predicated region
        $region49: #{diffsinger_forward.1} parent=11 // pred_check
          %p428 = pneg %p271
        $region50: #{diffsinger_forward.1} parent=11 // pred_check_branch
          %430 = sbr.rel (%p428) target = $region52
        $region51: #{diffsinger_forward.1} parent=11 // pred_region
          _
        $region52: #{diffsinger_forward.1} parent=11 // pred_fallthru
          _
        // Predicated region
        $region53: #{diffsinger_forward.1} parent=11 // pred_check
          %p431 = pneg %p292
        $region54: #{diffsinger_forward.1} parent=11 // pred_check_branch
          %433 = sbr.rel (%p431) target = $region56
        $region55: #{diffsinger_forward.1} parent=11 // pred_region
          _
        $region56: #{diffsinger_forward.1} parent=11 // pred_fallthru
          _
        // Predicated region
        $region57: #{diffsinger_forward.1} parent=11 // pred_check
          %p434 = pneg %p313
        $region58: #{diffsinger_forward.1} parent=11 // pred_check_branch
          %436 = sbr.rel (%p434) target = $region60
        $region59: #{diffsinger_forward.1} parent=11 // pred_region
          _
        $region60: #{diffsinger_forward.1} parent=11 // pred_fallthru
          _
        // Predicated region
        $region61: #{diffsinger_forward.1} parent=11 // pred_check
          %p437 = pneg %p334
        $region62: #{diffsinger_forward.1} parent=11 // pred_check_branch
          %439 = sbr.rel (%p437) target = $region64
        $region63: #{diffsinger_forward.1} parent=11 // pred_region
          _
        $region64: #{diffsinger_forward.1} parent=11 // pred_fallthru
          _
      $region12: #{diffsinger_forward.1} parent=5 // pred_fallthru
        _
      %p440 = scmp.lt.s32.totalorder %s35, 2
      // Predicated region
      $region65: #{diffsinger_forward.1} parent=5 // pred_check
        %p441 = pneg %p440
      $region66: #{diffsinger_forward.1} parent=5 // pred_check_branch
        %443 = sbr.rel (%p441) target = $region68
      $region67: #{diffsinger_forward.1} parent=5 // pred_region
        // Predicated region
        $region69: #{diffsinger_forward.1} parent=67 // pred_check
          %p444 = pneg %p55
        $region70: #{diffsinger_forward.1} parent=67 // pred_check_branch
          %446 = sbr.rel (%p444) target = $region72
        $region71: #{diffsinger_forward.1} parent=67 // pred_region
          %p447 = scmp.lt.s32.totalorder %s35, 1
          %s448 = scalar_select %p447, %s35, 1
          %s449 = smul.addr %s448, 2
          %s450 = smul.addr %s449, 8
          %s451 = scalar_lea.vmem %s1, %s450
        $region72: #{diffsinger_forward.1} parent=67 // pred_fallthru
          _
      $region68: #{diffsinger_forward.1} parent=5 // pred_fallthru
        _
      %p452 = scmp.le.s32.totalorder 1, %s35
      %p453 = scmp.lt.s32.totalorder %s35, 3
      %p454 = pnand %p452, %p453
      %p455 = pneg %p454
      // Predicated region
      $region73: #{diffsinger_forward.1} parent=5 // pred_check
        _
      $region74: #{diffsinger_forward.1} parent=5 // pred_check_branch
        %457 = sbr.rel (%p454) target = $region76
      $region75: #{diffsinger_forward.1} parent=5 // pred_region
        %s458 = ssub.s32 %s35, 1
        %p459 = scmp.lt.s32.totalorder %s40, 1
        %s460 = scalar_select %p459, %s40, 1
        %s461 = smul.addr %s460, 2
        %s462 = smul.addr %s461, 8
        %s463 = scalar_lea.vmem %s1, %s462
        %p464 = pneg %p61
        %p465 = pneg %p58
        %p466 = pneg %p82
        %p467 = pneg %p79
        %p468 = pneg %p103
        %p469 = pneg %p100
        %p470 = pneg %p124
        %p471 = pneg %p121
        %p472 = pneg %p145
        %p473 = pneg %p142
        %p474 = pneg %p166
        %p475 = pneg %p163
        %p476 = pneg %p187
        %p477 = pneg %p184
        %p478 = pneg %p208
        %p479 = pneg %p205
        %p480 = pneg %p229
        %p481 = pneg %p226
        %p482 = pneg %p250
        %p483 = pneg %p247
        %p484 = pneg %p271
        %p485 = pneg %p268
        %p486 = pneg %p292
        %p487 = pneg %p289
        %p488 = pneg %p313
        %p489 = pneg %p310
        %p490 = pneg %p334
        %p491 = pneg %p331
        %p492 = pneg %p360
        %p493 = pneg %p357
        %s494 = sand.u32 %s347, 1
        %s495 = scalar_lea.sflag [#allocation5], %s494
        %s496 = sand.u32 %s347, 1
        %s497 = smul.addr %s496, 32
        %s498 = scalar_lea.vmem [#allocation4], %s497
        %p499 = pneg %p386
        %p500 = pneg %p383
        %s501 = sand.u32 %s373, 1
        %s502 = scalar_lea.sflag [#allocation7], %s501
        %s503 = sand.u32 %s373, 1
        %s504 = smul.addr %s503, 16
        %s505 = scalar_lea.vmem [#allocation6], %s504
        %p506 = scmp.lt.s32.totalorder %s40, 1
        %s507 = scalar_select %p506, %s40, 1
        %s508 = smul.addr %s507, 2
        %s509 = smul.addr %s508, 8
        %s510 = scalar_lea.vmem %s1, %s509
        %s512 = sld [smem:[#allocation3 + %s40]]
        %v513 = vlaneseq
        %v514 = vshrl.u32 %v513, 7
        %v515 = vadd.s32 %v514, 8
        %v516 = vstv %s512
        %vm517 = vcmp.lt.s32.totalorder %v514, %v516
        %vm518 = vcmp.lt.s32.totalorder %v515, %v516
        %v519 = vsel %vm517, 1, 0
        %v520 = vsel %vm518, 1, 0
        %v521 = vcvt.s32.f32 %v519
        %v522 = vcvt.s32.f32 %v520
        %v523 = vadd.s32 %v514, 4294967294
        %v524 = vadd.s32 %v515, 4294967294
        %vm525 = vcmp.ge.s32.totalorder %v523, 0
        %vm526 = vcmp.ge.s32.totalorder %v524, 0
        %vm527 = vcmp.lt.s32.totalorder %v523, 16
        %vm528 = vcmp.lt.s32.totalorder %v524, 16
        %vm529 = vmand %vm525, %vm527
        %vm530 = vmand %vm526, %vm528
        %v531 = vadd.s32 %v514, 4294967295
        %v532 = vadd.s32 %v515, 4294967295
        %vm533 = vcmp.ge.s32.totalorder %v531, 0
        %vm534 = vcmp.ge.s32.totalorder %v532, 0
        %vm535 = vcmp.lt.s32.totalorder %v531, 16
        %vm536 = vcmp.lt.s32.totalorder %v532, 16
        %vm537 = vmand %vm533, %vm535
        %vm538 = vmand %vm534, %vm536
        %v539 = vadd.s32 %v514, 1
        %v540 = vadd.s32 %v515, 1
        %vm541 = vcmp.ge.s32.totalorder %v539, 0
        %vm542 = vcmp.ge.s32.totalorder %v540, 0
        %vm543 = vcmp.lt.s32.totalorder %v539, 16
        %vm544 = vcmp.lt.s32.totalorder %v540, 16
        %vm545 = vmand %vm541, %vm543
        %vm546 = vmand %vm542, %vm544
        %v547 = vadd.s32 %v514, 2
        %v548 = vadd.s32 %v515, 2
        %vm549 = vcmp.ge.s32.totalorder %v547, 0
        %vm550 = vcmp.ge.s32.totalorder %v548, 0
        %vm551 = vcmp.lt.s32.totalorder %v547, 16
        %vm552 = vcmp.lt.s32.totalorder %v548, 16
        %vm553 = vmand %vm549, %vm551
        %vm554 = vmand %vm550, %vm552
        %v555 = vld [vmem:[%s510] sm:$0xff]
        %v556 = vld [vmem:[%s510 + $0x8] sm:$0xff]
        %v557 = vmul.f32 %v555, %v521
        %v558 = vmul.f32 %v556, %v522
        %v559 = vpack.c.bf16 %v558, %v557
        %v560 = vld [vmem:[%s2] sm:$0xf]
        %v561 = vld [vmem:[%s2 + $0x4] sm:$0xf]
        %v562 = vld [vmem:[%s2 + $0x8] sm:$0xf]
        %v563 = vld [vmem:[%s2 + $0xc] sm:$0xf]
        %v568 = vunpack.c.l.b16 %v560
        %v569 = vunpack.c.l.b16 %v561
        %v570 = vunpack.c.l.b16 %v562
        %v571 = vunpack.c.l.b16 %v563
        %v572 = vpack.c.b16 %v569, %v568
        %v573 = vpack.c.b16 %v571, %v570
        %vm576 = vcmask 261120
        %v578 = vsel %vm576, %v559, 0
        %580 = vmatprep.subr.bf16.mxu0 0
        %581 = vmatpush1.bf16.msra.mxu0 0
        %582 = vmatprep.subr.bf16.mxu0 0
        %583 = vmatpush1.bf16.msra.mxu0 0
        %584 = vmatprep.subr.bf16.mxu0 0
        %585 = vmatpush1.bf16.msra.mxu0 0
        %586 = vmatprep.subr.bf16.mxu0 0
        %587 = vmatpush1.bf16.msra.mxu0 0
        %588 = vmatprep.subr.bf16.mxu0 0
        %589 = vmatpush1.bf16.msra.mxu0 0
        %590 = vmatprep.subr.bf16.mxu0 0
        %591 = vmatpush1.bf16.msra.mxu0 0
        %592 = vmatprep.subr.bf16.mxu0 0
        %593 = vmatpush1.bf16.msra.mxu0 %v573
        %594 = vmatprep.subr.bf16.mxu0 0
        %595 = vmatpush1.bf16.msra.mxu0 %v572
        %596 = vmatprep.subr.bf16.mxu0 0
        %597 = vmatpush2.bf16.msra.mxu0 0
        %598 = vmatprep.subr.bf16.mxu0 0
        %599 = vmatpush2.bf16.msra.mxu0 0
        %600 = vmatprep.subr.bf16.mxu0 0
        %601 = vmatpush2.bf16.msra.mxu0 0
        %602 = vmatprep.subr.bf16.mxu0 0
        %603 = vmatpush2.bf16.msra.mxu0 0
        %604 = vmatprep.subr.bf16.mxu0 0
        %605 = vmatpush2.bf16.msra.mxu0 0
        %606 = vmatprep.subr.bf16.mxu0 0
        %607 = vmatpush2.bf16.msra.mxu0 0
        %608 = vmatprep.subr.bf16.mxu0 0
        %609 = vmatpush2.bf16.msra.mxu0 0
        %610 = vmatprep.subr.bf16.mxu0 0
        %611 = vmatpush2.bf16.msra.mxu0 0
        %612 = vmatprep.mubr.bf16.mxu0 0
        %613 = vmatmul.mubr.bf16.gmra.mxu0 %v578
        %v614 = vpop.f32.mrf.mxu0
        %v615 = vadd.f32 0.0, %v614
        %v616 = vpop.f32.mrf.mxu0
        %v617 = vpop.f32.mrf.mxu0
        %v618 = vadd.f32 0.0, %v617
        %v619 = vpop.f32.mrf.mxu0
        %620 = vdwg.mxu0
        %v621 = vmul.f32 %v615, %v521
        %v622 = vmul.f32 %v618, %v522
        %vm623 = vcmask 130048
        %v624 = vsel %vm623, %v615, -inf
        %625 = vmax.xlane.f32.xlu0 %v624
        %v626 = vpop.xlane.xlu0 %625
        %v627 = vsel %vm623, %v618, -inf
        %628 = vmax.xlane.f32.xlu0 %v627
        %v629 = vpop.xlane.xlu0 %628
        %v630 = vsub.f32 %v615, %v626
        %v631 = vsub.f32 %v618, %v629
        %v632 = vmul.f32 %v630, 1.442695
        %v633 = vpow.pop %v632
        %v634 = vmul.f32 %v631, 1.442695
        %v635 = vpow.pop %v634
        %v636 = vsel %vm623, %v633, 0.0
        %637 = vadd.xlane.f32.xlu0 %v636
        %v638 = vpop.xlane.xlu0 %637
        %v639 = vsel %vm623, %v635, 0.0
        %640 = vadd.xlane.f32.xlu0 %v639
        %v641 = vpop.xlane.xlu0 %640
        %v642 = vrcp.pop %v638
        %v643 = vmul.f32 %v633, %v642
        %v644 = vrcp.pop %v641
        %v645 = vmul.f32 %v635, %v644
        %vm646 = vcmp.eq.s32.totalorder %v519, 1
        %vm647 = vcmp.eq.s32.totalorder %v520, 1
        %v648 = vsel %vm646, %v615, -1e+09
        %v649 = vsel %vm647, %v618, -1e+09
        %vm650 = vcmask 392448
        %v651 = vsel %vm650, %v648, -inf
        %v652 = vsel %vm650, %v649, -inf
        %v653 = vmax.f32 %v651, %v652
        %v654 = vrot.slane %v653, 4
        %v655 = vmax.f32 %v653, %v654
        %v656 = vrot.slane %v655, 2
        %v657 = vmax.f32 %v655, %v656
        %v658 = vrot.slane %v657, 1
        %v659 = vmax.f32 %v657, %v658
        %v660 = vsub.f32 %v648, %v659
        %v661 = vsub.f32 %v649, %v659
        %v662 = vmul.f32 %v660, 1.442695
        %v663 = vpow.pop %v662
        %v664 = vmul.f32 %v661, 1.442695
        %v665 = vpow.pop %v664
        %v666 = vsel %vm650, %v663, 0.0
        %v667 = vsel %vm650, %v665, 0.0
        %v668 = vadd.f32 %v666, %v667
        %v669 = vrot.slane %v668, 4
        %v670 = vadd.f32 %v668, %v669
        %v671 = vrot.slane %v670, 2
        %v672 = vadd.f32 %v670, %v671
        %v673 = vrot.slane %v672, 1
        %v674 = vadd.f32 %v672, %v673
        %v675 = vrcp.pop %v674
        %v676 = vmul.f32 %v663, %v675
        %v677 = vmul.f32 %v665, %v675
        %v678 = vpack.c.bf16 %v677, %v676
        %v679 = vpack.c.bf16 %v622, %v621
        %681 = vrot.lane.b32.xlu0 %v678, 96
        %v682 = vpop.permute.xlu0 %681
        %684 = vxpose.xlu0.c.b16.start [1/8] %v682, 128
        %685 = vxpose.xlu0.c.b16.cont [2/8] 0, 128
        %686 = vxpose.xlu0.c.b16.cont [3/8] 0, 128
        %687 = vxpose.xlu0.c.b16.cont [4/8] 0, 128
        %688 = vxpose.xlu0.c.b16.cont [5/8] 0, 128
        %689 = vxpose.xlu0.c.b16.cont [6/8] 0, 128
        %690 = vxpose.xlu0.c.b16.cont [7/8] 0, 128
        %691 = vxpose.xlu0.c.b16.end [8/8] 0, 128
        %v692 = vpop.trf.xlu0
        %v693 = vpop.trf.xlu0
        %v694 = vpop.trf.xlu0
        %v695 = vpop.trf.xlu0
        %v696 = vpop.trf.xlu0
        %v697 = vpop.trf.xlu0
        %v698 = vpop.trf.xlu0
        %v699 = vpop.trf.xlu0
        %701 = vrot.lane.b32.xlu0 %v679, 64
        %v702 = vpop.permute.xlu0 %701
        %v705 = vsel %vm623, %v692, 0
        %707 = vmatprep.subr.bf16.mxu0 0
        %708 = vmatpush1.bf16.msra.mxu0 0
        %709 = vmatprep.subr.bf16.mxu0 0
        %710 = vmatpush1.bf16.msra.mxu0 0
        %711 = vmatprep.subr.bf16.mxu0 0
        %712 = vmatpush1.bf16.msra.mxu0 0
        %713 = vmatprep.subr.bf16.mxu0 0
        %714 = vmatpush1.bf16.msra.mxu0 0
        %715 = vmatprep.subr.bf16.mxu0 0
        %716 = vmatpush1.bf16.msra.mxu0 0
        %717 = vmatprep.subr.bf16.mxu0 0
        %718 = vmatpush1.bf16.msra.mxu0 0
        %719 = vmatprep.subr.bf16.mxu0 0
        %720 = vmatpush1.bf16.msra.mxu0 0
        %721 = vmatprep.subr.bf16.mxu0 0
        %722 = vmatpush1.bf16.msra.mxu0 %v702
        %723 = vmatprep.subr.bf16.mxu0 0
        %724 = vmatpush2.bf16.msra.mxu0 0
        %725 = vmatprep.subr.bf16.mxu0 0
        %726 = vmatpush2.bf16.msra.mxu0 0
        %727 = vmatprep.subr.bf16.mxu0 0
        %728 = vmatpush2.bf16.msra.mxu0 0
        %729 = vmatprep.subr.bf16.mxu0 0
        %730 = vmatpush2.bf16.msra.mxu0 0
        %731 = vmatprep.subr.bf16.mxu0 0
        %732 = vmatpush2.bf16.msra.mxu0 0
        %733 = vmatprep.subr.bf16.mxu0 0
        %734 = vmatpush2.bf16.msra.mxu0 0
        %735 = vmatprep.subr.bf16.mxu0 0
        %736 = vmatpush2.bf16.msra.mxu0 0
        %737 = vmatprep.subr.bf16.mxu0 0
        %738 = vmatpush2.bf16.msra.mxu0 0
        %739 = vmatprep.mubr.bf16.mxu0 0
        %740 = vmatmul.mubr.bf16.gmra.mxu0 %v705
        %v741 = vpop.f32.mrf.mxu0
        %v742 = vadd.f32 0.0, %v741
        %v743 = vpop.f32.mrf.mxu0
        %v744 = vpop.f32.mrf.mxu0
        %v745 = vadd.f32 0.0, %v744
        %v746 = vpop.f32.mrf.mxu0
        %747 = vdwg.mxu0
        %v748 = vpack.c.bf16 %v645, %v643
        %v749 = vpack.c.bf16 %v745, %v742
        %v751 = vsel %vm623, %v748, 0
        %753 = vmatprep.subr.bf16.mxu0 0
        %754 = vmatpush1.bf16.msra.mxu0 0
        %755 = vmatprep.subr.bf16.mxu0 0
        %756 = vmatpush1.bf16.msra.mxu0 0
        %757 = vmatprep.subr.bf16.mxu0 0
        %758 = vmatpush1.bf16.msra.mxu0 0
        %759 = vmatprep.subr.bf16.mxu0 0
        %760 = vmatpush1.bf16.msra.mxu0 0
        %761 = vmatprep.subr.bf16.mxu0 0
        %762 = vmatpush1.bf16.msra.mxu0 0
        %763 = vmatprep.subr.bf16.mxu0 0
        %764 = vmatpush1.bf16.msra.mxu0 0
        %765 = vmatprep.subr.bf16.mxu0 0
        %766 = vmatpush1.bf16.msra.mxu0 0
        %767 = vmatprep.subr.bf16.mxu0 0
        %768 = vmatpush1.bf16.msra.mxu0 %v749
        %769 = vmatprep.subr.bf16.mxu0 0
        %770 = vmatpush2.bf16.msra.mxu0 0
        %771 = vmatprep.subr.bf16.mxu0 0
        %772 = vmatpush2.bf16.msra.mxu0 0
        %773 = vmatprep.subr.bf16.mxu0 0
        %774 = vmatpush2.bf16.msra.mxu0 0
        %775 = vmatprep.subr.bf16.mxu0 0
        %776 = vmatpush2.bf16.msra.mxu0 0
        %777 = vmatprep.subr.bf16.mxu0 0
        %778 = vmatpush2.bf16.msra.mxu0 0
        %779 = vmatprep.subr.bf16.mxu0 0
        %780 = vmatpush2.bf16.msra.mxu0 0
        %781 = vmatprep.subr.bf16.mxu0 0
        %782 = vmatpush2.bf16.msra.mxu0 0
        %783 = vmatprep.subr.bf16.mxu0 0
        %784 = vmatpush2.bf16.msra.mxu0 0
        %785 = vmatprep.mubr.bf16.mxu0 0
        %786 = vmatmul.mubr.bf16.gmra.mxu0 %v751
        %v787 = vpop.f32.mrf.mxu0
        %v788 = vadd.f32 0.0, %v787
        %v789 = vpop.f32.mrf.mxu0
        %v790 = vpop.f32.mrf.mxu0
        %v791 = vadd.f32 0.0, %v790
        %v792 = vpop.f32.mrf.mxu0
        %793 = vdwg.mxu0
        %vm794 = vcmask 261248
        %v795 = vsel %vm794, %v615, -inf
        %796 = vmax.xlane.f32.xlu0 %v795
        %v797 = vpop.xlane.xlu0 %796
        %v798 = vsel %vm794, %v618, -inf
        %799 = vmax.xlane.f32.xlu0 %v798
        %v800 = vpop.xlane.xlu0 %799
        %v801 = vsub.f32 %v615, %v797
        %v802 = vsub.f32 %v618, %v800
        %v803 = vmul.f32 %v801, 1.442695
        %v804 = vpow.pop %v803
        %v805 = vmul.f32 %v802, 1.442695
        %v806 = vpow.pop %v805
        %809 = vrot.lane.b32.xlu0 %v804, 112
        %v810 = vpop.permute.xlu0 %809
        %811 = vrot.lane.b32.xlu0 %v806, 112
        %v812 = vpop.permute.xlu0 %811
        %v815 = vsel %vm623, %v810, 0.0
        %816 = vadd.xlane.f32.xlu0 %v815
        %v817 = vpop.xlane.xlu0 %816
        %v818 = vsel %vm623, %v812, 0.0
        %819 = vadd.xlane.f32.xlu0 %v818
        %v820 = vpop.xlane.xlu0 %819
        %v821 = vrcp.pop %v817
        %v822 = vmul.f32 %v804, %v821
        %v823 = vrcp.pop %v820
        %v824 = vmul.f32 %v806, %v823
        %vm825 = vcmask 523648
        %v826 = vsel %vm825, %v648, -inf
        %v827 = vsel %vm825, %v649, -inf
        %v828 = vmax.f32 %v826, %v827
        %v829 = vrot.slane %v828, 4
        %v830 = vmax.f32 %v828, %v829
        %v831 = vrot.slane %v830, 2
        %v832 = vmax.f32 %v830, %v831
        %v833 = vrot.slane %v832, 1
        %v834 = vmax.f32 %v832, %v833
        %v835 = vsub.f32 %v648, %v834
        %v836 = vsub.f32 %v649, %v834
        %v837 = vmul.f32 %v835, 1.442695
        %v838 = vpow.pop %v837
        %v839 = vmul.f32 %v836, 1.442695
        %v840 = vpow.pop %v839
        %v841 = vsel %vm825, %v838, 0.0
        %v842 = vsel %vm825, %v840, 0.0
        %v843 = vadd.f32 %v841, %v842
        %v844 = vrot.slane %v843, 4
        %v845 = vadd.f32 %v843, %v844
        %v846 = vrot.slane %v845, 2
        %v847 = vadd.f32 %v845, %v846
        %v848 = vrot.slane %v847, 1
        %v849 = vadd.f32 %v847, %v848
        %v850 = vrcp.pop %v849
        %v851 = vmul.f32 %v838, %v850
        %v852 = vmul.f32 %v840, %v850
        %v853 = vpack.c.bf16 %v852, %v851
        %855 = vrot.lane.b32.xlu0 %v853, 80
        %v856 = vpop.permute.xlu0 %855
        %858 = vxpose.xlu0.c.b16.start [1/8] %v856, 128
        %859 = vxpose.xlu0.c.b16.cont [2/8] 0, 128
        %860 = vxpose.xlu0.c.b16.cont [3/8] 0, 128
        %861 = vxpose.xlu0.c.b16.cont [4/8] 0, 128
        %862 = vxpose.xlu0.c.b16.cont [5/8] 0, 128
        %863 = vxpose.xlu0.c.b16.cont [6/8] 0, 128
        %864 = vxpose.xlu0.c.b16.cont [7/8] 0, 128
        %865 = vxpose.xlu0.c.b16.end [8/8] 0, 128
        %v866 = vpop.trf.xlu0
        %v867 = vpop.trf.xlu0
        %v868 = vpop.trf.xlu0
        %v869 = vpop.trf.xlu0
        %v870 = vpop.trf.xlu0
        %v871 = vpop.trf.xlu0
        %v872 = vpop.trf.xlu0
        %v873 = vpop.trf.xlu0
        %874 = vrot.lane.b32.xlu0 %v679, 48
        %v875 = vpop.permute.xlu0 %874
        %v878 = vsel %vm623, %v866, 0
        %880 = vmatprep.subr.bf16.mxu0 0
        %881 = vmatpush1.bf16.msra.mxu0 0
        %882 = vmatprep.subr.bf16.mxu0 0
        %883 = vmatpush1.bf16.msra.mxu0 0
        %884 = vmatprep.subr.bf16.mxu0 0
        %885 = vmatpush1.bf16.msra.mxu0 0
        %886 = vmatprep.subr.bf16.mxu0 0
        %887 = vmatpush1.bf16.msra.mxu0 0
        %888 = vmatprep.subr.bf16.mxu0 0
        %889 = vmatpush1.bf16.msra.mxu0 0
        %890 = vmatprep.subr.bf16.mxu0 0
        %891 = vmatpush1.bf16.msra.mxu0 0
        %892 = vmatprep.subr.bf16.mxu0 0
        %893 = vmatpush1.bf16.msra.mxu0 0
        %894 = vmatprep.subr.bf16.mxu0 0
        %895 = vmatpush1.bf16.msra.mxu0 %v875
        %896 = vmatprep.subr.bf16.mxu0 0
        %897 = vmatpush2.bf16.msra.mxu0 0
        %898 = vmatprep.subr.bf16.mxu0 0
        %899 = vmatpush2.bf16.msra.mxu0 0
        %900 = vmatprep.subr.bf16.mxu0 0
        %901 = vmatpush2.bf16.msra.mxu0 0
        %902 = vmatprep.subr.bf16.mxu0 0
        %903 = vmatpush2.bf16.msra.mxu0 0
        %904 = vmatprep.subr.bf16.mxu0 0
        %905 = vmatpush2.bf16.msra.mxu0 0
        %906 = vmatprep.subr.bf16.mxu0 0
        %907 = vmatpush2.bf16.msra.mxu0 0
        %908 = vmatprep.subr.bf16.mxu0 0
        %909 = vmatpush2.bf16.msra.mxu0 0
        %910 = vmatprep.subr.bf16.mxu0 0
        %911 = vmatpush2.bf16.msra.mxu0 0
        %912 = vmatprep.mubr.bf16.mxu0 0
        %913 = vmatmul.mubr.bf16.gmra.mxu0 %v878
        %v914 = vpop.f32.mrf.mxu0
        %v915 = vadd.f32 0.0, %v914
        %v916 = vpop.f32.mrf.mxu0
        %v917 = vpop.f32.mrf.mxu0
        %v918 = vadd.f32 0.0, %v917
        %v919 = vpop.f32.mrf.mxu0
        %920 = vdwg.mxu0
        %v921 = vpack.c.bf16 %v824, %v822
        %v922 = vpack.c.bf16 %v918, %v915
        %924 = vrot.lane.b32.xlu0 %v921, 112
        %v925 = vpop.permute.xlu0 %924
        %v927 = vsel %vm623, %v925, 0
        %929 = vmatprep.subr.bf16.mxu0 0
        %930 = vmatpush1.bf16.msra.mxu0 0
        %931 = vmatprep.subr.bf16.mxu0 0
        %932 = vmatpush1.bf16.msra.mxu0 0
        %933 = vmatprep.subr.bf16.mxu0 0
        %934 = vmatpush1.bf16.msra.mxu0 0
        %935 = vmatprep.subr.bf16.mxu0 0
        %936 = vmatpush1.bf16.msra.mxu0 0
        %937 = vmatprep.subr.bf16.mxu0 0
        %938 = vmatpush1.bf16.msra.mxu0 0
        %939 = vmatprep.subr.bf16.mxu0 0
        %940 = vmatpush1.bf16.msra.mxu0 0
        %941 = vmatprep.subr.bf16.mxu0 0
        %942 = vmatpush1.bf16.msra.mxu0 0
        %943 = vmatprep.subr.bf16.mxu0 0
        %944 = vmatpush1.bf16.msra.mxu0 %v922
        %945 = vmatprep.subr.bf16.mxu0 0
        %946 = vmatpush2.bf16.msra.mxu0 0
        %947 = vmatprep.subr.bf16.mxu0 0
        %948 = vmatpush2.bf16.msra.mxu0 0
        %949 = vmatprep.subr.bf16.mxu0 0
        %950 = vmatpush2.bf16.msra.mxu0 0
        %951 = vmatprep.subr.bf16.mxu0 0
        %952 = vmatpush2.bf16.msra.mxu0 0
        %953 = vmatprep.subr.bf16.mxu0 0
        %954 = vmatpush2.bf16.msra.mxu0 0
        %955 = vmatprep.subr.bf16.mxu0 0
        %956 = vmatpush2.bf16.msra.mxu0 0
        %957 = vmatprep.subr.bf16.mxu0 0
        %958 = vmatpush2.bf16.msra.mxu0 0
        %959 = vmatprep.subr.bf16.mxu0 0
        %960 = vmatpush2.bf16.msra.mxu0 0
        %961 = vmatprep.mubr.bf16.mxu0 0
        %962 = vmatmul.mubr.bf16.gmra.mxu0 %v927
        %v963 = vpop.f32.mrf.mxu0
        %v964 = vadd.f32 0.0, %v963
        %v965 = vpop.f32.mrf.mxu0
        %v966 = vpop.f32.mrf.mxu0
        %v967 = vadd.f32 0.0, %v966
        %v968 = vpop.f32.mrf.mxu0
        %969 = vdwg.mxu0
        %972 = vrot.lane.b32.xlu0 %v964, 16
        %v973 = vpop.permute.xlu0 %972
        %974 = vrot.lane.b32.xlu0 %v967, 16
        %v975 = vpop.permute.xlu0 %974
        %v978 = vsel %vm623, %v788, %v973
        %v979 = vsel %vm623, %v791, %v975
        %v980 = vpack.c.bf16 %v979, %v978
        %v981 = vld [vmem:[%s3] sm:$0xf]
        %v982 = vld [vmem:[%s3 + $0x4] sm:$0xf]
        %v983 = vld [vmem:[%s3 + $0x8] sm:$0xf]
        %v984 = vld [vmem:[%s3 + $0xc] sm:$0xf]
        %v985 = vld [vmem:[%s4] sm:$0x1]
        %v987 = vlaneseq
        %v988 = vshrl.u32 %v987, 7
        %v989 = vsub.s32 0, %v988
        %v990 = vrot.slane %v985, %v989
        %v996 = vunpack.c.l.b16 %v981
        %v997 = vunpack.c.l.b16 %v982
        %v998 = vunpack.c.l.b16 %v983
        %v999 = vunpack.c.l.b16 %v984
        %v1000 = vpack.c.b16 %v997, %v996
        %v1001 = vpack.c.b16 %v999, %v998
        %v1005 = vsel %vm576, %v980, 0
        %1007 = vmatprep.subr.bf16.mxu0 0
        %1008 = vmatpush1.bf16.msra.mxu0 0
        %1009 = vmatprep.subr.bf16.mxu0 0
        %1010 = vmatpush1.bf16.msra.mxu0 0
        %1011 = vmatprep.subr.bf16.mxu0 0
        %1012 = vmatpush1.bf16.msra.mxu0 0
        %1013 = vmatprep.subr.bf16.mxu0 0
        %1014 = vmatpush1.bf16.msra.mxu0 0
        %1015 = vmatprep.subr.bf16.mxu0 0
        %1016 = vmatpush1.bf16.msra.mxu0 0
        %1017 = vmatprep.subr.bf16.mxu0 0
        %1018 = vmatpush1.bf16.msra.mxu0 0
        %1019 = vmatprep.subr.bf16.mxu0 0
        %1020 = vmatpush1.bf16.msra.mxu0 %v1001
        %1021 = vmatprep.subr.bf16.mxu0 0
        %1022 = vmatpush1.bf16.msra.mxu0 %v1000
        %1023 = vmatprep.subr.bf16.mxu0 0
        %1024 = vmatpush2.bf16.msra.mxu0 0
        %1025 = vmatprep.subr.bf16.mxu0 0
        %1026 = vmatpush2.bf16.msra.mxu0 0
        %1027 = vmatprep.subr.bf16.mxu0 0
        %1028 = vmatpush2.bf16.msra.mxu0 0
        %1029 = vmatprep.subr.bf16.mxu0 0
        %1030 = vmatpush2.bf16.msra.mxu0 0
        %1031 = vmatprep.subr.bf16.mxu0 0
        %1032 = vmatpush2.bf16.msra.mxu0 0
        %1033 = vmatprep.subr.bf16.mxu0 0
        %1034 = vmatpush2.bf16.msra.mxu0 0
        %1035 = vmatprep.subr.bf16.mxu0 0
        %1036 = vmatpush2.bf16.msra.mxu0 0
        %1037 = vmatprep.subr.bf16.mxu0 0
        %1038 = vmatpush2.bf16.msra.mxu0 0
        %1039 = vmatprep.mubr.bf16.mxu0 0
        %1040 = vmatmul.mubr.bf16.gmra.mxu0 %v1005
        %v1041 = vpop.f32.mrf.mxu0
        %v1042 = vadd.f32 %v990, %v1041
        %v1043 = vpop.f32.mrf.mxu0
        %v1044 = vpop.f32.mrf.mxu0
        %v1045 = vadd.f32 %v990, %v1044
        %v1046 = vpop.f32.mrf.mxu0
        %1047 = vdwg.mxu0
        %v1048 = vadd.f32 %v1042, %v555
        %v1049 = vadd.f32 %v1045, %v556
        %v1050 = vld [vmem:[%s5] sm:$0x1]
        %v1051 = vld [vmem:[%s6] sm:$0x1]
        %v1052 = vsel %vm576, %v1048, 0.0
        %1053 = vadd.xlane.f32.xlu0 %v1052
        %v1054 = vpop.xlane.xlu0 %1053
        %v1055 = vsel %vm576, %v1049, 0.0
        %1056 = vadd.xlane.f32.xlu0 %v1055
        %v1057 = vpop.xlane.xlu0 %1056
        %v1058 = vrcp.pop 32.0
        %v1059 = vmul.f32 %v1054, %v1058
        %v1060 = vmul.f32 %v1057, %v1058
        %v1061 = vsub.f32 %v1048, %v1059
        %v1062 = vsub.f32 %v1049, %v1060
        %v1063 = vmul.f32 %v1061, %v1061
        %v1064 = vmul.f32 %v1062, %v1062
        %v1065 = vsel %vm576, %v1063, 0.0
        %1066 = vadd.xlane.f32.xlu0 %v1065
        %v1067 = vpop.xlane.xlu0 %1066
        %v1068 = vsel %vm576, %v1064, 0.0
        %1069 = vadd.xlane.f32.xlu0 %v1068
        %v1070 = vpop.xlane.xlu0 %1069
        %v1071 = vmul.f32 %v1067, %v1058
        %v1072 = vmul.f32 %v1070, %v1058
        %v1073 = vadd.f32 %v1071, 1e-05
        %v1074 = vadd.f32 %v1072, 1e-05
        %v1075 = vrsqrt.pop %v1073
        %v1076 = vrsqrt.pop %v1074
        %v1077 = vmul.f32 %v1061, %v1075
        %v1078 = vmul.f32 %v1062, %v1076
        %v1080 = vlaneseq
        %v1081 = vshrl.u32 %v1080, 7
        %v1082 = vsub.s32 0, %v1081
        %v1083 = vrot.slane %v1050, %v1082
        %v1085 = vmul.f32 %v1077, %v1083
        %v1086 = vmul.f32 %v1078, %v1083
        %v1088 = vlaneseq
        %v1089 = vshrl.u32 %v1088, 7
        %v1090 = vsub.s32 0, %v1089
        %v1091 = vrot.slane %v1051, %v1090
        %v1093 = vadd.f32 %v1085, %v1091
        %v1094 = vadd.f32 %v1086, %v1091
        %v1095 = vmul.f32 %v1093, %v521
        %v1096 = vmul.f32 %v1094, %v522
        %v1097 = vld [vmem:[%s8] sm:$0x1]
        %v1098 = vrot.slane %v1095, 6
        %v1099 = vrot.slane %v1096, 6
        %vm1100 = vcmp.lt.s32.totalorder %v514, 2
        %v1101 = vsel %vm1100, %v1098, %v1099
        %v1102 = vsel %vm1100, %v1099, %v1098
        %v1103 = vsel %vm529, 1, 0
        %v1104 = vsel %vm530, 1, 0
        %vm1105 = vcmp.eq.s32.totalorder %v1103, 1
        %vm1106 = vcmp.eq.s32.totalorder %v1104, 1
        %v1107 = vsel %vm1105, %v1102, 0.0
        %v1108 = vsel %vm1106, %v1101, 0.0
        %v1109 = vrot.slane %v1095, 7
        %v1110 = vrot.slane %v1096, 7
        %vm1111 = vcmp.lt.s32.totalorder %v514, 1
        %v1112 = vsel %vm1111, %v1109, %v1110
        %v1113 = vsel %vm1111, %v1110, %v1109
        %v1114 = vsel %vm537, 1, 0
        %v1115 = vsel %vm538, 1, 0
        %vm1116 = vcmp.eq.s32.totalorder %v1114, 1
        %vm1117 = vcmp.eq.s32.totalorder %v1115, 1
        %v1118 = vsel %vm1116, %v1113, 0.0
        %v1119 = vsel %vm1117, %v1112, 0.0
        %v1120 = vrot.slane %v1095, 1
        %v1121 = vrot.slane %v1096, 1
        %vm1122 = vcmp.lt.s32.totalorder %v514, 7
        %v1123 = vsel %vm1122, %v1120, %v1121
        %v1124 = vsel %vm1122, %v1121, %v1120
        %v1125 = vsel %vm545, 1, 0
        %v1126 = vsel %vm546, 1, 0
        %vm1127 = vcmp.eq.s32.totalorder %v1125, 1
        %vm1128 = vcmp.eq.s32.totalorder %v1126, 1
        %v1129 = vsel %vm1127, %v1123, 0.0
        %v1130 = vsel %vm1128, %v1124, 0.0
        %v1131 = vrot.slane %v1095, 2
        %v1132 = vrot.slane %v1096, 2
        %vm1133 = vcmp.lt.s32.totalorder %v514, 6
        %v1134 = vsel %vm1133, %v1131, %v1132
        %v1135 = vsel %vm1133, %v1132, %v1131
        %v1136 = vsel %vm553, 1, 0
        %v1137 = vsel %vm554, 1, 0
        %vm1138 = vcmp.eq.s32.totalorder %v1136, 1
        %vm1139 = vcmp.eq.s32.totalorder %v1137, 1
        %v1140 = vsel %vm1138, %v1134, 0.0
        %v1141 = vsel %vm1139, %v1135, 0.0
        %1144 = vrot.lane.b32.xlu0 %v1118, 32
        %v1145 = vpop.permute.xlu0 %1144
        %1146 = vrot.lane.b32.xlu0 %v1119, 32
        %v1147 = vpop.permute.xlu0 %1146
        %1152 = vrot.lane.b32.xlu0 %v1095, 64
        %v1153 = vpop.permute.xlu0 %1152
        %1154 = vrot.lane.b32.xlu0 %v1096, 64
        %v1155 = vpop.permute.xlu0 %1154
        %1160 = vrot.lane.b32.xlu0 %v1129, 96
        %v1161 = vpop.permute.xlu0 %1160
        %1162 = vrot.lane.b32.xlu0 %v1130, 96
        %v1163 = vpop.permute.xlu0 %1162
        %v1166 = vsel %vm576, %v1107, %v1145
        %v1167 = vsel %vm576, %v1108, %v1147
        %vm1168 = vcmask 523264
        %v1169 = vsel %vm1168, %v1166, %v1153
        %v1170 = vsel %vm1168, %v1167, %v1155
        %vm1171 = vcmask 785408
        %v1172 = vsel %vm1171, %v1169, %v1161
        %v1173 = vsel %vm1171, %v1170, %v1163
        %v1174 = vpack.c.bf16 %v1173, %v1172
        %v1175 = vpack.c.bf16 %v1141, %v1140
        %v1176 = vld [vmem:[%s7] sm:$0xf]
        %v1177 = vld [vmem:[%s7 + $0x4] sm:$0xf]
        %v1178 = vld [vmem:[%s7 + $0x8] sm:$0xf]
        %v1179 = vld [vmem:[%s7 + $0xc] sm:$0xf]
        %v1180 = vld [vmem:[%s7 + $0x10] sm:$0xf]
        %v1181 = vld [vmem:[%s7 + $0x14] sm:$0xf]
        %v1182 = vld [vmem:[%s7 + $0x18] sm:$0xf]
        %v1183 = vld [vmem:[%s7 + $0x1c] sm:$0xf]
        %v1184 = vld [vmem:[%s7 + $0x20] sm:$0xf]
        %v1185 = vld [vmem:[%s7 + $0x24] sm:$0xf]
        %v1186 = vld [vmem:[%s7 + $0x28] sm:$0xf]
        %v1187 = vld [vmem:[%s7 + $0x2c] sm:$0xf]
        %v1188 = vld [vmem:[%s7 + $0x30] sm:$0xf]
        %v1189 = vld [vmem:[%s7 + $0x34] sm:$0xf]
        %v1190 = vld [vmem:[%s7 + $0x38] sm:$0xf]
        %v1191 = vld [vmem:[%s7 + $0x3c] sm:$0xf]
        %v1192 = vld [vmem:[%s7 + $0x40] sm:$0xf]
        %v1193 = vld [vmem:[%s7 + $0x44] sm:$0xf]
        %v1194 = vld [vmem:[%s7 + $0x48] sm:$0xf]
        %v1195 = vld [vmem:[%s7 + $0x4c] sm:$0xf]
        %v1197 = vlaneseq
        %v1198 = vshrl.u32 %v1197, 7
        %v1199 = vsub.s32 0, %v1198
        %v1200 = vrot.slane %v1097, %v1199
        %v1222 = vunpack.c.l.b16 %v1176
        %v1223 = vunpack.c.l.b16 %v1177
        %v1224 = vunpack.c.l.b16 %v1178
        %v1225 = vunpack.c.l.b16 %v1179
        %v1226 = vunpack.c.l.b16 %v1180
        %v1227 = vunpack.c.l.b16 %v1181
        %v1228 = vunpack.c.l.b16 %v1182
        %v1229 = vunpack.c.l.b16 %v1183
        %v1230 = vunpack.c.l.b16 %v1184
        %v1231 = vunpack.c.l.b16 %v1185
        %v1232 = vunpack.c.l.b16 %v1186
        %v1233 = vunpack.c.l.b16 %v1187
        %v1234 = vunpack.c.l.b16 %v1188
        %v1235 = vunpack.c.l.b16 %v1189
        %v1236 = vunpack.c.l.b16 %v1190
        %v1237 = vunpack.c.l.b16 %v1191
        %v1238 = vunpack.c.l.b16 %v1192
        %v1239 = vunpack.c.l.b16 %v1193
        %v1240 = vunpack.c.l.b16 %v1194
        %v1241 = vunpack.c.l.b16 %v1195
        %v1242 = vpack.c.b16 %v1223, %v1222
        %v1243 = vpack.c.b16 %v1225, %v1224
        %v1244 = vpack.c.b16 %v1227, %v1226
        %v1245 = vpack.c.b16 %v1229, %v1228
        %v1246 = vpack.c.b16 %v1231, %v1230
        %v1247 = vpack.c.b16 %v1233, %v1232
        %v1248 = vpack.c.b16 %v1235, %v1234
        %v1249 = vpack.c.b16 %v1237, %v1236
        %v1250 = vpack.c.b16 %v1239, %v1238
        %v1251 = vpack.c.b16 %v1241, %v1240
        %v1263 = vsel %vm576, %v1175, 0
        %1265 = vmatprep.subr.bf16.mxu0 0
        %1266 = vmatpush1.bf16.msra.mxu0 %v1249
        %1267 = vmatprep.subr.bf16.mxu0 0
        %1268 = vmatpush1.bf16.msra.mxu0 %v1248
        %1269 = vmatprep.subr.bf16.mxu0 0
        %1270 = vmatpush1.bf16.msra.mxu0 %v1247
        %1271 = vmatprep.subr.bf16.mxu0 0
        %1272 = vmatpush1.bf16.msra.mxu0 %v1246
        %1273 = vmatprep.subr.bf16.mxu0 0
        %1274 = vmatpush1.bf16.msra.mxu0 %v1245
        %1275 = vmatprep.subr.bf16.mxu0 0
        %1276 = vmatpush1.bf16.msra.mxu0 %v1244
        %1277 = vmatprep.subr.bf16.mxu0 0
        %1278 = vmatpush1.bf16.msra.mxu0 %v1243
        %1279 = vmatprep.subr.bf16.mxu0 0
        %1280 = vmatpush1.bf16.msra.mxu0 %v1242
        %1281 = vmatprep.subr.bf16.mxu0 0
        %1282 = vmatpush2.bf16.msra.mxu0 0
        %1283 = vmatprep.subr.bf16.mxu0 0
        %1284 = vmatpush2.bf16.msra.mxu0 0
        %1285 = vmatprep.subr.bf16.mxu0 0
        %1286 = vmatpush2.bf16.msra.mxu0 0
        %1287 = vmatprep.subr.bf16.mxu0 0
        %1288 = vmatpush2.bf16.msra.mxu0 0
        %1289 = vmatprep.subr.bf16.mxu0 0
        %1290 = vmatpush2.bf16.msra.mxu0 0
        %1291 = vmatprep.subr.bf16.mxu0 0
        %1292 = vmatpush2.bf16.msra.mxu0 0
        %1293 = vmatprep.subr.bf16.mxu0 0
        %1294 = vmatpush2.bf16.msra.mxu0 %v1251
        %1295 = vmatprep.subr.bf16.mxu0 0
        %1296 = vmatpush2.bf16.msra.mxu0 %v1250
        %1297 = vmatprep.mubr.bf16.mxu0 %v1263
        %1298 = vmatmul.mubr.bf16.gmra.mxu0 %v1174
        %v1299 = vpop.f32.mrf.mxu0
        %v1300 = vadd.f32 %v1200, %v1299
        %v1301 = vpop.f32.mrf.mxu0
        %v1302 = vpop.f32.mrf.mxu0
        %v1303 = vadd.f32 %v1200, %v1302
        %v1304 = vpop.f32.mrf.mxu0
        %1305 = vdwg.mxu0
        %v1306 = vmax.f32 %v1300, 0.0
        %v1307 = vmax.f32 %v1303, 0.0
        %v1308 = vmul.f32 %v1306, %v521
        %v1309 = vmul.f32 %v1307, %v522
        %v1310 = vld [vmem:[%s10] sm:$0x1]
        %v1311 = vrot.slane %v1308, 6
        %v1312 = vrot.slane %v1309, 6
        %v1313 = vsel %vm1100, %v1311, %v1312
        %v1314 = vsel %vm1100, %v1312, %v1311
        %v1315 = vsel %vm1105, %v1314, 0.0
        %v1316 = vsel %vm1106, %v1313, 0.0
        %v1317 = vrot.slane %v1308, 7
        %v1318 = vrot.slane %v1309, 7
        %v1319 = vsel %vm1111, %v1317, %v1318
        %v1320 = vsel %vm1111, %v1318, %v1317
        %v1321 = vsel %vm1116, %v1320, 0.0
        %v1322 = vsel %vm1117, %v1319, 0.0
        %v1323 = vrot.slane %v1308, 1
        %v1324 = vrot.slane %v1309, 1
        %v1325 = vsel %vm1122, %v1323, %v1324
        %v1326 = vsel %vm1122, %v1324, %v1323
        %v1327 = vsel %vm1127, %v1325, 0.0
        %v1328 = vsel %vm1128, %v1326, 0.0
        %v1329 = vrot.slane %v1308, 2
        %v1330 = vrot.slane %v1309, 2
        %v1331 = vsel %vm1133, %v1329, %v1330
        %v1332 = vsel %vm1133, %v1330, %v1329
        %v1333 = vsel %vm1138, %v1331, 0.0
        %v1334 = vsel %vm1139, %v1332, 0.0
        %1337 = vrot.lane.b32.xlu0 %v1321, 32
        %v1338 = vpop.permute.xlu0 %1337
        %1339 = vrot.lane.b32.xlu0 %v1322, 32
        %v1340 = vpop.permute.xlu0 %1339
        %1345 = vrot.lane.b32.xlu0 %v1308, 64
        %v1346 = vpop.permute.xlu0 %1345
        %1347 = vrot.lane.b32.xlu0 %v1309, 64
        %v1348 = vpop.permute.xlu0 %1347
        %1353 = vrot.lane.b32.xlu0 %v1327, 96
        %v1354 = vpop.permute.xlu0 %1353
        %1355 = vrot.lane.b32.xlu0 %v1328, 96
        %v1356 = vpop.permute.xlu0 %1355
        %v1359 = vsel %vm576, %v1315, %v1338
        %v1360 = vsel %vm576, %v1316, %v1340
        %v1361 = vsel %vm1168, %v1359, %v1346
        %v1362 = vsel %vm1168, %v1360, %v1348
        %v1363 = vsel %vm1171, %v1361, %v1354
        %v1364 = vsel %vm1171, %v1362, %v1356
        %v1365 = vpack.c.bf16 %v1364, %v1363
        %v1366 = vpack.c.bf16 %v1334, %v1333
        %v1367 = vld [vmem:[%s9] sm:$0xf]
        %v1368 = vld [vmem:[%s9 + $0x4] sm:$0xf]
        %v1369 = vld [vmem:[%s9 + $0x8] sm:$0xf]
        %v1370 = vld [vmem:[%s9 + $0xc] sm:$0xf]
        %v1371 = vld [vmem:[%s9 + $0x10] sm:$0xf]
        %v1372 = vld [vmem:[%s9 + $0x14] sm:$0xf]
        %v1373 = vld [vmem:[%s9 + $0x18] sm:$0xf]
        %v1374 = vld [vmem:[%s9 + $0x1c] sm:$0xf]
        %v1375 = vld [vmem:[%s9 + $0x20] sm:$0xf]
        %v1376 = vld [vmem:[%s9 + $0x24] sm:$0xf]
        %v1377 = vld [vmem:[%s9 + $0x28] sm:$0xf]
        %v1378 = vld [vmem:[%s9 + $0x2c] sm:$0xf]
        %v1379 = vld [vmem:[%s9 + $0x30] sm:$0xf]
        %v1380 = vld [vmem:[%s9 + $0x34] sm:$0xf]
        %v1381 = vld [vmem:[%s9 + $0x38] sm:$0xf]
        %v1382 = vld [vmem:[%s9 + $0x3c] sm:$0xf]
        %v1383 = vld [vmem:[%s9 + $0x40] sm:$0xf]
        %v1384 = vld [vmem:[%s9 + $0x44] sm:$0xf]
        %v1385 = vld [vmem:[%s9 + $0x48] sm:$0xf]
        %v1386 = vld [vmem:[%s9 + $0x4c] sm:$0xf]
        %v1388 = vlaneseq
        %v1389 = vshrl.u32 %v1388, 7
        %v1390 = vsub.s32 0, %v1389
        %v1391 = vrot.slane %v1310, %v1390
        %v1413 = vunpack.c.l.b16 %v1367
        %v1414 = vunpack.c.l.b16 %v1368
        %v1415 = vunpack.c.l.b16 %v1369
        %v1416 = vunpack.c.l.b16 %v1370
        %v1417 = vunpack.c.l.b16 %v1371
        %v1418 = vunpack.c.l.b16 %v1372
        %v1419 = vunpack.c.l.b16 %v1373
        %v1420 = vunpack.c.l.b16 %v1374
        %v1421 = vunpack.c.l.b16 %v1375
        %v1422 = vunpack.c.l.b16 %v1376
        %v1423 = vunpack.c.l.b16 %v1377
        %v1424 = vunpack.c.l.b16 %v1378
        %v1425 = vunpack.c.l.b16 %v1379
        %v1426 = vunpack.c.l.b16 %v1380
        %v1427 = vunpack.c.l.b16 %v1381
        %v1428 = vunpack.c.l.b16 %v1382
        %v1429 = vunpack.c.l.b16 %v1383
        %v1430 = vunpack.c.l.b16 %v1384
        %v1431 = vunpack.c.l.b16 %v1385
        %v1432 = vunpack.c.l.b16 %v1386
        %v1433 = vpack.c.b16 %v1414, %v1413
        %v1434 = vpack.c.b16 %v1416, %v1415
        %v1435 = vpack.c.b16 %v1418, %v1417
        %v1436 = vpack.c.b16 %v1420, %v1419
        %v1437 = vpack.c.b16 %v1422, %v1421
        %v1438 = vpack.c.b16 %v1424, %v1423
        %v1439 = vpack.c.b16 %v1426, %v1425
        %v1440 = vpack.c.b16 %v1428, %v1427
        %v1441 = vpack.c.b16 %v1430, %v1429
        %v1442 = vpack.c.b16 %v1432, %v1431
        %v1454 = vsel %vm576, %v1366, 0
        %1456 = vmatprep.subr.bf16.mxu0 0
        %1457 = vmatpush1.bf16.msra.mxu0 %v1440
        %1458 = vmatprep.subr.bf16.mxu0 0
        %1459 = vmatpush1.bf16.msra.mxu0 %v1439
        %1460 = vmatprep.subr.bf16.mxu0 0
        %1461 = vmatpush1.bf16.msra.mxu0 %v1438
        %1462 = vmatprep.subr.bf16.mxu0 0
        %1463 = vmatpush1.bf16.msra.mxu0 %v1437
        %1464 = vmatprep.subr.bf16.mxu0 0
        %1465 = vmatpush1.bf16.msra.mxu0 %v1436
        %1466 = vmatprep.subr.bf16.mxu0 0
        %1467 = vmatpush1.bf16.msra.mxu0 %v1435
        %1468 = vmatprep.subr.bf16.mxu0 0
        %1469 = vmatpush1.bf16.msra.mxu0 %v1434
        %1470 = vmatprep.subr.bf16.mxu0 0
        %1471 = vmatpush1.bf16.msra.mxu0 %v1433
        %1472 = vmatprep.subr.bf16.mxu0 0
        %1473 = vmatpush2.bf16.msra.mxu0 0
        %1474 = vmatprep.subr.bf16.mxu0 0
        %1475 = vmatpush2.bf16.msra.mxu0 0
        %1476 = vmatprep.subr.bf16.mxu0 0
        %1477 = vmatpush2.bf16.msra.mxu0 0
        %1478 = vmatprep.subr.bf16.mxu0 0
        %1479 = vmatpush2.bf16.msra.mxu0 0
        %1480 = vmatprep.subr.bf16.mxu0 0
        %1481 = vmatpush2.bf16.msra.mxu0 0
        %1482 = vmatprep.subr.bf16.mxu0 0
        %1483 = vmatpush2.bf16.msra.mxu0 0
        %1484 = vmatprep.subr.bf16.mxu0 0
        %1485 = vmatpush2.bf16.msra.mxu0 %v1442
        %1486 = vmatprep.subr.bf16.mxu0 0
        %1487 = vmatpush2.bf16.msra.mxu0 %v1441
        %1488 = vmatprep.mubr.bf16.mxu0 %v1454
        %1489 = vmatmul.mubr.bf16.gmra.mxu0 %v1365
        %v1490 = vpop.f32.mrf.mxu0
        %v1491 = vadd.f32 %v1391, %v1490
        %v1492 = vpop.f32.mrf.mxu0
        %v1493 = vpop.f32.mrf.mxu0
        %v1494 = vadd.f32 %v1391, %v1493
        %v1495 = vpop.f32.mrf.mxu0
        %1496 = vdwg.mxu0
        %v1497 = vadd.f32 %v1491, %v1093
        %v1498 = vadd.f32 %v1494, %v1094
        %v1499 = vld [vmem:[%s11] sm:$0x1]
        %v1500 = vld [vmem:[%s12] sm:$0x1]
        %v1501 = vsel %vm576, %v1497, 0.0
        %1502 = vadd.xlane.f32.xlu0 %v1501
        %v1503 = vpop.xlane.xlu0 %1502
        %v1504 = vsel %vm576, %v1498, 0.0
        %1505 = vadd.xlane.f32.xlu0 %v1504
        %v1506 = vpop.xlane.xlu0 %1505
        %v1507 = vmul.f32 %v1503, %v1058
        %v1508 = vmul.f32 %v1506, %v1058
        %v1509 = vsub.f32 %v1497, %v1507
        %v1510 = vsub.f32 %v1498, %v1508
        %v1511 = vmul.f32 %v1509, %v1509
        %v1512 = vmul.f32 %v1510, %v1510
        %v1513 = vsel %vm576, %v1511, 0.0
        %1514 = vadd.xlane.f32.xlu0 %v1513
        %v1515 = vpop.xlane.xlu0 %1514
        %v1516 = vsel %vm576, %v1512, 0.0
        %1517 = vadd.xlane.f32.xlu0 %v1516
        %v1518 = vpop.xlane.xlu0 %1517
        %v1519 = vmul.f32 %v1515, %v1058
        %v1520 = vmul.f32 %v1518, %v1058
        %v1521 = vadd.f32 %v1519, 1e-05
        %v1522 = vadd.f32 %v1520, 1e-05
        %v1523 = vrsqrt.pop %v1521
        %v1524 = vrsqrt.pop %v1522
        %v1525 = vmul.f32 %v1509, %v1523
        %v1526 = vmul.f32 %v1510, %v1524
        %v1528 = vlaneseq
        %v1529 = vshrl.u32 %v1528, 7
        %v1530 = vsub.s32 0, %v1529
        %v1531 = vrot.slane %v1499, %v1530
        %v1533 = vmul.f32 %v1525, %v1531
        %v1534 = vmul.f32 %v1526, %v1531
        %v1536 = vlaneseq
        %v1537 = vshrl.u32 %v1536, 7
        %v1538 = vsub.s32 0, %v1537
        %v1539 = vrot.slane %v1500, %v1538
        %v1541 = vadd.f32 %v1533, %v1539
        %v1542 = vadd.f32 %v1534, %v1539
        %v1543 = vmul.f32 %v1541, %v521
        %v1544 = vmul.f32 %v1542, %v522
        %v1545 = vmul.f32 %v1543, %v521
        %v1546 = vmul.f32 %v1544, %v522
        %v1547 = vpack.c.bf16 %v1546, %v1545
        %s1548 = scalar_lea.vmem %s2, 16
        %v1549 = vld [vmem:[%s1548] sm:$0xf]
        %v1550 = vld [vmem:[%s1548 + $0x4] sm:$0xf]
        %v1551 = vld [vmem:[%s1548 + $0x8] sm:$0xf]
        %v1552 = vld [vmem:[%s1548 + $0xc] sm:$0xf]
        %v1557 = vunpack.c.l.b16 %v1549
        %v1558 = vunpack.c.l.b16 %v1550
        %v1559 = vunpack.c.l.b16 %v1551
        %v1560 = vunpack.c.l.b16 %v1552
        %v1561 = vpack.c.b16 %v1558, %v1557
        %v1562 = vpack.c.b16 %v1560, %v1559
        %v1566 = vsel %vm576, %v1547, 0
        %1568 = vmatprep.subr.bf16.mxu0 0
        %1569 = vmatpush1.bf16.msra.mxu0 0
        %1570 = vmatprep.subr.bf16.mxu0 0
        %1571 = vmatpush1.bf16.msra.mxu0 0
        %1572 = vmatprep.subr.bf16.mxu0 0
        %1573 = vmatpush1.bf16.msra.mxu0 0
        %1574 = vmatprep.subr.bf16.mxu0 0
        %1575 = vmatpush1.bf16.msra.mxu0 0
        %1576 = vmatprep.subr.bf16.mxu0 0
        %1577 = vmatpush1.bf16.msra.mxu0 0
        %1578 = vmatprep.subr.bf16.mxu0 0
        %1579 = vmatpush1.bf16.msra.mxu0 0
        %1580 = vmatprep.subr.bf16.mxu0 0
        %1581 = vmatpush1.bf16.msra.mxu0 %v1562
        %1582 = vmatprep.subr.bf16.mxu0 0
        %1583 = vmatpush1.bf16.msra.mxu0 %v1561
        %1584 = vmatprep.subr.bf16.mxu0 0
        %1585 = vmatpush2.bf16.msra.mxu0 0
        %1586 = vmatprep.subr.bf16.mxu0 0
        %1587 = vmatpush2.bf16.msra.mxu0 0
        %1588 = vmatprep.subr.bf16.mxu0 0
        %1589 = vmatpush2.bf16.msra.mxu0 0
        %1590 = vmatprep.subr.bf16.mxu0 0
        %1591 = vmatpush2.bf16.msra.mxu0 0
        %1592 = vmatprep.subr.bf16.mxu0 0
        %1593 = vmatpush2.bf16.msra.mxu0 0
        %1594 = vmatprep.subr.bf16.mxu0 0
        %1595 = vmatpush2.bf16.msra.mxu0 0
        %1596 = vmatprep.subr.bf16.mxu0 0
        %1597 = vmatpush2.bf16.msra.mxu0 0
        %1598 = vmatprep.subr.bf16.mxu0 0
        %1599 = vmatpush2.bf16.msra.mxu0 0
        %1600 = vmatprep.mubr.bf16.mxu0 0
        %1601 = vmatmul.mubr.bf16.gmra.mxu0 %v1566
        %v1602 = vpop.f32.mrf.mxu0
        %v1603 = vadd.f32 0.0, %v1602
        %v1604 = vpop.f32.mrf.mxu0
        %v1605 = vpop.f32.mrf.mxu0
        %v1606 = vadd.f32 0.0, %v1605
        %v1607 = vpop.f32.mrf.mxu0
        %1608 = vdwg.mxu0
        %v1609 = vmul.f32 %v1603, %v521
        %v1610 = vmul.f32 %v1606, %v522
        %v1611 = vsel %vm623, %v1603, -inf
        %1612 = vmax.xlane.f32.xlu0 %v1611
        %v1613 = vpop.xlane.xlu0 %1612
        %v1614 = vsel %vm623, %v1606, -inf
        %1615 = vmax.xlane.f32.xlu0 %v1614
        %v1616 = vpop.xlane.xlu0 %1615
        %v1617 = vsub.f32 %v1603, %v1613
        %v1618 = vsub.f32 %v1606, %v1616
        %v1619 = vmul.f32 %v1617, 1.442695
        %v1620 = vpow.pop %v1619
        %v1621 = vmul.f32 %v1618, 1.442695
        %v1622 = vpow.pop %v1621
        %v1623 = vsel %vm623, %v1620, 0.0
        %1624 = vadd.xlane.f32.xlu0 %v1623
        %v1625 = vpop.xlane.xlu0 %1624
        %v1626 = vsel %vm623, %v1622, 0.0
        %1627 = vadd.xlane.f32.xlu0 %v1626
        %v1628 = vpop.xlane.xlu0 %1627
        %v1629 = vrcp.pop %v1625
        %v1630 = vmul.f32 %v1620, %v1629
        %v1631 = vrcp.pop %v1628
        %v1632 = vmul.f32 %v1622, %v1631
        %v1633 = vsel %vm646, %v1603, -1e+09
        %v1634 = vsel %vm647, %v1606, -1e+09
        %v1635 = vsel %vm650, %v1633, -inf
        %v1636 = vsel %vm650, %v1634, -inf
        %v1637 = vmax.f32 %v1635, %v1636
        %v1638 = vrot.slane %v1637, 4
        %v1639 = vmax.f32 %v1637, %v1638
        %v1640 = vrot.slane %v1639, 2
        %v1641 = vmax.f32 %v1639, %v1640
        %v1642 = vrot.slane %v1641, 1
        %v1643 = vmax.f32 %v1641, %v1642
        %v1644 = vsub.f32 %v1633, %v1643
        %v1645 = vsub.f32 %v1634, %v1643
        %v1646 = vmul.f32 %v1644, 1.442695
        %v1647 = vpow.pop %v1646
        %v1648 = vmul.f32 %v1645, 1.442695
        %v1649 = vpow.pop %v1648
        %v1650 = vsel %vm650, %v1647, 0.0
        %v1651 = vsel %vm650, %v1649, 0.0
        %v1652 = vadd.f32 %v1650, %v1651
        %v1653 = vrot.slane %v1652, 4
        %v1654 = vadd.f32 %v1652, %v1653
        %v1655 = vrot.slane %v1654, 2
        %v1656 = vadd.f32 %v1654, %v1655
        %v1657 = vrot.slane %v1656, 1
        %v1658 = vadd.f32 %v1656, %v1657
        %v1659 = vrcp.pop %v1658
        %v1660 = vmul.f32 %v1647, %v1659
        %v1661 = vmul.f32 %v1649, %v1659
        %v1662 = vpack.c.bf16 %v1661, %v1660
        %v1663 = vpack.c.bf16 %v1610, %v1609
        %1665 = vrot.lane.b32.xlu0 %v1662, 96
        %v1666 = vpop.permute.xlu0 %1665
        %1668 = vxpose.xlu0.c.b16.start [1/8] %v1666, 128
        %1669 = vxpose.xlu0.c.b16.cont [2/8] 0, 128
        %1670 = vxpose.xlu0.c.b16.cont [3/8] 0, 128
        %1671 = vxpose.xlu0.c.b16.cont [4/8] 0, 128
        %1672 = vxpose.xlu0.c.b16.cont [5/8] 0, 128
        %1673 = vxpose.xlu0.c.b16.cont [6/8] 0, 128
        %1674 = vxpose.xlu0.c.b16.cont [7/8] 0, 128
        %1675 = vxpose.xlu0.c.b16.end [8/8] 0, 128
        %v1676 = vpop.trf.xlu0
        %v1677 = vpop.trf.xlu0
        %v1678 = vpop.trf.xlu0
        %v1679 = vpop.trf.xlu0
        %v1680 = vpop.trf.xlu0
        %v1681 = vpop.trf.xlu0
        %v1682 = vpop.trf.xlu0
        %v1683 = vpop.trf.xlu0
        %1685 = vrot.lane.b32.xlu0 %v1663, 64
        %v1686 = vpop.permute.xlu0 %1685
        %v1689 = vsel %vm623, %v1676, 0
        %1691 = vmatprep.subr.bf16.mxu0 0
        %1692 = vmatpush1.bf16.msra.mxu0 0
        %1693 = vmatprep.subr.bf16.mxu0 0
        %1694 = vmatpush1.bf16.msra.mxu0 0
        %1695 = vmatprep.subr.bf16.mxu0 0
        %1696 = vmatpush1.bf16.msra.mxu0 0
        %1697 = vmatprep.subr.bf16.mxu0 0
        %1698 = vmatpush1.bf16.msra.mxu0 0
        %1699 = vmatprep.subr.bf16.mxu0 0
        %1700 = vmatpush1.bf16.msra.mxu0 0
        %1701 = vmatprep.subr.bf16.mxu0 0
        %1702 = vmatpush1.bf16.msra.mxu0 0
        %1703 = vmatprep.subr.bf16.mxu0 0
        %1704 = vmatpush1.bf16.msra.mxu0 0
        %1705 = vmatprep.subr.bf16.mxu0 0
        %1706 = vmatpush1.bf16.msra.mxu0 %v1686
        %1707 = vmatprep.subr.bf16.mxu0 0
        %1708 = vmatpush2.bf16.msra.mxu0 0
        %1709 = vmatprep.subr.bf16.mxu0 0
        %1710 = vmatpush2.bf16.msra.mxu0 0
        %1711 = vmatprep.subr.bf16.mxu0 0
        %1712 = vmatpush2.bf16.msra.mxu0 0
        %1713 = vmatprep.subr.bf16.mxu0 0
        %1714 = vmatpush2.bf16.msra.mxu0 0
        %1715 = vmatprep.subr.bf16.mxu0 0
        %1716 = vmatpush2.bf16.msra.mxu0 0
        %1717 = vmatprep.subr.bf16.mxu0 0
        %1718 = vmatpush2.bf16.msra.mxu0 0
        %1719 = vmatprep.subr.bf16.mxu0 0
        %1720 = vmatpush2.bf16.msra.mxu0 0
        %1721 = vmatprep.subr.bf16.mxu0 0
        %1722 = vmatpush2.bf16.msra.mxu0 0
        %1723 = vmatprep.mubr.bf16.mxu0 0
        %1724 = vmatmul.mubr.bf16.gmra.mxu0 %v1689
        %v1725 = vpop.f32.mrf.mxu0
        %v1726 = vadd.f32 0.0, %v1725
        %v1727 = vpop.f32.mrf.mxu0
        %v1728 = vpop.f32.mrf.mxu0
        %v1729 = vadd.f32 0.0, %v1728
        %v1730 = vpop.f32.mrf.mxu0
        %1731 = vdwg.mxu0
        %v1732 = vpack.c.bf16 %v1632, %v1630
        %v1733 = vpack.c.bf16 %v1729, %v1726
        %v1735 = vsel %vm623, %v1732, 0
        %1737 = vmatprep.subr.bf16.mxu0 0
        %1738 = vmatpush1.bf16.msra.mxu0 0
        %1739 = vmatprep.subr.bf16.mxu0 0
        %1740 = vmatpush1.bf16.msra.mxu0 0
        %1741 = vmatprep.subr.bf16.mxu0 0
        %1742 = vmatpush1.bf16.msra.mxu0 0
        %1743 = vmatprep.subr.bf16.mxu0 0
        %1744 = vmatpush1.bf16.msra.mxu0 0
        %1745 = vmatprep.subr.bf16.mxu0 0
        %1746 = vmatpush1.bf16.msra.mxu0 0
        %1747 = vmatprep.subr.bf16.mxu0 0
        %1748 = vmatpush1.bf16.msra.mxu0 0
        %1749 = vmatprep.subr.bf16.mxu0 0
        %1750 = vmatpush1.bf16.msra.mxu0 0
        %1751 = vmatprep.subr.bf16.mxu0 0
        %1752 = vmatpush1.bf16.msra.mxu0 %v1733
        %1753 = vmatprep.subr.bf16.mxu0 0
        %1754 = vmatpush2.bf16.msra.mxu0 0
        %1755 = vmatprep.subr.bf16.mxu0 0
        %1756 = vmatpush2.bf16.msra.mxu0 0
        %1757 = vmatprep.subr.bf16.mxu0 0
        %1758 = vmatpush2.bf16.msra.mxu0 0
        %1759 = vmatprep.subr.bf16.mxu0 0
        %1760 = vmatpush2.bf16.msra.mxu0 0
        %1761 = vmatprep.subr.bf16.mxu0 0
        %1762 = vmatpush2.bf16.msra.mxu0 0
        %1763 = vmatprep.subr.bf16.mxu0 0
        %1764 = vmatpush2.bf16.msra.mxu0 0
        %1765 = vmatprep.subr.bf16.mxu0 0
        %1766 = vmatpush2.bf16.msra.mxu0 0
        %1767 = vmatprep.subr.bf16.mxu0 0
        %1768 = vmatpush2.bf16.msra.mxu0 0
        %1769 = vmatprep.mubr.bf16.mxu0 0
        %1770 = vmatmul.mubr.bf16.gmra.mxu0 %v1735
        %v1771 = vpop.f32.mrf.mxu0
        %v1772 = vadd.f32 0.0, %v1771
        %v1773 = vpop.f32.mrf.mxu0
        %v1774 = vpop.f32.mrf.mxu0
        %v1775 = vadd.f32 0.0, %v1774
        %v1776 = vpop.f32.mrf.mxu0
        %1777 = vdwg.mxu0
        %v1778 = vsel %vm794, %v1603, -inf
        %1779 = vmax.xlane.f32.xlu0 %v1778
        %v1780 = vpop.xlane.xlu0 %1779
        %v1781 = vsel %vm794, %v1606, -inf
        %1782 = vmax.xlane.f32.xlu0 %v1781
        %v1783 = vpop.xlane.xlu0 %1782
        %v1784 = vsub.f32 %v1603, %v1780
        %v1785 = vsub.f32 %v1606, %v1783
        %v1786 = vmul.f32 %v1784, 1.442695
        %v1787 = vpow.pop %v1786
        %v1788 = vmul.f32 %v1785, 1.442695
        %v1789 = vpow.pop %v1788
        %1792 = vrot.lane.b32.xlu0 %v1787, 112
        %v1793 = vpop.permute.xlu0 %1792
        %1794 = vrot.lane.b32.xlu0 %v1789, 112
        %v1795 = vpop.permute.xlu0 %1794
        %v1798 = vsel %vm623, %v1793, 0.0
        %1799 = vadd.xlane.f32.xlu0 %v1798
        %v1800 = vpop.xlane.xlu0 %1799
        %v1801 = vsel %vm623, %v1795, 0.0
        %1802 = vadd.xlane.f32.xlu0 %v1801
        %v1803 = vpop.xlane.xlu0 %1802
        %v1804 = vrcp.pop %v1800
        %v1805 = vmul.f32 %v1787, %v1804
        %v1806 = vrcp.pop %v1803
        %v1807 = vmul.f32 %v1789, %v1806
        %v1808 = vsel %vm825, %v1633, -inf
        %v1809 = vsel %vm825, %v1634, -inf
        %v1810 = vmax.f32 %v1808, %v1809
        %v1811 = vrot.slane %v1810, 4
        %v1812 = vmax.f32 %v1810, %v1811
        %v1813 = vrot.slane %v1812, 2
        %v1814 = vmax.f32 %v1812, %v1813
        %v1815 = vrot.slane %v1814, 1
        %v1816 = vmax.f32 %v1814, %v1815
        %v1817 = vsub.f32 %v1633, %v1816
        %v1818 = vsub.f32 %v1634, %v1816
        %v1819 = vmul.f32 %v1817, 1.442695
        %v1820 = vpow.pop %v1819
        %v1821 = vmul.f32 %v1818, 1.442695
        %v1822 = vpow.pop %v1821
        %v1823 = vsel %vm825, %v1820, 0.0
        %v1824 = vsel %vm825, %v1822, 0.0
        %v1825 = vadd.f32 %v1823, %v1824
        %v1826 = vrot.slane %v1825, 4
        %v1827 = vadd.f32 %v1825, %v1826
        %v1828 = vrot.slane %v1827, 2
        %v1829 = vadd.f32 %v1827, %v1828
        %v1830 = vrot.slane %v1829, 1
        %v1831 = vadd.f32 %v1829, %v1830
        %v1832 = vrcp.pop %v1831
        %v1833 = vmul.f32 %v1820, %v1832
        %v1834 = vmul.f32 %v1822, %v1832
        %v1835 = vpack.c.bf16 %v1834, %v1833
        %1837 = vrot.lane.b32.xlu0 %v1835, 80
        %v1838 = vpop.permute.xlu0 %1837
        %1840 = vxpose.xlu0.c.b16.start [1/8] %v1838, 128
        %1841 = vxpose.xlu0.c.b16.cont [2/8] 0, 128
        %1842 = vxpose.xlu0.c.b16.cont [3/8] 0, 128
        %1843 = vxpose.xlu0.c.b16.cont [4/8] 0, 128
        %1844 = vxpose.xlu0.c.b16.cont [5/8] 0, 128
        %1845 = vxpose.xlu0.c.b16.cont [6/8] 0, 128
        %1846 = vxpose.xlu0.c.b16.cont [7/8] 0, 128
        %1847 = vxpose.xlu0.c.b16.end [8/8] 0, 128
        %v1848 = vpop.trf.xlu0
        %v1849 = vpop.trf.xlu0
        %v1850 = vpop.trf.xlu0
        %v1851 = vpop.trf.xlu0
        %v1852 = vpop.trf.xlu0
        %v1853 = vpop.trf.xlu0
        %v1854 = vpop.trf.xlu0
        %v1855 = vpop.trf.xlu0
        %1856 = vrot.lane.b32.xlu0 %v1663, 48
        %v1857 = vpop.permute.xlu0 %1856
        %v1860 = vsel %vm623, %v1848, 0
        %1862 = vmatprep.subr.bf16.mxu0 0
        %1863 = vmatpush1.bf16.msra.mxu0 0
        %1864 = vmatprep.subr.bf16.mxu0 0
        %1865 = vmatpush1.bf16.msra.mxu0 0
        %1866 = vmatprep.subr.bf16.mxu0 0
        %1867 = vmatpush1.bf16.msra.mxu0 0
        %1868 = vmatprep.subr.bf16.mxu0 0
        %1869 = vmatpush1.bf16.msra.mxu0 0
        %1870 = vmatprep.subr.bf16.mxu0 0
        %1871 = vmatpush1.bf16.msra.mxu0 0
        %1872 = vmatprep.subr.bf16.mxu0 0
        %1873 = vmatpush1.bf16.msra.mxu0 0
        %1874 = vmatprep.subr.bf16.mxu0 0
        %1875 = vmatpush1.bf16.msra.mxu0 0
        %1876 = vmatprep.subr.bf16.mxu0 0
        %1877 = vmatpush1.bf16.msra.mxu0 %v1857
        %1878 = vmatprep.subr.bf16.mxu0 0
        %1879 = vmatpush2.bf16.msra.mxu0 0
        %1880 = vmatprep.subr.bf16.mxu0 0
        %1881 = vmatpush2.bf16.msra.mxu0 0
        %1882 = vmatprep.subr.bf16.mxu0 0
        %1883 = vmatpush2.bf16.msra.mxu0 0
        %1884 = vmatprep.subr.bf16.mxu0 0
        %1885 = vmatpush2.bf16.msra.mxu0 0
        %1886 = vmatprep.subr.bf16.mxu0 0
        %1887 = vmatpush2.bf16.msra.mxu0 0
        %1888 = vmatprep.subr.bf16.mxu0 0
        %1889 = vmatpush2.bf16.msra.mxu0 0
        %1890 = vmatprep.subr.bf16.mxu0 0
        %1891 = vmatpush2.bf16.msra.mxu0 0
        %1892 = vmatprep.subr.bf16.mxu0 0
        %1893 = vmatpush2.bf16.msra.mxu0 0
        %1894 = vmatprep.mubr.bf16.mxu0 0
        %1895 = vmatmul.mubr.bf16.gmra.mxu0 %v1860
        %v1896 = vpop.f32.mrf.mxu0
        %v1897 = vadd.f32 0.0, %v1896
        %v1898 = vpop.f32.mrf.mxu0
        %v1899 = vpop.f32.mrf.mxu0
        %v1900 = vadd.f32 0.0, %v1899
        %v1901 = vpop.f32.mrf.mxu0
        %1902 = vdwg.mxu0
        %v1903 = vpack.c.bf16 %v1807, %v1805
        %v1904 = vpack.c.bf16 %v1900, %v1897
        %1906 = vrot.lane.b32.xlu0 %v1903, 112
        %v1907 = vpop.permute.xlu0 %1906
        %v1909 = vsel %vm623, %v1907, 0
        %1911 = vmatprep.subr.bf16.mxu0 0
        %1912 = vmatpush1.bf16.msra.mxu0 0
        %1913 = vmatprep.subr.bf16.mxu0 0
        %1914 = vmatpush1.bf16.msra.mxu0 0
        %1915 = vmatprep.subr.bf16.mxu0 0
        %1916 = vmatpush1.bf16.msra.mxu0 0
        %1917 = vmatprep.subr.bf16.mxu0 0
        %1918 = vmatpush1.bf16.msra.mxu0 0
        %1919 = vmatprep.subr.bf16.mxu0 0
        %1920 = vmatpush1.bf16.msra.mxu0 0
        %1921 = vmatprep.subr.bf16.mxu0 0
        %1922 = vmatpush1.bf16.msra.mxu0 0
        %1923 = vmatprep.subr.bf16.mxu0 0
        %1924 = vmatpush1.bf16.msra.mxu0 0
        %1925 = vmatprep.subr.bf16.mxu0 0
        %1926 = vmatpush1.bf16.msra.mxu0 %v1904
        %1927 = vmatprep.subr.bf16.mxu0 0
        %1928 = vmatpush2.bf16.msra.mxu0 0
        %1929 = vmatprep.subr.bf16.mxu0 0
        %1930 = vmatpush2.bf16.msra.mxu0 0
        %1931 = vmatprep.subr.bf16.mxu0 0
        %1932 = vmatpush2.bf16.msra.mxu0 0
        %1933 = vmatprep.subr.bf16.mxu0 0
        %1934 = vmatpush2.bf16.msra.mxu0 0
        %1935 = vmatprep.subr.bf16.mxu0 0
        %1936 = vmatpush2.bf16.msra.mxu0 0
        %1937 = vmatprep.subr.bf16.mxu0 0
        %1938 = vmatpush2.bf16.msra.mxu0 0
        %1939 = vmatprep.subr.bf16.mxu0 0
        %1940 = vmatpush2.bf16.msra.mxu0 0
        %1941 = vmatprep.subr.bf16.mxu0 0
        %1942 = vmatpush2.bf16.msra.mxu0 0
        %1943 = vmatprep.mubr.bf16.mxu0 0
        %1944 = vmatmul.mubr.bf16.gmra.mxu0 %v1909
        %v1945 = vpop.f32.mrf.mxu0
        %v1946 = vadd.f32 0.0, %v1945
        %v1947 = vpop.f32.mrf.mxu0
        %v1948 = vpop.f32.mrf.mxu0
        %v1949 = vadd.f32 0.0, %v1948
        %v1950 = vpop.f32.mrf.mxu0
        %1951 = vdwg.mxu0
        %1954 = vrot.lane.b32.xlu0 %v1946, 16
        %v1955 = vpop.permute.xlu0 %1954
        %1956 = vrot.lane.b32.xlu0 %v1949, 16
        %v1957 = vpop.permute.xlu0 %1956
        %v1960 = vsel %vm623, %v1772, %v1955
        %v1961 = vsel %vm623, %v1775, %v1957
        %v1962 = vpack.c.bf16 %v1961, %v1960
        %s1963 = scalar_lea.vmem %s3, 16
        %v1964 = vld [vmem:[%s1963] sm:$0xf]
        %v1965 = vld [vmem:[%s1963 + $0x4] sm:$0xf]
        %v1966 = vld [vmem:[%s1963 + $0x8] sm:$0xf]
        %v1967 = vld [vmem:[%s1963 + $0xc] sm:$0xf]
        %s1968 = scalar_lea.vmem %s4, 1
        %v1969 = vld [vmem:[%s1968] sm:$0x1]
        %v1971 = vlaneseq
        %v1972 = vshrl.u32 %v1971, 7
        %v1973 = vsub.s32 0, %v1972
        %v1974 = vrot.slane %v1969, %v1973
        %v1980 = vunpack.c.l.b16 %v1964
        %v1981 = vunpack.c.l.b16 %v1965
        %v1982 = vunpack.c.l.b16 %v1966
        %v1983 = vunpack.c.l.b16 %v1967
        %v1984 = vpack.c.b16 %v1981, %v1980
        %v1985 = vpack.c.b16 %v1983, %v1982
        %v1989 = vsel %vm576, %v1962, 0
        %1991 = vmatprep.subr.bf16.mxu0 0
        %1992 = vmatpush1.bf16.msra.mxu0 0
        %1993 = vmatprep.subr.bf16.mxu0 0
        %1994 = vmatpush1.bf16.msra.mxu0 0
        %1995 = vmatprep.subr.bf16.mxu0 0
        %1996 = vmatpush1.bf16.msra.mxu0 0
        %1997 = vmatprep.subr.bf16.mxu0 0
        %1998 = vmatpush1.bf16.msra.mxu0 0
        %1999 = vmatprep.subr.bf16.mxu0 0
        %2000 = vmatpush1.bf16.msra.mxu0 0
        %2001 = vmatprep.subr.bf16.mxu0 0
        %2002 = vmatpush1.bf16.msra.mxu0 0
        %2003 = vmatprep.subr.bf16.mxu0 0
        %2004 = vmatpush1.bf16.msra.mxu0 %v1985
        %2005 = vmatprep.subr.bf16.mxu0 0
        %2006 = vmatpush1.bf16.msra.mxu0 %v1984
        %2007 = vmatprep.subr.bf16.mxu0 0
        %2008 = vmatpush2.bf16.msra.mxu0 0
        %2009 = vmatprep.subr.bf16.mxu0 0
        %2010 = vmatpush2.bf16.msra.mxu0 0
        %2011 = vmatprep.subr.bf16.mxu0 0
        %2012 = vmatpush2.bf16.msra.mxu0 0
        %2013 = vmatprep.subr.bf16.mxu0 0
        %2014 = vmatpush2.bf16.msra.mxu0 0
        %2015 = vmatprep.subr.bf16.mxu0 0
        %2016 = vmatpush2.bf16.msra.mxu0 0
        %2017 = vmatprep.subr.bf16.mxu0 0
        %2018 = vmatpush2.bf16.msra.mxu0 0
        %2019 = vmatprep.subr.bf16.mxu0 0
        %2020 = vmatpush2.bf16.msra.mxu0 0
        %2021 = vmatprep.subr.bf16.mxu0 0
        %2022 = vmatpush2.bf16.msra.mxu0 0
        %2023 = vmatprep.mubr.bf16.mxu0 0
        %2024 = vmatmul.mubr.bf16.gmra.mxu0 %v1989
        %v2025 = vpop.f32.mrf.mxu0
        %v2026 = vadd.f32 %v1974, %v2025
        %v2027 = vpop.f32.mrf.mxu0
        %v2028 = vpop.f32.mrf.mxu0
        %v2029 = vadd.f32 %v1974, %v2028
        %v2030 = vpop.f32.mrf.mxu0
        %2031 = vdwg.mxu0
        %v2032 = vadd.f32 %v2026, %v1543
        %v2033 = vadd.f32 %v2029, %v1544
        %s2034 = scalar_lea.vmem %s5, 1
        %v2035 = vld [vmem:[%s2034] sm:$0x1]
        %s2036 = scalar_lea.vmem %s6, 1
        %v2037 = vld [vmem:[%s2036] sm:$0x1]
        %v2038 = vsel %vm576, %v2032, 0.0
        %2039 = vadd.xlane.f32.xlu0 %v2038
        %v2040 = vpop.xlane.xlu0 %2039
        %v2041 = vsel %vm576, %v2033, 0.0
        %2042 = vadd.xlane.f32.xlu0 %v2041
        %v2043 = vpop.xlane.xlu0 %2042
        %v2044 = vmul.f32 %v2040, %v1058
        %v2045 = vmul.f32 %v2043, %v1058
        %v2046 = vsub.f32 %v2032, %v2044
        %v2047 = vsub.f32 %v2033, %v2045
        %v2048 = vmul.f32 %v2046, %v2046
        %v2049 = vmul.f32 %v2047, %v2047
        %v2050 = vsel %vm576, %v2048, 0.0
        %2051 = vadd.xlane.f32.xlu0 %v2050
        %v2052 = vpop.xlane.xlu0 %2051
        %v2053 = vsel %vm576, %v2049, 0.0
        %2054 = vadd.xlane.f32.xlu0 %v2053
        %v2055 = vpop.xlane.xlu0 %2054
        %v2056 = vmul.f32 %v2052, %v1058
        %v2057 = vmul.f32 %v2055, %v1058
        %v2058 = vadd.f32 %v2056, 1e-05
        %v2059 = vadd.f32 %v2057, 1e-05
        %v2060 = vrsqrt.pop %v2058
        %v2061 = vrsqrt.pop %v2059
        %v2062 = vmul.f32 %v2046, %v2060
        %v2063 = vmul.f32 %v2047, %v2061
        %v2065 = vlaneseq
        %v2066 = vshrl.u32 %v2065, 7
        %v2067 = vsub.s32 0, %v2066
        %v2068 = vrot.slane %v2035, %v2067
        %v2070 = vmul.f32 %v2062, %v2068
        %v2071 = vmul.f32 %v2063, %v2068
        %v2073 = vlaneseq
        %v2074 = vshrl.u32 %v2073, 7
        %v2075 = vsub.s32 0, %v2074
        %v2076 = vrot.slane %v2037, %v2075
        %v2078 = vadd.f32 %v2070, %v2076
        %v2079 = vadd.f32 %v2071, %v2076
        %v2080 = vmul.f32 %v2078, %v521
        %v2081 = vmul.f32 %v2079, %v522
        %s2082 = scalar_lea.vmem %s8, 1
        %v2083 = vld [vmem:[%s2082] sm:$0x1]
        %v2084 = vrot.slane %v2080, 6
        %v2085 = vrot.slane %v2081, 6
        %v2086 = vsel %vm1100, %v2084, %v2085
        %v2087 = vsel %vm1100, %v2085, %v2084
        %v2088 = vsel %vm1105, %v2087, 0.0
        %v2089 = vsel %vm1106, %v2086, 0.0
        %v2090 = vrot.slane %v2080, 7
        %v2091 = vrot.slane %v2081, 7
        %v2092 = vsel %vm1111, %v2090, %v2091
        %v2093 = vsel %vm1111, %v2091, %v2090
        %v2094 = vsel %vm1116, %v2093, 0.0
        %v2095 = vsel %vm1117, %v2092, 0.0
        %v2096 = vrot.slane %v2080, 1
        %v2097 = vrot.slane %v2081, 1
        %v2098 = vsel %vm1122, %v2096, %v2097
        %v2099 = vsel %vm1122, %v2097, %v2096
        %v2100 = vsel %vm1127, %v2098, 0.0
        %v2101 = vsel %vm1128, %v2099, 0.0
        %v2102 = vrot.slane %v2080, 2
        %v2103 = vrot.slane %v2081, 2
        %v2104 = vsel %vm1133, %v2102, %v2103
        %v2105 = vsel %vm1133, %v2103, %v2102
        %v2106 = vsel %vm1138, %v2104, 0.0
        %v2107 = vsel %vm1139, %v2105, 0.0
        %2110 = vrot.lane.b32.xlu0 %v2094, 32
        %v2111 = vpop.permute.xlu0 %2110
        %2112 = vrot.lane.b32.xlu0 %v2095, 32
        %v2113 = vpop.permute.xlu0 %2112
        %2118 = vrot.lane.b32.xlu0 %v2080, 64
        %v2119 = vpop.permute.xlu0 %2118
        %2120 = vrot.lane.b32.xlu0 %v2081, 64
        %v2121 = vpop.permute.xlu0 %2120
        %2126 = vrot.lane.b32.xlu0 %v2100, 96
        %v2127 = vpop.permute.xlu0 %2126
        %2128 = vrot.lane.b32.xlu0 %v2101, 96
        %v2129 = vpop.permute.xlu0 %2128
        %v2132 = vsel %vm576, %v2088, %v2111
        %v2133 = vsel %vm576, %v2089, %v2113
        %v2134 = vsel %vm1168, %v2132, %v2119
        %v2135 = vsel %vm1168, %v2133, %v2121
        %v2136 = vsel %vm1171, %v2134, %v2127
        %v2137 = vsel %vm1171, %v2135, %v2129
        %v2138 = vpack.c.bf16 %v2137, %v2136
        %v2139 = vpack.c.bf16 %v2107, %v2106
        %s2140 = scalar_lea.vmem %s7, 80
        %v2141 = vld [vmem:[%s2140] sm:$0xf]
        %v2142 = vld [vmem:[%s2140 + $0x4] sm:$0xf]
        %v2143 = vld [vmem:[%s2140 + $0x8] sm:$0xf]
        %v2144 = vld [vmem:[%s2140 + $0xc] sm:$0xf]
        %v2145 = vld [vmem:[%s2140 + $0x10] sm:$0xf]
        %v2146 = vld [vmem:[%s2140 + $0x14] sm:$0xf]
        %v2147 = vld [vmem:[%s2140 + $0x18] sm:$0xf]
        %v2148 = vld [vmem:[%s2140 + $0x1c] sm:$0xf]
        %v2149 = vld [vmem:[%s2140 + $0x20] sm:$0xf]
        %v2150 = vld [vmem:[%s2140 + $0x24] sm:$0xf]
        %v2151 = vld [vmem:[%s2140 + $0x28] sm:$0xf]
        %v2152 = vld [vmem:[%s2140 + $0x2c] sm:$0xf]
        %v2153 = vld [vmem:[%s2140 + $0x30] sm:$0xf]
        %v2154 = vld [vmem:[%s2140 + $0x34] sm:$0xf]
        %v2155 = vld [vmem:[%s2140 + $0x38] sm:$0xf]
        %v2156 = vld [vmem:[%s2140 + $0x3c] sm:$0xf]
        %v2157 = vld [vmem:[%s2140 + $0x40] sm:$0xf]
        %v2158 = vld [vmem:[%s2140 + $0x44] sm:$0xf]
        %v2159 = vld [vmem:[%s2140 + $0x48] sm:$0xf]
        %v2160 = vld [vmem:[%s2140 + $0x4c] sm:$0xf]
        %v2162 = vlaneseq
        %v2163 = vshrl.u32 %v2162, 7
        %v2164 = vsub.s32 0, %v2163
        %v2165 = vrot.slane %v2083, %v2164
        %v2187 = vunpack.c.l.b16 %v2141
        %v2188 = vunpack.c.l.b16 %v2142
        %v2189 = vunpack.c.l.b16 %v2143
        %v2190 = vunpack.c.l.b16 %v2144
        %v2191 = vunpack.c.l.b16 %v2145
        %v2192 = vunpack.c.l.b16 %v2146
        %v2193 = vunpack.c.l.b16 %v2147
        %v2194 = vunpack.c.l.b16 %v2148
        %v2195 = vunpack.c.l.b16 %v2149
        %v2196 = vunpack.c.l.b16 %v2150
        %v2197 = vunpack.c.l.b16 %v2151
        %v2198 = vunpack.c.l.b16 %v2152
        %v2199 = vunpack.c.l.b16 %v2153
        %v2200 = vunpack.c.l.b16 %v2154
        %v2201 = vunpack.c.l.b16 %v2155
        %v2202 = vunpack.c.l.b16 %v2156
        %v2203 = vunpack.c.l.b16 %v2157
        %v2204 = vunpack.c.l.b16 %v2158
        %v2205 = vunpack.c.l.b16 %v2159
        %v2206 = vunpack.c.l.b16 %v2160
        %v2207 = vpack.c.b16 %v2188, %v2187
        %v2208 = vpack.c.b16 %v2190, %v2189
        %v2209 = vpack.c.b16 %v2192, %v2191
        %v2210 = vpack.c.b16 %v2194, %v2193
        %v2211 = vpack.c.b16 %v2196, %v2195
        %v2212 = vpack.c.b16 %v2198, %v2197
        %v2213 = vpack.c.b16 %v2200, %v2199
        %v2214 = vpack.c.b16 %v2202, %v2201
        %v2215 = vpack.c.b16 %v2204, %v2203
        %v2216 = vpack.c.b16 %v2206, %v2205
        %v2228 = vsel %vm576, %v2139, 0
        %2230 = vmatprep.subr.bf16.mxu0 0
        %2231 = vmatpush1.bf16.msra.mxu0 %v2214
        %2232 = vmatprep.subr.bf16.mxu0 0
        %2233 = vmatpush1.bf16.msra.mxu0 %v2213
        %2234 = vmatprep.subr.bf16.mxu0 0
        %2235 = vmatpush1.bf16.msra.mxu0 %v2212
        %2236 = vmatprep.subr.bf16.mxu0 0
        %2237 = vmatpush1.bf16.msra.mxu0 %v2211
        %2238 = vmatprep.subr.bf16.mxu0 0
        %2239 = vmatpush1.bf16.msra.mxu0 %v2210
        %2240 = vmatprep.subr.bf16.mxu0 0
        %2241 = vmatpush1.bf16.msra.mxu0 %v2209
        %2242 = vmatprep.subr.bf16.mxu0 0
        %2243 = vmatpush1.bf16.msra.mxu0 %v2208
        %2244 = vmatprep.subr.bf16.mxu0 0
        %2245 = vmatpush1.bf16.msra.mxu0 %v2207
        %2246 = vmatprep.subr.bf16.mxu0 0
        %2247 = vmatpush2.bf16.msra.mxu0 0
        %2248 = vmatprep.subr.bf16.mxu0 0
        %2249 = vmatpush2.bf16.msra.mxu0 0
        %2250 = vmatprep.subr.bf16.mxu0 0
        %2251 = vmatpush2.bf16.msra.mxu0 0
        %2252 = vmatprep.subr.bf16.mxu0 0
        %2253 = vmatpush2.bf16.msra.mxu0 0
        %2254 = vmatprep.subr.bf16.mxu0 0
        %2255 = vmatpush2.bf16.msra.mxu0 0
        %2256 = vmatprep.subr.bf16.mxu0 0
        %2257 = vmatpush2.bf16.msra.mxu0 0
        %2258 = vmatprep.subr.bf16.mxu0 0
        %2259 = vmatpush2.bf16.msra.mxu0 %v2216
        %2260 = vmatprep.subr.bf16.mxu0 0
        %2261 = vmatpush2.bf16.msra.mxu0 %v2215
        %2262 = vmatprep.mubr.bf16.mxu0 %v2228
        %2263 = vmatmul.mubr.bf16.gmra.mxu0 %v2138
        %v2264 = vpop.f32.mrf.mxu0
        %v2265 = vadd.f32 %v2165, %v2264
        %v2266 = vpop.f32.mrf.mxu0
        %v2267 = vpop.f32.mrf.mxu0
        %v2268 = vadd.f32 %v2165, %v2267
        %v2269 = vpop.f32.mrf.mxu0
        %2270 = vdwg.mxu0
        %v2271 = vmax.f32 %v2265, 0.0
        %v2272 = vmax.f32 %v2268, 0.0
        %v2273 = vmul.f32 %v2271, %v521
        %v2274 = vmul.f32 %v2272, %v522
        %s2275 = scalar_lea.vmem %s10, 1
        %v2276 = vld [vmem:[%s2275] sm:$0x1]
        %v2277 = vrot.slane %v2273, 6
        %v2278 = vrot.slane %v2274, 6
        %v2279 = vsel %vm1100, %v2277, %v2278
        %v2280 = vsel %vm1100, %v2278, %v2277
        %v2281 = vsel %vm1105, %v2280, 0.0
        %v2282 = vsel %vm1106, %v2279, 0.0
        %v2283 = vrot.slane %v2273, 7
        %v2284 = vrot.slane %v2274, 7
        %v2285 = vsel %vm1111, %v2283, %v2284
        %v2286 = vsel %vm1111, %v2284, %v2283
        %v2287 = vsel %vm1116, %v2286, 0.0
        %v2288 = vsel %vm1117, %v2285, 0.0
        %v2289 = vrot.slane %v2273, 1
        %v2290 = vrot.slane %v2274, 1
        %v2291 = vsel %vm1122, %v2289, %v2290
        %v2292 = vsel %vm1122, %v2290, %v2289
        %v2293 = vsel %vm1127, %v2291, 0.0
        %v2294 = vsel %vm1128, %v2292, 0.0
        %v2295 = vrot.slane %v2273, 2
        %v2296 = vrot.slane %v2274, 2
        %v2297 = vsel %vm1133, %v2295, %v2296
        %v2298 = vsel %vm1133, %v2296, %v2295
        %v2299 = vsel %vm1138, %v2297, 0.0
        %v2300 = vsel %vm1139, %v2298, 0.0
        %2303 = vrot.lane.b32.xlu0 %v2287, 32
        %v2304 = vpop.permute.xlu0 %2303
        %2305 = vrot.lane.b32.xlu0 %v2288, 32
        %v2306 = vpop.permute.xlu0 %2305
        %2311 = vrot.lane.b32.xlu0 %v2273, 64
        %v2312 = vpop.permute.xlu0 %2311
        %2313 = vrot.lane.b32.xlu0 %v2274, 64
        %v2314 = vpop.permute.xlu0 %2313
        %2319 = vrot.lane.b32.xlu0 %v2293, 96
        %v2320 = vpop.permute.xlu0 %2319
        %2321 = vrot.lane.b32.xlu0 %v2294, 96
        %v2322 = vpop.permute.xlu0 %2321
        %v2325 = vsel %vm576, %v2281, %v2304
        %v2326 = vsel %vm576, %v2282, %v2306
        %v2327 = vsel %vm1168, %v2325, %v2312
        %v2328 = vsel %vm1168, %v2326, %v2314
        %v2329 = vsel %vm1171, %v2327, %v2320
        %v2330 = vsel %vm1171, %v2328, %v2322
        %v2331 = vpack.c.bf16 %v2330, %v2329
        %v2332 = vpack.c.bf16 %v2300, %v2299
        %s2333 = scalar_lea.vmem %s9, 80
        %v2334 = vld [vmem:[%s2333] sm:$0xf]
        %v2335 = vld [vmem:[%s2333 + $0x4] sm:$0xf]
        %v2336 = vld [vmem:[%s2333 + $0x8] sm:$0xf]
        %v2337 = vld [vmem:[%s2333 + $0xc] sm:$0xf]
        %v2338 = vld [vmem:[%s2333 + $0x10] sm:$0xf]
        %v2339 = vld [vmem:[%s2333 + $0x14] sm:$0xf]
        %v2340 = vld [vmem:[%s2333 + $0x18] sm:$0xf]
        %v2341 = vld [vmem:[%s2333 + $0x1c] sm:$0xf]
        %v2342 = vld [vmem:[%s2333 + $0x20] sm:$0xf]
        %v2343 = vld [vmem:[%s2333 + $0x24] sm:$0xf]
        %v2344 = vld [vmem:[%s2333 + $0x28] sm:$0xf]
        %v2345 = vld [vmem:[%s2333 + $0x2c] sm:$0xf]
        %v2346 = vld [vmem:[%s2333 + $0x30] sm:$0xf]
        %v2347 = vld [vmem:[%s2333 + $0x34] sm:$0xf]
        %v2348 = vld [vmem:[%s2333 + $0x38] sm:$0xf]
        %v2349 = vld [vmem:[%s2333 + $0x3c] sm:$0xf]
        %v2350 = vld [vmem:[%s2333 + $0x40] sm:$0xf]
        %v2351 = vld [vmem:[%s2333 + $0x44] sm:$0xf]
        %v2352 = vld [vmem:[%s2333 + $0x48] sm:$0xf]
        %v2353 = vld [vmem:[%s2333 + $0x4c] sm:$0xf]
        %v2355 = vlaneseq
        %v2356 = vshrl.u32 %v2355, 7
        %v2357 = vsub.s32 0, %v2356
        %v2358 = vrot.slane %v2276, %v2357
        %v2380 = vunpack.c.l.b16 %v2334
        %v2381 = vunpack.c.l.b16 %v2335
        %v2382 = vunpack.c.l.b16 %v2336
        %v2383 = vunpack.c.l.b16 %v2337
        %v2384 = vunpack.c.l.b16 %v2338
        %v2385 = vunpack.c.l.b16 %v2339
        %v2386 = vunpack.c.l.b16 %v2340
        %v2387 = vunpack.c.l.b16 %v2341
        %v2388 = vunpack.c.l.b16 %v2342
        %v2389 = vunpack.c.l.b16 %v2343
        %v2390 = vunpack.c.l.b16 %v2344
        %v2391 = vunpack.c.l.b16 %v2345
        %v2392 = vunpack.c.l.b16 %v2346
        %v2393 = vunpack.c.l.b16 %v2347
        %v2394 = vunpack.c.l.b16 %v2348
        %v2395 = vunpack.c.l.b16 %v2349
        %v2396 = vunpack.c.l.b16 %v2350
        %v2397 = vunpack.c.l.b16 %v2351
        %v2398 = vunpack.c.l.b16 %v2352
        %v2399 = vunpack.c.l.b16 %v2353
        %v2400 = vpack.c.b16 %v2381, %v2380
        %v2401 = vpack.c.b16 %v2383, %v2382
        %v2402 = vpack.c.b16 %v2385, %v2384
        %v2403 = vpack.c.b16 %v2387, %v2386
        %v2404 = vpack.c.b16 %v2389, %v2388
        %v2405 = vpack.c.b16 %v2391, %v2390
        %v2406 = vpack.c.b16 %v2393, %v2392
        %v2407 = vpack.c.b16 %v2395, %v2394
        %v2408 = vpack.c.b16 %v2397, %v2396
        %v2409 = vpack.c.b16 %v2399, %v2398
        %v2421 = vsel %vm576, %v2332, 0
        %2423 = vmatprep.subr.bf16.mxu0 0
        %2424 = vmatpush1.bf16.msra.mxu0 %v2407
        %2425 = vmatprep.subr.bf16.mxu0 0
        %2426 = vmatpush1.bf16.msra.mxu0 %v2406
        %2427 = vmatprep.subr.bf16.mxu0 0
        %2428 = vmatpush1.bf16.msra.mxu0 %v2405
        %2429 = vmatprep.subr.bf16.mxu0 0
        %2430 = vmatpush1.bf16.msra.mxu0 %v2404
        %2431 = vmatprep.subr.bf16.mxu0 0
        %2432 = vmatpush1.bf16.msra.mxu0 %v2403
        %2433 = vmatprep.subr.bf16.mxu0 0
        %2434 = vmatpush1.bf16.msra.mxu0 %v2402
        %2435 = vmatprep.subr.bf16.mxu0 0
        %2436 = vmatpush1.bf16.msra.mxu0 %v2401
        %2437 = vmatprep.subr.bf16.mxu0 0
        %2438 = vmatpush1.bf16.msra.mxu0 %v2400
        %2439 = vmatprep.subr.bf16.mxu0 0
        %2440 = vmatpush2.bf16.msra.mxu0 0
        %2441 = vmatprep.subr.bf16.mxu0 0
        %2442 = vmatpush2.bf16.msra.mxu0 0
        %2443 = vmatprep.subr.bf16.mxu0 0
        %2444 = vmatpush2.bf16.msra.mxu0 0
        %2445 = vmatprep.subr.bf16.mxu0 0
        %2446 = vmatpush2.bf16.msra.mxu0 0
        %2447 = vmatprep.subr.bf16.mxu0 0
        %2448 = vmatpush2.bf16.msra.mxu0 0
        %2449 = vmatprep.subr.bf16.mxu0 0
        %2450 = vmatpush2.bf16.msra.mxu0 0
        %2451 = vmatprep.subr.bf16.mxu0 0
        %2452 = vmatpush2.bf16.msra.mxu0 %v2409
        %2453 = vmatprep.subr.bf16.mxu0 0
        %2454 = vmatpush2.bf16.msra.mxu0 %v2408
        %2455 = vmatprep.mubr.bf16.mxu0 %v2421
        %2456 = vmatmul.mubr.bf16.gmra.mxu0 %v2331
        %v2457 = vpop.f32.mrf.mxu0
        %v2458 = vadd.f32 %v2358, %v2457
        %v2459 = vpop.f32.mrf.mxu0
        %v2460 = vpop.f32.mrf.mxu0
        %v2461 = vadd.f32 %v2358, %v2460
        %v2462 = vpop.f32.mrf.mxu0
        %2463 = vdwg.mxu0
        %v2464 = vadd.f32 %v2458, %v2078
        %v2465 = vadd.f32 %v2461, %v2079
        %s2466 = scalar_lea.vmem %s11, 1
        %v2467 = vld [vmem:[%s2466] sm:$0x1]
        %s2468 = scalar_lea.vmem %s12, 1
        %v2469 = vld [vmem:[%s2468] sm:$0x1]
        %v2470 = vsel %vm576, %v2464, 0.0
        %2471 = vadd.xlane.f32.xlu0 %v2470
        %v2472 = vpop.xlane.xlu0 %2471
        %v2473 = vsel %vm576, %v2465, 0.0
        %2474 = vadd.xlane.f32.xlu0 %v2473
        %v2475 = vpop.xlane.xlu0 %2474
        %v2476 = vmul.f32 %v2472, %v1058
        %v2477 = vmul.f32 %v2475, %v1058
        %v2478 = vsub.f32 %v2464, %v2476
        %v2479 = vsub.f32 %v2465, %v2477
        %v2480 = vmul.f32 %v2478, %v2478
        %v2481 = vmul.f32 %v2479, %v2479
        %v2482 = vsel %vm576, %v2480, 0.0
        %2483 = vadd.xlane.f32.xlu0 %v2482
        %v2484 = vpop.xlane.xlu0 %2483
        %v2485 = vsel %vm576, %v2481, 0.0
        %2486 = vadd.xlane.f32.xlu0 %v2485
        %v2487 = vpop.xlane.xlu0 %2486
        %v2488 = vmul.f32 %v2484, %v1058
        %v2489 = vmul.f32 %v2487, %v1058
        %v2490 = vadd.f32 %v2488, 1e-05
        %v2491 = vadd.f32 %v2489, 1e-05
        %v2492 = vrsqrt.pop %v2490
        %v2493 = vrsqrt.pop %v2491
        %v2494 = vmul.f32 %v2478, %v2492
        %v2495 = vmul.f32 %v2479, %v2493
        %v2497 = vlaneseq
        %v2498 = vshrl.u32 %v2497, 7
        %v2499 = vsub.s32 0, %v2498
        %v2500 = vrot.slane %v2467, %v2499
        %v2502 = vmul.f32 %v2494, %v2500
        %v2503 = vmul.f32 %v2495, %v2500
        %v2505 = vlaneseq
        %v2506 = vshrl.u32 %v2505, 7
        %v2507 = vsub.s32 0, %v2506
        %v2508 = vrot.slane %v2469, %v2507
        %v2510 = vadd.f32 %v2502, %v2508
        %v2511 = vadd.f32 %v2503, %v2508
        %v2512 = vmul.f32 %v2510, %v521
        %v2513 = vmul.f32 %v2511, %v522
        %2514 = vxpose.xlu0.b32.start [1/16] %v2512, 128
        %2515 = vxpose.xlu0.b32.cont [2/16] %v2513, 128
        %2516 = vxpose.xlu0.b32.cont [3/16] 0.0, 128
        %2517 = vxpose.xlu0.b32.cont [4/16] 0.0, 128
        %2518 = vxpose.xlu0.b32.cont [5/16] 0.0, 128
        %2519 = vxpose.xlu0.b32.cont [6/16] 0.0, 128
        %2520 = vxpose.xlu0.b32.cont [7/16] 0.0, 128
        %2521 = vxpose.xlu0.b32.cont [8/16] 0.0, 128
        %2522 = vxpose.xlu0.b32.cont [9/16] 0.0, 128
        %2523 = vxpose.xlu0.b32.cont [10/16] 0.0, 128
        %2524 = vxpose.xlu0.b32.cont [11/16] 0.0, 128
        %2525 = vxpose.xlu0.b32.cont [12/16] 0.0, 128
        %2526 = vxpose.xlu0.b32.cont [13/16] 0.0, 128
        %2527 = vxpose.xlu0.b32.cont [14/16] 0.0, 128
        %2528 = vxpose.xlu0.b32.cont [15/16] 0.0, 128
        %2529 = vxpose.xlu0.b32.end [16/16] 0.0, 128
        %v2530 = vpop.trf.xlu0
        %v2531 = vpop.trf.xlu0
        %v2532 = vpop.trf.xlu0
        %v2533 = vpop.trf.xlu0
        %v2534 = vpop.trf.xlu0
        %v2535 = vpop.trf.xlu0
        %v2536 = vpop.trf.xlu0
        %v2537 = vpop.trf.xlu0
        %v2538 = vpop.trf.xlu0
        %v2539 = vpop.trf.xlu0
        %v2540 = vpop.trf.xlu0
        %v2541 = vpop.trf.xlu0
        %v2542 = vpop.trf.xlu0
        %v2543 = vpop.trf.xlu0
        %v2544 = vpop.trf.xlu0
        %v2545 = vpop.trf.xlu0
        %2546 = vst.msk [vmem:[%s498] sm:$0xff] %vm623, %v2530
        %2547 = vst.msk [vmem:[%s498 + $0x8] sm:$0xff] %vm623, %v2531
        %2548 = vst.msk [vmem:[%s498 + $0x10] sm:$0xff] %vm623, %v2532
        %2549 = vst.msk [vmem:[%s498 + $0x18] sm:$0xff] %vm623, %v2533
        %v2550 = vld [vmem:[%s13] sm:$0xf]
        %v2551 = vld [vmem:[%s13 + $0x4] sm:$0xf]
        %v2552 = vpack.c.bf16 %v2531, %v2530
        %v2553 = vpack.c.bf16 %v2533, %v2532
        %v2554 = vld [vmem:[%s14] sm:$0xff]
        %v2555 = vld [vmem:[%s14 + $0x8] sm:$0xff]
        %2557 = vset.pattern.permute.xlu0 0
        %2558 = vperm.xlu0 %2557, %v2554
        %v2559 = vpop.permute.xlu0 %2558
        %2562 = vset.pattern.permute.xlu0 0
        %2563 = vperm.xlu0 %2562, %v2555
        %v2564 = vpop.permute.xlu0 %2563
        %v2568 = vunpack.c.l.b16 %v2550
        %v2569 = vunpack.c.l.b16 %v2551
        %v2570 = vpack.c.b16 %v2569, %v2568
        %v2572 = vsel %vm576, %v2570, 0
        %2574 = vmatprep.subr.bf16.mxu0 0
        %2575 = vmatpush1.bf16.msra.mxu0 0
        %2576 = vmatprep.subr.bf16.mxu0 0
        %2577 = vmatpush1.bf16.msra.mxu0 0
        %2578 = vmatprep.subr.bf16.mxu0 0
        %2579 = vmatpush1.bf16.msra.mxu0 0
        %2580 = vmatprep.subr.bf16.mxu0 0
        %2581 = vmatpush1.bf16.msra.mxu0 0
        %2582 = vmatprep.subr.bf16.mxu0 0
        %2583 = vmatpush1.bf16.msra.mxu0 0
        %2584 = vmatprep.subr.bf16.mxu0 0
        %2585 = vmatpush1.bf16.msra.mxu0 0
        %2586 = vmatprep.subr.bf16.mxu0 0
        %2587 = vmatpush1.bf16.msra.mxu0 %v2553
        %2588 = vmatprep.subr.bf16.mxu0 0
        %2589 = vmatpush1.bf16.msra.mxu0 %v2552
        %2590 = vmatprep.subr.bf16.mxu0 0
        %2591 = vmatpush2.bf16.msra.mxu0 0
        %2592 = vmatprep.subr.bf16.mxu0 0
        %2593 = vmatpush2.bf16.msra.mxu0 0
        %2594 = vmatprep.subr.bf16.mxu0 0
        %2595 = vmatpush2.bf16.msra.mxu0 0
        %2596 = vmatprep.subr.bf16.mxu0 0
        %2597 = vmatpush2.bf16.msra.mxu0 0
        %2598 = vmatprep.subr.bf16.mxu0 0
        %2599 = vmatpush2.bf16.msra.mxu0 0
        %2600 = vmatprep.subr.bf16.mxu0 0
        %2601 = vmatpush2.bf16.msra.mxu0 0
        %2602 = vmatprep.subr.bf16.mxu0 0
        %2603 = vmatpush2.bf16.msra.mxu0 0
        %2604 = vmatprep.subr.bf16.mxu0 0
        %2605 = vmatpush2.bf16.msra.mxu0 0
        %2606 = vmatprep.mubr.bf16.mxu0 0
        %2607 = vmatmul.mubr.bf16.gmra.mxu0 %v2572
        %v2608 = vpop.f32.mrf.mxu0
        %v2609 = vadd.f32 %v2559, %v2608
        %v2610 = vpop.f32.mrf.mxu0
        %v2611 = vpop.f32.mrf.mxu0
        %v2612 = vadd.f32 %v2564, %v2611
        %v2613 = vpop.f32.mrf.mxu0
        %2614 = vdwg.mxu0
        %2615 = vst.msk [vmem:[%s505] sm:$0xff] %vm623, %v2609
        %2616 = vst.msk [vmem:[%s505 + $0x8] sm:$0xff] %vm623, %v2612
        %s2617 = sand.u32 %s347, 1
        %s2618 = scalar_lea.sflag [#allocation5], %s2617
        %s2619 = sand.u32 %s347, 1
        %s2620 = smul.addr %s2619, 32
        %s2621 = scalar_lea.vmem [#allocation4], %s2620
        %s2622 = sand.u32 %s373, 1
        %s2623 = scalar_lea.sflag [#allocation7], %s2622
        %s2624 = sand.u32 %s373, 1
        %s2625 = smul.addr %s2624, 16
        %s2626 = scalar_lea.vmem [#allocation6], %s2625
        // Predicated region
        $region77: #{diffsinger_forward.1} parent=75 // pred_check
          %p2627 = pneg %p357
        $region78: #{diffsinger_forward.1} parent=75 // pred_check_branch
          %2629 = sbr.rel (%p2627) target = $region80
        $region79: #{diffsinger_forward.1} parent=75 // pred_region
          %s2631 = ssub.s32 512, 512
          %2632 = vsyncadd %s2618, %s2631
          %s2633 = smul.addr %s40, 4
          %s2634 = smul.addr %s2633, 128
          %s2635 = scalar_lea.hbm %s15, %s2634
          %s2636 = sshll.u32 %s2621, 4
          %s2637 = int_to_ptr.vmem [resolvable:$true] %s2636
          %2642 = dma.vmem_to_hbm [thread:$0]  %s2637, 512, %s2635, %s2618, 128, 128, 8
        $region80: #{diffsinger_forward.1} parent=75 // pred_fallthru
          _
        // Predicated region
        $region81: #{diffsinger_forward.1} parent=75 // pred_check
          %p2643 = pneg %p383
        $region82: #{diffsinger_forward.1} parent=75 // pred_check_branch
          %2645 = sbr.rel (%p2643) target = $region84
        $region83: #{diffsinger_forward.1} parent=75 // pred_region
          %s2647 = ssub.s32 256, 256
          %2648 = vsyncadd %s2623, %s2647
          %s2649 = smul.addr %s40, 2
          %s2650 = smul.addr %s2649, 128
          %s2651 = scalar_lea.hbm %s16, %s2650
          %s2652 = sshll.u32 %s2626, 4
          %s2653 = int_to_ptr.vmem [resolvable:$true] %s2652
          %2658 = dma.vmem_to_hbm [thread:$0]  %s2653, 256, %s2651, %s2623, 128, 128, 8
        $region84: #{diffsinger_forward.1} parent=75 // pred_fallthru
          _
      $region76: #{diffsinger_forward.1} parent=5 // pred_fallthru
        _
      %p2659 = scmp.le.s32.totalorder 2, %s35
      // Predicated region
      $region85: #{diffsinger_forward.1} parent=5 // pred_check
        %p2660 = pneg %p2659
      $region86: #{diffsinger_forward.1} parent=5 // pred_check_branch
        %2662 = sbr.rel (%p2660) target = $region88
      $region87: #{diffsinger_forward.1} parent=5 // pred_region
        %s2663 = ssub.s32 %s35, 2
        // Predicated region
        $region89: #{diffsinger_forward.1} parent=87 // pred_check
          %p2664 = pneg %p363
        $region90: #{diffsinger_forward.1} parent=87 // pred_check_branch
          %2666 = sbr.rel (%p2664) target = $region92
        $region91: #{diffsinger_forward.1} parent=87 // pred_region
          %s2667 = sand.u32 %s348, 1
          %s2668 = scalar_lea.sflag [#allocation5], %s2667
          %s2669 = sand.u32 %s348, 1
          %s2670 = smul.addr %s2669, 32
          %s2671 = scalar_lea.vmem [#allocation4], %s2670
          %2672 = dma.done %s2668, 512
        $region92: #{diffsinger_forward.1} parent=87 // pred_fallthru
          _
        // Predicated region
        $region93: #{diffsinger_forward.1} parent=87 // pred_check
          %p2673 = pneg %p389
        $region94: #{diffsinger_forward.1} parent=87 // pred_check_branch
          %2675 = sbr.rel (%p2673) target = $region96
        $region95: #{diffsinger_forward.1} parent=87 // pred_region
          %s2676 = sand.u32 %s374, 1
          %s2677 = scalar_lea.sflag [#allocation7], %s2676
          %s2678 = sand.u32 %s374, 1
          %s2679 = smul.addr %s2678, 16
          %s2680 = scalar_lea.vmem [#allocation6], %s2679
          %2681 = dma.done %s2677, 256
        $region96: #{diffsinger_forward.1} parent=87 // pred_fallthru
          _
      $region88: #{diffsinger_forward.1} parent=5 // pred_fallthru
        _
    $region6: #{diffsinger_forward.1} parent=1 // loop_footer
      %s39 = sadd.s32 1, %s35
    $region7: #{diffsinger_forward.1} parent=1 // loop_footer_branch
      %34 = sbr.rel target = $region3
    $region8: #{diffsinger_forward.1} parent=1 // loop_exit
      _
    %2682 = vsyncpa [#allocation5], 1
    %s2683 = scalar_lea.sflag [#allocation5], 1
    %2684 = vsyncpa %s2683, 1
    %2685 = vsyncpa [#allocation7], 1
    %s2686 = scalar_lea.sflag [#allocation7], 1
    %2687 = vsyncpa %s2686, 1

</llo_original>
